<compile_context>
chip_gen: v7x
topology: tpu7x:2x2x1
jax: 0.10.0
libtpu: 0.0.40
codegen_flags: <defaults>
</compile_context>

<pallas_src>
import jax
import jax.numpy as jnp
from jax import lax
from jax.experimental import pallas as pl
from jax.experimental.pallas import tpu as pltpu

# ------------------------- model hyper-parameters (small) -------------------------
N_IMG, M_IMG = 7, 7          # obs_space['image'][0:2]
C_IN = 3
HIDDEN = 32                  # cfg.hidden_size
MEMORY = 32                  # cfg.memory_size
N_ACT = 7
BATCH = 2
T_STEPS = 8
BN_EPS = 1e-5
LEAKY_SLOPE = 0.01

H1, W1 = N_IMG - 2, M_IMG - 2      # 5x5 after 3x3 conv
H2, W2 = H1 - 1, W1 - 1            # 4x4 after 2x2 conv
H3, W3 = H2 - 1, W2 - 1            # 3x3 after 2x2 conv
EMB_IN = H3 * W3 * 64              # 576

# ---------------- packed parameter layout (static, tile-aligned offsets) ----------
K1P = 32                                             # conv1 K = 27 -> 32 lanes
W1_OFF, W1_ROWS, W1_COLS = 0, K1P, 16
W2_OFF = 32                                          # 4 taps x (16,32)
W3_OFF = 96                                          # 4 taps x (32,64)
WBIG_OFF = 224                                       # fused fc1 + GRU-input matrix
WBIG_ROWS = EMB_IN + 32                              # [flat 576 | act-slab 32] = 608
W_TOTAL_ROWS, W_LANES = WBIG_OFF + WBIG_ROWS, 128    # (832, 128) bf16

# f32 parameter slab (biases + recurrent weight kept in f32)
B1_OFF, B2_OFF, B3_OFF, BFU_OFF, BHH_OFF = 0, 128, 256, 384, 512
WHH_ROW = 8
F_ROWS, F_LANES = 40, 640

OUT_LANES = 128                                      # [mem 32 | emb 32 | pad 64]


def _act_row(b):
    """bf16-tile-aligned row where the action rows start in the per-step slab."""
    return ((b * H1 * W1 + 15) // 16) * 16


# ----------------------------------- kernel ---------------------------------------
def _lrelu(v):
    return jnp.where(v > 0, v, LEAKY_SLOPE * v)


def curiosity_seq_kernel(xin_ref, mem0_ref, w_ref, f_ref, out_ref, mem_scr):
    t = pl.program_id(0)
    b_sz = mem0_ref.shape[0]
    act_row = _act_row(b_sz)

    # carry the GRU memory in VMEM scratch across the (recurrent) T grid axis
    @pl.when(t == 0)
    def _():
        mem_scr[...] = mem0_ref[...]

    # static, tile-aligned slices of the resident parameter slabs
    w1 = w_ref[W1_OFF:W1_OFF + W1_ROWS, 0:W1_COLS]
    wbig = w_ref[WBIG_OFF:WBIG_OFF + WBIG_ROWS, :]
    b1 = f_ref[0:1, B1_OFF:B1_OFF + 16]
    b2 = f_ref[0:1, B2_OFF:B2_OFF + 32]
    b3 = f_ref[0:1, B3_OFF:B3_OFF + 64]
    bfu = f_ref[0:1, BFU_OFF:BFU_OFF + 128]
    bhh = f_ref[0:1, BHH_OFF:BHH_OFF + 3 * MEMORY]
    whh = f_ref[WHH_ROW:WHH_ROW + MEMORY, 0:3 * MEMORY]         # f32 (32,96)

    # conv1 (+folded BN, LeakyReLU): im2col done in the wrapper -> one MXU matmul
    xcol = xin_ref[0:b_sz * H1 * W1, :]                         # (B*25,32) bf16
    a1 = jnp.dot(xcol, w1, preferred_element_type=jnp.float32) + b1
    h1 = _lrelu(a1).reshape(b_sz, H1, W1, 16)                   # f32

    def conv2x2(h, w_off, cin, cout, bias):
        # 2x2 valid conv as 4 tap dot-accumulates (no 4-way lane concat):
        # extra MXU pushes are ~free; removes the store/XLU relayout traffic.
        _, hh, ww, _ = h.shape
        ho, wo = hh - 1, ww - 1
        acc = bias
        for i, (dy, dx) in enumerate(((0, 0), (0, 1), (1, 0), (1, 1))):
            lhs = h[:, dy:dy + ho, dx:dx + wo, :].reshape(b_sz * ho * wo, cin)
            wt = w_ref[w_off + i * cin:w_off + (i + 1) * cin, 0:cout]
            acc = acc + jnp.dot(lhs.astype(jnp.bfloat16), wt,
                                preferred_element_type=jnp.float32)
        return _lrelu(acc).reshape(b_sz, ho, wo, cout)          # f32

    h2 = conv2x2(h1, W2_OFF, 16, 32, b2)                        # (B,4,4,32)
    h3 = conv2x2(h2, W3_OFF, 32, 64, b3)                        # (B,3,3,64)

    # fused fc1 + GRU input projection: one (B,608)x(608,128) dot gives
    # lanes [0:32] = pre (fc1 out), lanes [32:128] = gi (r|z|n).
    act = xin_ref[act_row:act_row + b_sz, :].astype(jnp.float32)          # (B,32)
    flat = jnp.concatenate(
        [h3[:, y, x, :] for y in range(H3) for x in range(W3)] + [act], axis=-1)
    fused = jnp.dot(flat.astype(jnp.bfloat16), wbig,
                    preferred_element_type=jnp.float32) + bfu             # (B,128)
    pre = fused[:, 0:HIDDEN]
    gi = fused[:, HIDDEN:HIDDEN + 3 * MEMORY]
    emb = jnp.maximum(pre, 0.0)                                 # local_embedding

    # GRUCell (PyTorch gate order r,z,n); recurrent contraction kept in f32 so
    # the carried memory does not accumulate bf16 rounding over T steps.
    h_prev = mem_scr[...]                                       # f32 (B,32)
    gh = jnp.dot(h_prev, whh, preferred_element_type=jnp.float32) + bhh

    m = MEMORY
    r = jax.nn.sigmoid(gi[:, 0:m] + gh[:, 0:m])
    z = jax.nn.sigmoid(gi[:, m:2 * m] + gh[:, m:2 * m])
    n = jnp.tanh(gi[:, 2 * m:3 * m] + r * gh[:, 2 * m:3 * m])
    mem_new = (1.0 - z) * n + z * h_prev

    mem_scr[...] = mem_new
    # lane-dense 128-wide writeback: [new memory | embedding | zero pad]
    out_ref[...] = jnp.concatenate(
        [mem_new, emb,
         jnp.zeros((b_sz, OUT_LANES - MEMORY - HIDDEN), jnp.float32)], axis=-1)


# ----------------------------------- wrapper ---------------------------------------
def curiosity_forward_seq(x_seq_nchw, memory0, action_seq, kp):
    """Apply CuriosityModel.forward() for T consecutive steps in one pallas_call.

    x_seq_nchw: (T,B,3,7,7), memory0: (B,32), action_seq: (T,B,7) one-hot.
    Returns (None, mem_seq (T,B,32), emb_seq (T,B,32)).
    """
    t_steps, b = x_seq_nchw.shape[0], x_seq_nchw.shape[1]
    act_row = _act_row(b)
    xin_rows = act_row + b

    # conv1 im2col (layout plumbing) + action rows packed into one per-step slab
    x = jnp.transpose(x_seq_nchw, (0, 1, 3, 4, 2)).astype(jnp.float32)   # (T,B,7,7,3)
    cols = [x[:, :, ky:ky + H1, kx:kx + W1, :] for ky in range(3) for kx in range(3)]
    xcol = jnp.concatenate(cols, axis=-1).reshape(t_steps, b * H1 * W1, 9 * C_IN)

    xin = jnp.zeros((t_steps, xin_rows, K1P), jnp.float32)
    xin = xin.at[:, 0:b * H1 * W1, 0:9 * C_IN].set(xcol)
    xin = xin.at[:, act_row:act_row + b, 0:N_ACT].set(action_seq.astype(jnp.float32))
    xin = xin.astype(jnp.bfloat16)

    mem0 = memory0.astype(jnp.float32)

    grid_spec = pltpu.PrefetchScalarGridSpec(
        num_scalar_prefetch=0,
        grid=(t_steps,),
        in_specs=[
            pl.BlockSpec((None, xin_rows, K1P), lambda t: (t, 0, 0)),        # per-step
            pl.BlockSpec((b, MEMORY), lambda t: (0, 0)),                     # resident
            pl.BlockSpec((W_TOTAL_ROWS, W_LANES), lambda t: (0, 0)),         # resident
            pl.BlockSpec((F_ROWS, F_LANES), lambda t: (0, 0)),               # resident
        ],
        out_specs=pl.BlockSpec((None, b, OUT_LANES), lambda t: (t, 0, 0)),
        scratch_shapes=[pltpu.VMEM((b, MEMORY), jnp.float32)],               # memory carry
    )
    out = pl.pallas_call(
        curiosity_seq_kernel,
        out_shape=jax.ShapeDtypeStruct((t_steps, b, OUT_LANES), jnp.float32),
        grid_spec=grid_spec,
        compiler_params=pltpu.CompilerParams(dimension_semantics=("arbitrary",)),
    )(xin, mem0, kp['wbuf'], kp['fbuf'])

    mem_seq = out[:, :, 0:MEMORY]
    emb_seq = out[:, :, MEMORY:MEMORY + HIDDEN]
    return None, mem_seq, emb_seq


# ------------------------------ parameter construction ------------------------------
def init_raw_params(key):
    ks = list(jax.random.split(key, 24))

    def nrm(shape, scale=0.1):
        return scale * jax.random.normal(ks.pop(), shape, jnp.float32)

    raw = {}
    for i, (cout, cin, k) in enumerate([(16, 3, 3), (32, 16, 2), (64, 32, 2)], start=1):
        raw[f'c{i}_w'] = nrm((cout, cin, k, k))           # PyTorch conv: (Cout,Cin,kh,kw)
        raw[f'c{i}_b'] = nrm((cout,))
        raw[f'bn{i}_gamma'] = 1.0 + nrm((cout,))
        raw[f'bn{i}_beta'] = nrm((cout,))
        raw[f'bn{i}_mean'] = nrm((cout,))
        raw[f'bn{i}_var'] = 1.0 + jnp.abs(nrm((cout,)))
    raw['fc1_w'] = nrm((HIDDEN, EMB_IN))
    raw['fc1_b'] = nrm((HIDDEN,))
    raw['w_ih'] = nrm((3 * MEMORY, HIDDEN + N_ACT))       # GRUCell weight_ih
    raw['w_hh'] = nrm((3 * MEMORY, MEMORY))               # GRUCell weight_hh
    raw['b_ih'] = nrm((3 * MEMORY,))
    raw['b_hh'] = nrm((3 * MEMORY,))
    return raw


def build_kernel_params(raw):
    """Fold BN (eval mode) into conv weights, precompose W_gi = wfc @ wih_hidden
    (f32, rounded to bf16 once), and pack everything into one bf16 weight slab
    + one f32 slab (biases + recurrent weight)."""

    def fold_conv(w, b, gamma, beta, mean, var):
        scale = gamma / jnp.sqrt(var + BN_EPS)                               # (Cout,)
        w_eff = jnp.transpose(w * scale[:, None, None, None], (2, 3, 1, 0))  # (kh,kw,Cin,Cout)
        b_eff = (b - mean) * scale + beta
        return w_eff.reshape(-1, w_eff.shape[-1]), b_eff      # rows in (ky,kx,cin) order

    w1f, b1 = fold_conv(raw['c1_w'], raw['c1_b'], raw['bn1_gamma'], raw['bn1_beta'],
                        raw['bn1_mean'], raw['bn1_var'])      # (27,16)
    w2f, b2 = fold_conv(raw['c2_w'], raw['c2_b'], raw['bn2_gamma'], raw['bn2_beta'],
                        raw['bn2_mean'], raw['bn2_var'])      # (64,32)
    w3f, b3 = fold_conv(raw['c3_w'], raw['c3_b'], raw['bn3_gamma'], raw['bn3_beta'],
                        raw['bn3_mean'], raw['bn3_var'])      # (128,64)

    # fc1 rows permuted from NCHW flatten order (c*9+y*3+x) to (y,x,c)
    fc1f = jnp.transpose(raw['fc1_w'].reshape(HIDDEN, 64, H3, W3),
                         (2, 3, 1, 0)).reshape(EMB_IN, HIDDEN)               # (576,32)

    wihT = raw['w_ih'].T                                      # (39,96) = [hidden | action]
    wih_h, wih_a = wihT[0:HIDDEN, :], wihT[HIDDEN:, :]        # (32,96), (7,96)
    whhT = raw['w_hh'].T                                      # (32,96)

    w_gi = fc1f @ wih_h                                       # (576,96), composed in f32
    b_gi = raw['fc1_b'] @ wih_h + raw['b_ih']                 # (96,)

    wbig = jnp.zeros((WBIG_ROWS, W_LANES), jnp.float32)
    wbig = wbig.at[0:EMB_IN, 0:HIDDEN].set(fc1f)
    wbig = wbig.at[0:EMB_IN, HIDDEN:HIDDEN + 3 * MEMORY].set(w_gi)
    wbig = wbig.at[EMB_IN:EMB_IN + N_ACT, HIDDEN:HIDDEN + 3 * MEMORY].set(wih_a)
    # remaining rows/lanes stay zero (match zero-padded action lanes of the LHS)

    wbuf = jnp.zeros((W_TOTAL_ROWS, W_LANES), jnp.float32)
    wbuf = wbuf.at[W1_OFF:W1_OFF + 27, 0:16].set(w1f)         # rows 27..31 zero
    wbuf = wbuf.at[W2_OFF:W2_OFF + 64, 0:32].set(w2f)         # 4 taps x 16 rows
    wbuf = wbuf.at[W3_OFF:W3_OFF + 128, 0:64].set(w3f)        # 4 taps x 32 rows
    wbuf = wbuf.at[WBIG_OFF:WBIG_OFF + WBIG_ROWS, :].set(wbig)
    wbuf = wbuf.astype(jnp.bfloat16)

    fbuf = jnp.zeros((F_ROWS, F_LANES), jnp.float32)
    fbuf = fbuf.at[0, B1_OFF:B1_OFF + 16].set(b1)
    fbuf = fbuf.at[0, B2_OFF:B2_OFF + 32].set(b2)
    fbuf = fbuf.at[0, B3_OFF:B3_OFF + 64].set(b3)
    fbuf = fbuf.at[0, BFU_OFF:BFU_OFF + HIDDEN].set(raw['fc1_b'])
    fbuf = fbuf.at[0, BFU_OFF + HIDDEN:BFU_OFF + 128].set(b_gi)
    fbuf = fbuf.at[0, BHH_OFF:BHH_OFF + 3 * MEMORY].set(raw['b_hh'])
    fbuf = fbuf.at[WHH_ROW:WHH_ROW + MEMORY, 0:3 * MEMORY].set(whhT)

    return {'wbuf': wbuf, 'fbuf': fbuf}


# ------------------------------ pure-JAX reference ---------------------------------
def reference_forward(x_nchw, memory, action_prev, raw):
    def conv_bn_lrelu(x, w, b, gamma, beta, mean, var):
        y = lax.conv_general_dilated(x, w, (1, 1), 'VALID',
                                     dimension_numbers=('NCHW', 'OIHW', 'NCHW'),
                                     precision=lax.Precision.HIGHEST)
        y = y + b[None, :, None, None]
        s = gamma / jnp.sqrt(var + BN_EPS)
        y = (y - mean[None, :, None, None]) * s[None, :, None, None] + beta[None, :, None, None]
        return jnp.where(y > 0, y, LEAKY_SLOPE * y)

    h = x_nchw
    for i in (1, 2, 3):
        h = conv_bn_lrelu(h, raw[f'c{i}_w'], raw[f'c{i}_b'], raw[f'bn{i}_gamma'],
                          raw[f'bn{i}_beta'], raw[f'bn{i}_mean'], raw[f'bn{i}_var'])
    flat = h.reshape(h.shape[0], -1)                                   # NCHW flatten
    pre = flat @ raw['fc1_w'].T + raw['fc1_b']
    emb = jnp.maximum(pre, 0.0)
    xcat = jnp.concatenate([pre, action_prev], axis=1)
    gi = xcat @ raw['w_ih'].T + raw['b_ih']
    gh = memory @ raw['w_hh'].T + raw['b_hh']
    m = MEMORY
    r = jax.nn.sigmoid(gi[:, :m] + gh[:, :m])
    z = jax.nn.sigmoid(gi[:, m:2 * m] + gh[:, m:2 * m])
    n = jnp.tanh(gi[:, 2 * m:] + r * gh[:, 2 * m:])
    return (1.0 - z) * n + z * memory, emb


# --------------------------------------- main --------------------------------------
if __name__ == "__main__":
    key = jax.random.PRNGKey(0)
    k_x, k_m, k_a, k_p = jax.random.split(key, 4)
    x_seq = jax.random.normal(k_x, (T_STEPS, BATCH, C_IN, N_IMG, M_IMG), jnp.float32)
    memory0 = jax.random.normal(k_m, (BATCH, MEMORY), jnp.float32)
    act_logits = jax.random.normal(k_a, (T_STEPS, BATCH, N_ACT), jnp.float32)
    action_seq = jax.nn.one_hot(jnp.argmax(act_logits, axis=-1), N_ACT, dtype=jnp.float32)

    raw = init_raw_params(k_p)
    kp = build_kernel_params(raw)

    _, mem_seq, emb_seq = curiosity_forward_seq(x_seq, memory0, action_seq, kp)
    jax.block_until_ready((mem_seq, emb_seq))

    # reference: module applied T times with the memory threaded through
    mem = memory0
    ref_mems, ref_embs = [], []
    for t in range(T_STEPS):
        mem, emb = reference_forward(x_seq[t], mem, action_seq[t], raw)
        ref_mems.append(mem)
        ref_embs.append(emb)
    ref_mem_seq = jnp.stack(ref_mems)
    ref_emb_seq = jnp.stack(ref_embs)

    d_mem = float(jnp.max(jnp.abs(mem_seq - ref_mem_seq)))
    d_emb = float(jnp.max(jnp.abs(emb_seq - ref_emb_seq)))
    # bf16 MXU operands with f32 accumulation, f32 recurrent carry: observed
    # errors are ~1e-3; 3e-2 covers bf16 rounding with margin across T steps.
    assert d_mem < 3e-2 and d_emb < 3e-2, (d_mem, d_emb)
    print("KERNEL_OK")
</pallas_src>

<mosaic_0001>
module attributes {stable_mosaic.version = 11 : i64} {
  func.func @curiosity_seq_kernel(%arg0: i32, %arg1: memref<1x66x32xbf16, #tpu.memory_space<vmem>>, %arg2: memref<2x32xf32, #tpu.memory_space<vmem>>, %arg3: memref<832x128xbf16, #tpu.memory_space<vmem>>, %arg4: memref<40x640xf32, #tpu.memory_space<vmem>>, %arg5: memref<1x2x128xf32, #tpu.memory_space<vmem>>, %arg6: memref<2x32xf32, #tpu.memory_space<vmem>>) attributes {dimension_semantics = [#tpu.dimension_semantics<arbitrary>], iteration_bounds = array<i64: 8>, scalar_prefetch = 0 : i64, scratch_operands = 1 : i64, tpu.core_type = #tpu.core_type<tc>, window_params = [{transform_indices = @transform_0, window_bounds = array<i64: 1, 66, 32>}, {pipeline_mode = #tpu.pipeline_mode<synchronous>, transform_indices = @transform_1, window_bounds = array<i64: 2, 32>}, {pipeline_mode = #tpu.pipeline_mode<synchronous>, transform_indices = @transform_2, window_bounds = array<i64: 832, 128>}, {pipeline_mode = #tpu.pipeline_mode<synchronous>, transform_indices = @transform_3, window_bounds = array<i64: 40, 640>}, {transform_indices = @transform_4, window_bounds = array<i64: 1, 2, 128>}]} {
    %c0_i32 = arith.constant 0 : i32
    %0 = arith.cmpi eq, %arg0, %c0_i32 : i32
    %1 = arith.extui %0 : i1 to i32
    %c0_i32_0 = arith.constant 0 : i32
    %2 = arith.cmpi ne, %1, %c0_i32_0 : i32
    scf.if %2 {
      %c0_53 = arith.constant 0 : index
      %c0_54 = arith.constant 0 : index
      %150 = vector.load %arg2[%c0_53, %c0_54] : memref<2x32xf32, #tpu.memory_space<vmem>>, vector<2x32xf32>
      %c0_55 = arith.constant 0 : index
      %c0_56 = arith.constant 0 : index
      %151 = vector.load %arg6[%c0_55, %c0_56] : memref<2x32xf32, #tpu.memory_space<vmem>>, vector<2x32xf32>
      tpu.vector_store %arg6[%c0_55, %c0_56], %150 {strides = array<i32>} : memref<2x32xf32, #tpu.memory_space<vmem>>, vector<2x32xf32>,
    } else {
    }
    %c0 = arith.constant 0 : index
    %c0_1 = arith.constant 0 : index
    %3 = vector.load %arg3[%c0, %c0_1] : memref<832x128xbf16, #tpu.memory_space<vmem>>, vector<32x16xbf16>
    %c224 = arith.constant 224 : index
    %c0_2 = arith.constant 0 : index
    %4 = vector.load %arg3[%c224, %c0_2] : memref<832x128xbf16, #tpu.memory_space<vmem>>, vector<608x128xbf16>
    %c0_3 = arith.constant 0 : index
    %c0_4 = arith.constant 0 : index
    %5 = vector.load %arg4[%c0_3, %c0_4] : memref<40x640xf32, #tpu.memory_space<vmem>>, vector<1x16xf32>
    %c0_5 = arith.constant 0 : index
    %c128 = arith.constant 128 : index
    %6 = vector.load %arg4[%c0_5, %c128] : memref<40x640xf32, #tpu.memory_space<vmem>>, vector<1x32xf32>
    %c0_6 = arith.constant 0 : index
    %c256 = arith.constant 256 : index
    %7 = vector.load %arg4[%c0_6, %c256] : memref<40x640xf32, #tpu.memory_space<vmem>>, vector<1x64xf32>
    %c0_7 = arith.constant 0 : index
    %c384 = arith.constant 384 : index
    %8 = vector.load %arg4[%c0_7, %c384] : memref<40x640xf32, #tpu.memory_space<vmem>>, vector<1x128xf32>
    %c0_8 = arith.constant 0 : index
    %c512 = arith.constant 512 : index
    %9 = vector.load %arg4[%c0_8, %c512] : memref<40x640xf32, #tpu.memory_space<vmem>>, vector<1x96xf32>
    %c8 = arith.constant 8 : index
    %c0_9 = arith.constant 0 : index
    %10 = vector.load %arg4[%c8, %c0_9] : memref<40x640xf32, #tpu.memory_space<vmem>>, vector<32x96xf32>
    %c0_10 = arith.constant 0 : index
    %c0_11 = arith.constant 0 : index
    %c0_12 = arith.constant 0 : index
    %11 = vector.load %arg1[%c0_10, %c0_11, %c0_12] : memref<1x66x32xbf16, #tpu.memory_space<vmem>>, vector<1x50x32xbf16>
    %12 = vector.shape_cast %11 : vector<1x50x32xbf16> to vector<50x32xbf16>
    %cst = arith.constant dense<0.000000e+00> : vector<50x16xf32>
    %13 = tpu.matmul %12, %3, %cst {dimension_numbers = #tpu.dot_dimension_numbers<[1], [0], [0], [1], [0, 0, 1, 1], [], []>} : vector<50x32xbf16>, vector<32x16xbf16>, vector<50x16xf32> -> vector<50x16xf32>
    %14 = vector.broadcast %5 : vector<1x16xf32> to vector<50x16xf32>
    %15 = arith.addf %13, %14 : vector<50x16xf32>
    %cst_13 = arith.constant 0.000000e+00 : f32
    %16 = vector.broadcast %cst_13 : f32 to vector<50x16xf32>
    %17 = arith.cmpf ogt, %15, %16 : vector<50x16xf32>
    %cst_14 = arith.constant 0.00999999977 : f32
    %18 = vector.broadcast %cst_14 : f32 to vector<50x16xf32>
    %19 = arith.mulf %18, %15 : vector<50x16xf32>
    %20 = arith.select %17, %15, %19 : vector<50x16xi1>, vector<50x16xf32>
    %21 = vector.shape_cast %20 : vector<50x16xf32> to vector<2x5x5x16xf32>
    %22 = vector.extract_strided_slice %21 {offsets = [0, 0, 0, 0], sizes = [2, 4, 4, 16], strides = [1, 1, 1, 1]} : vector<2x5x5x16xf32> to vector<2x4x4x16xf32>
    %23 = vector.shape_cast %22 : vector<2x4x4x16xf32> to vector<32x16xf32>
    %c32 = arith.constant 32 : index
    %c0_15 = arith.constant 0 : index
    %24 = vector.load %arg3[%c32, %c0_15] : memref<832x128xbf16, #tpu.memory_space<vmem>>, vector<16x32xbf16>
    %25 = arith.truncf %23 : vector<32x16xf32> to vector<32x16xbf16>
    %cst_16 = arith.constant dense<0.000000e+00> : vector<32x32xf32>
    %26 = tpu.matmul %25, %24, %cst_16 {dimension_numbers = #tpu.dot_dimension_numbers<[1], [0], [0], [1], [0, 0, 1, 1], [], []>} : vector<32x16xbf16>, vector<16x32xbf16>, vector<32x32xf32> -> vector<32x32xf32>
    %27 = vector.broadcast %6 : vector<1x32xf32> to vector<32x32xf32>
    %28 = arith.addf %27, %26 : vector<32x32xf32>
    %29 = vector.extract_strided_slice %21 {offsets = [0, 0, 1, 0], sizes = [2, 4, 4, 16], strides = [1, 1, 1, 1]} : vector<2x5x5x16xf32> to vector<2x4x4x16xf32>
    %30 = vector.shape_cast %29 : vector<2x4x4x16xf32> to vector<32x16xf32>
    %c48 = arith.constant 48 : index
    %c0_17 = arith.constant 0 : index
    %31 = vector.load %arg3[%c48, %c0_17] : memref<832x128xbf16, #tpu.memory_space<vmem>>, vector<16x32xbf16>
    %32 = arith.truncf %30 : vector<32x16xf32> to vector<32x16xbf16>
    %cst_18 = arith.constant dense<0.000000e+00> : vector<32x32xf32>
    %33 = tpu.matmul %32, %31, %cst_18 {dimension_numbers = #tpu.dot_dimension_numbers<[1], [0], [0], [1], [0, 0, 1, 1], [], []>} : vector<32x16xbf16>, vector<16x32xbf16>, vector<32x32xf32> -> vector<32x32xf32>
    %34 = arith.addf %28, %33 : vector<32x32xf32>
    %35 = vector.extract_strided_slice %21 {offsets = [0, 1, 0, 0], sizes = [2, 4, 4, 16], strides = [1, 1, 1, 1]} : vector<2x5x5x16xf32> to vector<2x4x4x16xf32>
    %36 = vector.shape_cast %35 : vector<2x4x4x16xf32> to vector<32x16xf32>
    %c64 = arith.constant 64 : index
    %c0_19 = arith.constant 0 : index
    %37 = vector.load %arg3[%c64, %c0_19] : memref<832x128xbf16, #tpu.memory_space<vmem>>, vector<16x32xbf16>
    %38 = arith.truncf %36 : vector<32x16xf32> to vector<32x16xbf16>
    %cst_20 = arith.constant dense<0.000000e+00> : vector<32x32xf32>
    %39 = tpu.matmul %38, %37, %cst_20 {dimension_numbers = #tpu.dot_dimension_numbers<[1], [0], [0], [1], [0, 0, 1, 1], [], []>} : vector<32x16xbf16>, vector<16x32xbf16>, vector<32x32xf32> -> vector<32x32xf32>
    %40 = arith.addf %34, %39 : vector<32x32xf32>
    %41 = vector.extract_strided_slice %21 {offsets = [0, 1, 1, 0], sizes = [2, 4, 4, 16], strides = [1, 1, 1, 1]} : vector<2x5x5x16xf32> to vector<2x4x4x16xf32>
    %42 = vector.shape_cast %41 : vector<2x4x4x16xf32> to vector<32x16xf32>
    %c80 = arith.constant 80 : index
    %c0_21 = arith.constant 0 : index
    %43 = vector.load %arg3[%c80, %c0_21] : memref<832x128xbf16, #tpu.memory_space<vmem>>, vector<16x32xbf16>
    %44 = arith.truncf %42 : vector<32x16xf32> to vector<32x16xbf16>
    %cst_22 = arith.constant dense<0.000000e+00> : vector<32x32xf32>
    %45 = tpu.matmul %44, %43, %cst_22 {dimension_numbers = #tpu.dot_dimension_numbers<[1], [0], [0], [1], [0, 0, 1, 1], [], []>} : vector<32x16xbf16>, vector<16x32xbf16>, vector<32x32xf32> -> vector<32x32xf32>
    %46 = arith.addf %40, %45 : vector<32x32xf32>
    %cst_23 = arith.constant 0.000000e+00 : f32
    %47 = vector.broadcast %cst_23 : f32 to vector<32x32xf32>
    %48 = arith.cmpf ogt, %46, %47 : vector<32x32xf32>
    %cst_24 = arith.constant 0.00999999977 : f32
    %49 = vector.broadcast %cst_24 : f32 to vector<32x32xf32>
    %50 = arith.mulf %49, %46 : vector<32x32xf32>
    %51 = arith.select %48, %46, %50 : vector<32x32xi1>, vector<32x32xf32>
    %52 = vector.shape_cast %51 : vector<32x32xf32> to vector<2x4x4x32xf32>
    %53 = vector.extract_strided_slice %52 {offsets = [0, 0, 0, 0], sizes = [2, 3, 3, 32], strides = [1, 1, 1, 1]} : vector<2x4x4x32xf32> to vector<2x3x3x32xf32>
    %54 = vector.shape_cast %53 : vector<2x3x3x32xf32> to vector<18x32xf32>
    %c96 = arith.constant 96 : index
    %c0_25 = arith.constant 0 : index
    %55 = vector.load %arg3[%c96, %c0_25] : memref<832x128xbf16, #tpu.memory_space<vmem>>, vector<32x64xbf16>
    %56 = arith.truncf %54 : vector<18x32xf32> to vector<18x32xbf16>
    %cst_26 = arith.constant dense<0.000000e+00> : vector<18x64xf32>
    %57 = tpu.matmul %56, %55, %cst_26 {dimension_numbers = #tpu.dot_dimension_numbers<[1], [0], [0], [1], [0, 0, 1, 1], [], []>} : vector<18x32xbf16>, vector<32x64xbf16>, vector<18x64xf32> -> vector<18x64xf32>
    %58 = vector.broadcast %7 : vector<1x64xf32> to vector<18x64xf32>
    %59 = arith.addf %58, %57 : vector<18x64xf32>
    %60 = vector.extract_strided_slice %52 {offsets = [0, 0, 1, 0], sizes = [2, 3, 3, 32], strides = [1, 1, 1, 1]} : vector<2x4x4x32xf32> to vector<2x3x3x32xf32>
    %61 = vector.shape_cast %60 : vector<2x3x3x32xf32> to vector<18x32xf32>
    %c128_27 = arith.constant 128 : index
    %c0_28 = arith.constant 0 : index
    %62 = vector.load %arg3[%c128_27, %c0_28] : memref<832x128xbf16, #tpu.memory_space<vmem>>, vector<32x64xbf16>
    %63 = arith.truncf %61 : vector<18x32xf32> to vector<18x32xbf16>
    %cst_29 = arith.constant dense<0.000000e+00> : vector<18x64xf32>
    %64 = tpu.matmul %63, %62, %cst_29 {dimension_numbers = #tpu.dot_dimension_numbers<[1], [0], [0], [1], [0, 0, 1, 1], [], []>} : vector<18x32xbf16>, vector<32x64xbf16>, vector<18x64xf32> -> vector<18x64xf32>
    %65 = arith.addf %59, %64 : vector<18x64xf32>
    %66 = vector.extract_strided_slice %52 {offsets = [0, 1, 0, 0], sizes = [2, 3, 3, 32], strides = [1, 1, 1, 1]} : vector<2x4x4x32xf32> to vector<2x3x3x32xf32>
    %67 = vector.shape_cast %66 : vector<2x3x3x32xf32> to vector<18x32xf32>
    %c160 = arith.constant 160 : index
    %c0_30 = arith.constant 0 : index
    %68 = vector.load %arg3[%c160, %c0_30] : memref<832x128xbf16, #tpu.memory_space<vmem>>, vector<32x64xbf16>
    %69 = arith.truncf %67 : vector<18x32xf32> to vector<18x32xbf16>
    %cst_31 = arith.constant dense<0.000000e+00> : vector<18x64xf32>
    %70 = tpu.matmul %69, %68, %cst_31 {dimension_numbers = #tpu.dot_dimension_numbers<[1], [0], [0], [1], [0, 0, 1, 1], [], []>} : vector<18x32xbf16>, vector<32x64xbf16>, vector<18x64xf32> -> vector<18x64xf32>
    %71 = arith.addf %65, %70 : vector<18x64xf32>
    %72 = vector.extract_strided_slice %52 {offsets = [0, 1, 1, 0], sizes = [2, 3, 3, 32], strides = [1, 1, 1, 1]} : vector<2x4x4x32xf32> to vector<2x3x3x32xf32>
    %73 = vector.shape_cast %72 : vector<2x3x3x32xf32> to vector<18x32xf32>
    %c192 = arith.constant 192 : index
    %c0_32 = arith.constant 0 : index
    %74 = vector.load %arg3[%c192, %c0_32] : memref<832x128xbf16, #tpu.memory_space<vmem>>, vector<32x64xbf16>
    %75 = arith.truncf %73 : vector<18x32xf32> to vector<18x32xbf16>
    %cst_33 = arith.constant dense<0.000000e+00> : vector<18x64xf32>
    %76 = tpu.matmul %75, %74, %cst_33 {dimension_numbers = #tpu.dot_dimension_numbers<[1], [0], [0], [1], [0, 0, 1, 1], [], []>} : vector<18x32xbf16>, vector<32x64xbf16>, vector<18x64xf32> -> vector<18x64xf32>
    %77 = arith.addf %71, %76 : vector<18x64xf32>
    %cst_34 = arith.constant 0.000000e+00 : f32
    %78 = vector.broadcast %cst_34 : f32 to vector<18x64xf32>
    %79 = arith.cmpf ogt, %77, %78 : vector<18x64xf32>
    %cst_35 = arith.constant 0.00999999977 : f32
    %80 = vector.broadcast %cst_35 : f32 to vector<18x64xf32>
    %81 = arith.mulf %80, %77 : vector<18x64xf32>
    %82 = arith.select %79, %77, %81 : vector<18x64xi1>, vector<18x64xf32>
    %83 = vector.shape_cast %82 : vector<18x64xf32> to vector<2x3x3x64xf32>
    %c0_36 = arith.constant 0 : index
    %c64_37 = arith.constant 64 : index
    %c0_38 = arith.constant 0 : index
    %84 = vector.load %arg1[%c0_36, %c64_37, %c0_38] : memref<1x66x32xbf16, #tpu.memory_space<vmem>>, vector<1x2x32xbf16>
    %85 = vector.shape_cast %84 : vector<1x2x32xbf16> to vector<2x32xbf16>
    %86 = arith.extf %85 : vector<2x32xbf16> to vector<2x32xf32>
    %87 = vector.extract_strided_slice %83 {offsets = [0, 0, 0, 0], sizes = [2, 1, 1, 64], strides = [1, 1, 1, 1]} : vector<2x3x3x64xf32> to vector<2x1x1x64xf32>
    %88 = vector.shape_cast %87 : vector<2x1x1x64xf32> to vector<2x64xf32>
    %89 = vector.extract_strided_slice %83 {offsets = [0, 0, 1, 0], sizes = [2, 1, 1, 64], strides = [1, 1, 1, 1]} : vector<2x3x3x64xf32> to vector<2x1x1x64xf32>
    %90 = vector.shape_cast %89 : vector<2x1x1x64xf32> to vector<2x64xf32>
    %91 = vector.extract_strided_slice %83 {offsets = [0, 0, 2, 0], sizes = [2, 1, 1, 64], strides = [1, 1, 1, 1]} : vector<2x3x3x64xf32> to vector<2x1x1x64xf32>
    %92 = vector.shape_cast %91 : vector<2x1x1x64xf32> to vector<2x64xf32>
    %93 = vector.extract_strided_slice %83 {offsets = [0, 1, 0, 0], sizes = [2, 1, 1, 64], strides = [1, 1, 1, 1]} : vector<2x3x3x64xf32> to vector<2x1x1x64xf32>
    %94 = vector.shape_cast %93 : vector<2x1x1x64xf32> to vector<2x64xf32>
    %95 = vector.extract_strided_slice %83 {offsets = [0, 1, 1, 0], sizes = [2, 1, 1, 64], strides = [1, 1, 1, 1]} : vector<2x3x3x64xf32> to vector<2x1x1x64xf32>
    %96 = vector.shape_cast %95 : vector<2x1x1x64xf32> to vector<2x64xf32>
    %97 = vector.extract_strided_slice %83 {offsets = [0, 1, 2, 0], sizes = [2, 1, 1, 64], strides = [1, 1, 1, 1]} : vector<2x3x3x64xf32> to vector<2x1x1x64xf32>
    %98 = vector.shape_cast %97 : vector<2x1x1x64xf32> to vector<2x64xf32>
    %99 = vector.extract_strided_slice %83 {offsets = [0, 2, 0, 0], sizes = [2, 1, 1, 64], strides = [1, 1, 1, 1]} : vector<2x3x3x64xf32> to vector<2x1x1x64xf32>
    %100 = vector.shape_cast %99 : vector<2x1x1x64xf32> to vector<2x64xf32>
    %101 = vector.extract_strided_slice %83 {offsets = [0, 2, 1, 0], sizes = [2, 1, 1, 64], strides = [1, 1, 1, 1]} : vector<2x3x3x64xf32> to vector<2x1x1x64xf32>
    %102 = vector.shape_cast %101 : vector<2x1x1x64xf32> to vector<2x64xf32>
    %103 = vector.extract_strided_slice %83 {offsets = [0, 2, 2, 0], sizes = [2, 1, 1, 64], strides = [1, 1, 1, 1]} : vector<2x3x3x64xf32> to vector<2x1x1x64xf32>
    %104 = vector.shape_cast %103 : vector<2x1x1x64xf32> to vector<2x64xf32>
    %105 = tpu.concatenate %88, %90, %92, %94, %96, %98, %100, %102, %104, %86 in 1 : vector<2x64xf32>, vector<2x64xf32>, vector<2x64xf32>, vector<2x64xf32>, vector<2x64xf32>, vector<2x64xf32>, vector<2x64xf32>, vector<2x64xf32>, vector<2x64xf32>, vector<2x32xf32> -> vector<2x608xf32>
    %106 = arith.truncf %105 : vector<2x608xf32> to vector<2x608xbf16>
    %cst_39 = arith.constant dense<0.000000e+00> : vector<2x128xf32>
    %107 = tpu.matmul %106, %4, %cst_39 {dimension_numbers = #tpu.dot_dimension_numbers<[1], [0], [0], [1], [0, 0, 1, 1], [], []>} : vector<2x608xbf16>, vector<608x128xbf16>, vector<2x128xf32> -> vector<2x128xf32>
    %108 = vector.broadcast %8 : vector<1x128xf32> to vector<2x128xf32>
    %109 = arith.addf %107, %108 : vector<2x128xf32>
    %110 = vector.extract_strided_slice %109 {offsets = [0, 0], sizes = [2, 32], strides = [1, 1]} : vector<2x128xf32> to vector<2x32xf32>
    %111 = vector.extract_strided_slice %109 {offsets = [0, 32], sizes = [2, 96], strides = [1, 1]} : vector<2x128xf32> to vector<2x96xf32>
    %cst_40 = arith.constant 0.000000e+00 : f32
    %112 = vector.broadcast %cst_40 : f32 to vector<2x32xf32>
    %113 = arith.maximumf %110, %112 : vector<2x32xf32>
    %c0_41 = arith.constant 0 : index
    %c0_42 = arith.constant 0 : index
    %114 = vector.load %arg6[%c0_41, %c0_42] : memref<2x32xf32, #tpu.memory_space<vmem>>, vector<2x32xf32>
    %cst_43 = arith.constant dense<0.000000e+00> : vector<2x96xf32>
    %115 = tpu.matmul %114, %10, %cst_43 {dimension_numbers = #tpu.dot_dimension_numbers<[1], [0], [0], [1], [0, 0, 1, 1], [], []>} : vector<2x32xf32>, vector<32x96xf32>, vector<2x96xf32> -> vector<2x96xf32>
    %116 = vector.broadcast %9 : vector<1x96xf32> to vector<2x96xf32>
    %117 = arith.addf %115, %116 : vector<2x96xf32>
    %118 = vector.extract_strided_slice %111 {offsets = [0, 0], sizes = [2, 32], strides = [1, 1]} : vector<2x96xf32> to vector<2x32xf32>
    %119 = vector.extract_strided_slice %117 {offsets = [0, 0], sizes = [2, 32], strides = [1, 1]} : vector<2x96xf32> to vector<2x32xf32>
    %120 = arith.addf %118, %119 : vector<2x32xf32>
    %121 = arith.negf %120 : vector<2x32xf32>
    %122 = math.exp %121 : vector<2x32xf32>
    %cst_44 = arith.constant 1.000000e+00 : f32
    %123 = vector.broadcast %cst_44 : f32 to vector<2x32xf32>
    %124 = arith.addf %123, %122 : vector<2x32xf32>
    %125 = arith.divf %123, %124 : vector<2x32xf32>
    %126 = vector.extract_strided_slice %111 {offsets = [0, 32], sizes = [2, 32], strides = [1, 1]} : vector<2x96xf32> to vector<2x32xf32>
    %127 = vector.extract_strided_slice %117 {offsets = [0, 32], sizes = [2, 32], strides = [1, 1]} : vector<2x96xf32> to vector<2x32xf32>
    %128 = arith.addf %126, %127 : vector<2x32xf32>
    %129 = arith.negf %128 : vector<2x32xf32>
    %130 = math.exp %129 : vector<2x32xf32>
    %cst_45 = arith.constant 1.000000e+00 : f32
    %131 = vector.broadcast %cst_45 : f32 to vector<2x32xf32>
    %132 = arith.addf %131, %130 : vector<2x32xf32>
    %133 = arith.divf %131, %132 : vector<2x32xf32>
    %134 = vector.extract_strided_slice %111 {offsets = [0, 64], sizes = [2, 32], strides = [1, 1]} : vector<2x96xf32> to vector<2x32xf32>
    %135 = vector.extract_strided_slice %117 {offsets = [0, 64], sizes = [2, 32], strides = [1, 1]} : vector<2x96xf32> to vector<2x32xf32>
    %136 = arith.mulf %125, %135 : vector<2x32xf32>
    %137 = arith.addf %134, %136 : vector<2x32xf32>
    %138 = math.tanh %137 : vector<2x32xf32>
    %cst_46 = arith.constant 1.000000e+00 : f32
    %139 = vector.broadcast %cst_46 : f32 to vector<2x32xf32>
    %140 = arith.subf %139, %133 : vector<2x32xf32>
    %141 = arith.mulf %140, %138 : vector<2x32xf32>
    %142 = arith.mulf %133, %114 : vector<2x32xf32>
    %143 = arith.addf %141, %142 : vector<2x32xf32>
    %c0_47 = arith.constant 0 : index
    %c0_48 = arith.constant 0 : index
    %144 = vector.load %arg6[%c0_47, %c0_48] : memref<2x32xf32, #tpu.memory_space<vmem>>, vector<2x32xf32>
    tpu.vector_store %arg6[%c0_47, %c0_48], %143 {strides = array<i32>} : memref<2x32xf32, #tpu.memory_space<vmem>>, vector<2x32xf32>,
    %cst_49 = arith.constant 0.000000e+00 : f32
    %145 = vector.broadcast %cst_49 : f32 to vector<2x64xf32>
    %146 = tpu.concatenate %143, %113, %145 in 1 : vector<2x32xf32>, vector<2x32xf32>, vector<2x64xf32> -> vector<2x128xf32>
    %c0_50 = arith.constant 0 : index
    %c0_51 = arith.constant 0 : index
    %c0_52 = arith.constant 0 : index
    %147 = vector.load %arg5[%c0_50, %c0_51, %c0_52] : memref<1x2x128xf32, #tpu.memory_space<vmem>>, vector<1x2x128xf32>
    %148 = vector.shape_cast %147 : vector<1x2x128xf32> to vector<2x128xf32>
    %149 = vector.shape_cast %146 : vector<2x128xf32> to vector<1x2x128xf32>
    tpu.vector_store %arg5[%c0_50, %c0_51, %c0_52], %149 {strides = array<i32>} : memref<1x2x128xf32, #tpu.memory_space<vmem>>, vector<1x2x128xf32>,
    return
  }
  func.func @transform_0(%arg0: i32) -> (i32, i32, i32) {
    %c0_i32 = arith.constant 0 : i32
    %c0_i32_0 = arith.constant 0 : i32
    %c0_i32_1 = arith.constant 0 : i32
    return %arg0, %c0_i32, %c0_i32_0 : i32, i32, i32
  }
  func.func @transform_1(%arg0: i32) -> (i32, i32) {
    %c0_i32 = arith.constant 0 : i32
    %c0_i32_0 = arith.constant 0 : i32
    %c0_i32_1 = arith.constant 0 : i32
    return %c0_i32, %c0_i32_0 : i32, i32
  }
  func.func @transform_2(%arg0: i32) -> (i32, i32) {
    %c0_i32 = arith.constant 0 : i32
    %c0_i32_0 = arith.constant 0 : i32
    %c0_i32_1 = arith.constant 0 : i32
    return %c0_i32, %c0_i32_0 : i32, i32
  }
  func.func @transform_3(%arg0: i32) -> (i32, i32) {
    %c0_i32 = arith.constant 0 : i32
    %c0_i32_0 = arith.constant 0 : i32
    %c0_i32_1 = arith.constant 0 : i32
    return %c0_i32, %c0_i32_0 : i32, i32
  }
  func.func @transform_4(%arg0: i32) -> (i32, i32, i32) {
    %c0_i32 = arith.constant 0 : i32
    %c0_i32_0 = arith.constant 0 : i32
    %c0_i32_1 = arith.constant 0 : i32
    return %arg0, %c0_i32, %c0_i32_0 : i32, i32, i32
  }
}

</mosaic_0001>

<llo_original>
// kernel: tpu_custom_call.1
$region0: #{tpu_custom_call.1}
  #allocation0 [shape = 'u32[]', space=smem, size = 0x4, offset = 0x4, fixed_abs, tag = 'smem constant byte address 0x4 - core index']
  #allocation1 [shape = 'u32[144,128]{1,0:T(1,128)}', space=vmem, size = 0x12000, scoped, tag = 'internal scratch']
  #allocation2 [shape = 'f32[2,32]{1,0:T(2,128)}', space=vmem, size = 0x400, scoped, tag = 'scratch operand']
  %s0 = inlined_call_operand.vmem [shape: bf16[8,66,32], index: 0, kind: input, shape index: {}]
  %s1 = inlined_call_operand.vmem [shape: f32[2,32], index: 1, kind: input, shape index: {}]
  %s2 = inlined_call_operand.vmem [shape: bf16[832,128], index: 2, kind: input, shape index: {}]
  %s3 = inlined_call_operand.hbm [shape: f32[40,640], index: 3, kind: input, shape index: {}]
  %s4 = inlined_call_operand.hbm [shape: f32[8,2,128], index: 4, kind: output, shape index: {}]
  %s5 = sld [smem:[#allocation0]]
  $region57: #{tpu_custom_call.1} parent=0
    _
  %s7 = ssub.s32 1, %s5
  %s8 = scalar_select 0, %s7, %s5
  $region1: #{tpu_custom_call.1} parent=0
    #allocation3 [shape = 'u8[102400]{0}', space=vmem, size = 0x19000, scoped, tag = 'input window, operand 3, single buffered']
    #allocation4 [shape = 's32[2]{0}', space=sflag, size = 0x8, scoped, tag = 'scoped memory for tpu_custom_call.1']
    #allocation5 [shape = 's32[2]{0}', space=sflag, size = 0x8, scoped, tag = 'scoped memory for tpu_custom_call.1']
    #allocation6 [shape = 'u8[2048]{0}', space=vmem, size = 0x800, scoped, tag = 'output window, operand 0']
    %9 = vsyncpa [#allocation4], 0
    %10 = vsyncpa [#allocation5], 0
    %s11 = scalar_lea.sflag [#allocation5], 1
    %12 = vsyncpa %s11, 0
    loop: start=0, step=1, limit=10
    $region2: #{tpu_custom_call.1} parent=1 // loop_pre_header
      _
    $region3: #{tpu_custom_call.1} parent=1 // loop_header
      %s14 = sphi 0, %s18
      %p15 = scmp.ge.s32.totalorder %s14, 10
      %s24 = sphi 0, %s26
      %s27 = sphi 0, %s24
      %s28 = sphi 0, %s27
      %s44 = sphi 0, %s28
      %s48 = sphi 0, %s48
      %s50 = sphi 0, %s48
      %s51 = sphi 0, %s50
      %s65 = sphi 0, %s51
      %s69 = sphi 0, %s69
      %s71 = sphi 0, %s69
      %s72 = sphi 0, %s71
      %s86 = sphi 0, %s72
      %s90 = sphi 0, %s90
      %s92 = sphi 0, %s90
      %s93 = sphi 0, %s92
      %s107 = sphi 0, %s93
      %s113 = sphi 0, %s115
      %s116 = sphi 0, %s113
      %s117 = sphi 0, %s116
      %s133 = sphi 0, %s117
    $region4: #{tpu_custom_call.1} parent=1 // loop_header_branch
      %17 = sbr.rel (%p15) target = $region8
    $region5: #{tpu_custom_call.1} parent=1 // loop_body
      %s19 = ssub.s32 %s14, 1
      %s20 = ssub.s32 %s14, 2
      %s21 = sadd.s32 %s14, 1
      %s22 = ssub.s32 %s14, %s21
      %p23 = scmp.eq.s32.totalorder %s22, 0
      %s25 = sadd.s32 %s24, 1
      %s26 = scalar_select %p23, %s24, %s25
      %p29 = pneg %p23
      %p30 = scmp.eq.s32.totalorder %s14, 7
      %p31 = por %p29, %p30
      %p32 = scmp.ne.s32.totalorder %s24, %s27
      %p33 = scmp.eq.s32.totalorder %s14, 0
      %p34 = por %p32, %p33
      %p35 = scmp.ne.s32.totalorder %s24, %s27
      %p36 = scmp.eq.s32.totalorder %s19, 7
      %p37 = por %p35, %p36
      %p38 = scmp.ne.s32.totalorder %s27, %s28
      %p39 = scmp.eq.s32.totalorder %s19, 0
      %p40 = por %p38, %p39
      %p41 = scmp.ne.s32.totalorder %s27, %s28
      %p42 = scmp.eq.s32.totalorder %s20, 7
      %p43 = por %p41, %p42
      %p45 = scmp.ne.s32.totalorder %s28, %s44
      %p46 = scmp.eq.s32.totalorder %s20, 0
      %p47 = por %p45, %p46
      %s49 = sadd.s32 %s48, 1
      %p52 = scmp.eq.s32.totalorder %s14, 7
      %p53 = scmp.ne.s32.totalorder %s48, %s50
      %p54 = scmp.eq.s32.totalorder %s14, 0
      %p55 = por %p53, %p54
      %p56 = scmp.ne.s32.totalorder %s48, %s50
      %p57 = scmp.eq.s32.totalorder %s19, 7
      %p58 = por %p56, %p57
      %p59 = scmp.ne.s32.totalorder %s50, %s51
      %p60 = scmp.eq.s32.totalorder %s19, 0
      %p61 = por %p59, %p60
      %p62 = scmp.ne.s32.totalorder %s50, %s51
      %p63 = scmp.eq.s32.totalorder %s20, 7
      %p64 = por %p62, %p63
      %p66 = scmp.ne.s32.totalorder %s51, %s65
      %p67 = scmp.eq.s32.totalorder %s20, 0
      %p68 = por %p66, %p67
      %s70 = sadd.s32 %s69, 1
      %p73 = scmp.eq.s32.totalorder %s14, 7
      %p74 = scmp.ne.s32.totalorder %s69, %s71
      %p75 = scmp.eq.s32.totalorder %s14, 0
      %p76 = por %p74, %p75
      %p77 = scmp.ne.s32.totalorder %s69, %s71
      %p78 = scmp.eq.s32.totalorder %s19, 7
      %p79 = por %p77, %p78
      %p80 = scmp.ne.s32.totalorder %s71, %s72
      %p81 = scmp.eq.s32.totalorder %s19, 0
      %p82 = por %p80, %p81
      %p83 = scmp.ne.s32.totalorder %s71, %s72
      %p84 = scmp.eq.s32.totalorder %s20, 7
      %p85 = por %p83, %p84
      %p87 = scmp.ne.s32.totalorder %s72, %s86
      %p88 = scmp.eq.s32.totalorder %s20, 0
      %p89 = por %p87, %p88
      %s91 = sadd.s32 %s90, 1
      %p94 = scmp.eq.s32.totalorder %s14, 7
      %p95 = scmp.ne.s32.totalorder %s90, %s92
      %p96 = scmp.eq.s32.totalorder %s14, 0
      %p97 = por %p95, %p96
      %p98 = scmp.ne.s32.totalorder %s90, %s92
      %p99 = scmp.eq.s32.totalorder %s19, 7
      %p100 = por %p98, %p99
      %p101 = scmp.ne.s32.totalorder %s92, %s93
      %p102 = scmp.eq.s32.totalorder %s19, 0
      %p103 = por %p101, %p102
      %p104 = scmp.ne.s32.totalorder %s92, %s93
      %p105 = scmp.eq.s32.totalorder %s20, 7
      %p106 = por %p104, %p105
      %p108 = scmp.ne.s32.totalorder %s93, %s107
      %p109 = scmp.eq.s32.totalorder %s20, 0
      %p110 = por %p108, %p109
      %s111 = ssub.s32 %s14, %s21
      %p112 = scmp.eq.s32.totalorder %s111, 0
      %s114 = sadd.s32 %s113, 1
      %s115 = scalar_select %p112, %s113, %s114
      %p118 = pneg %p112
      %p119 = scmp.eq.s32.totalorder %s14, 7
      %p120 = por %p118, %p119
      %p121 = scmp.ne.s32.totalorder %s113, %s116
      %p122 = scmp.eq.s32.totalorder %s14, 0
      %p123 = por %p121, %p122
      %p124 = scmp.ne.s32.totalorder %s113, %s116
      %p125 = scmp.eq.s32.totalorder %s19, 7
      %p126 = por %p124, %p125
      %p127 = scmp.ne.s32.totalorder %s116, %s117
      %p128 = scmp.eq.s32.totalorder %s19, 0
      %p129 = por %p127, %p128
      %p130 = scmp.ne.s32.totalorder %s116, %s117
      %p131 = scmp.eq.s32.totalorder %s20, 7
      %p132 = por %p130, %p131
      %p134 = scmp.ne.s32.totalorder %s117, %s133
      %p135 = scmp.eq.s32.totalorder %s20, 0
      %p136 = por %p134, %p135
      %p137 = scmp.le.s32.totalorder 1, %s14
      %p138 = scmp.lt.s32.totalorder %s14, 9
      %p139 = pnand %p137, %p138
      %p140 = pneg %p139
      // Predicated region
      $region9: #{tpu_custom_call.1} parent=5 // pred_check
        _
      $region10: #{tpu_custom_call.1} parent=5 // pred_check_branch
        %142 = sbr.rel (%p139) target = $region12
      $region11: #{tpu_custom_call.1} parent=5 // pred_region
        %s143 = ssub.s32 %s14, 1
        // Predicated region
        $region13: #{tpu_custom_call.1} parent=11 // pred_check
          %p144 = pneg %p61
        $region14: #{tpu_custom_call.1} parent=11 // pred_check_branch
          %146 = sbr.rel (%p144) target = $region16
        $region15: #{tpu_custom_call.1} parent=11 // pred_region
          _
        $region16: #{tpu_custom_call.1} parent=11 // pred_fallthru
          _
        // Predicated region
        $region17: #{tpu_custom_call.1} parent=11 // pred_check
          %p147 = pneg %p82
        $region18: #{tpu_custom_call.1} parent=11 // pred_check_branch
          %149 = sbr.rel (%p147) target = $region20
        $region19: #{tpu_custom_call.1} parent=11 // pred_region
          _
        $region20: #{tpu_custom_call.1} parent=11 // pred_fallthru
          _
        // Predicated region
        $region21: #{tpu_custom_call.1} parent=11 // pred_check
          %p150 = pneg %p103
        $region22: #{tpu_custom_call.1} parent=11 // pred_check_branch
          %152 = sbr.rel (%p150) target = $region24
        $region23: #{tpu_custom_call.1} parent=11 // pred_region
          %s154 = ssub.s32 3200, 3200
          %155 = vsyncadd [#allocation4], %s154
          %s156 = sshll.u32 [#allocation3], 4
          %s157 = int_to_ptr.vmem [resolvable:$true] %s156
          %162 = dma.hbm_to_vmem [thread:$0]  %s3, 3200, %s157, [#allocation4], 640, 640, 40
        $region24: #{tpu_custom_call.1} parent=11 // pred_fallthru
          _
      $region12: #{tpu_custom_call.1} parent=5 // pred_fallthru
        _
      %p163 = scmp.lt.s32.totalorder %s14, 8
      // Predicated region
      $region25: #{tpu_custom_call.1} parent=5 // pred_check
        %p164 = pneg %p163
      $region26: #{tpu_custom_call.1} parent=5 // pred_check_branch
        %166 = sbr.rel (%p164) target = $region28
      $region27: #{tpu_custom_call.1} parent=5 // pred_region
        // Predicated region
        $region29: #{tpu_custom_call.1} parent=27 // pred_check
          %p167 = pneg %p34
        $region30: #{tpu_custom_call.1} parent=27 // pred_check_branch
          %169 = sbr.rel (%p167) target = $region32
        $region31: #{tpu_custom_call.1} parent=27 // pred_region
          %p170 = scmp.lt.s32.totalorder %s14, 7
          %s171 = scalar_select %p170, %s14, 7
          %s172 = smul.addr %s171, 9
          %s173 = smul.addr %s172, 4
          %s174 = scalar_lea.vmem %s0, %s173
        $region32: #{tpu_custom_call.1} parent=27 // pred_fallthru
          _
      $region28: #{tpu_custom_call.1} parent=5 // pred_fallthru
        _
      %p175 = scmp.le.s32.totalorder 1, %s14
      %p176 = scmp.lt.s32.totalorder %s14, 9
      %p177 = pnand %p175, %p176
      %p178 = pneg %p177
      // Predicated region
      $region33: #{tpu_custom_call.1} parent=5 // pred_check
        _
      $region34: #{tpu_custom_call.1} parent=5 // pred_check_branch
        %180 = sbr.rel (%p177) target = $region36
      $region35: #{tpu_custom_call.1} parent=5 // pred_region
        %s181 = ssub.s32 %s14, 1
        // Predicated region
        $region37: #{tpu_custom_call.1} parent=35 // pred_check
          %p182 = pneg %p103
        $region38: #{tpu_custom_call.1} parent=35 // pred_check_branch
          %184 = sbr.rel (%p182) target = $region40
        $region39: #{tpu_custom_call.1} parent=35 // pred_region
          %185 = dma.done [#allocation4], 3200
        $region40: #{tpu_custom_call.1} parent=35 // pred_fallthru
          _
        %p186 = scmp.lt.s32.totalorder %s19, 7
        %s187 = scalar_select %p186, %s19, 7
        %s188 = smul.addr %s187, 9
        %s189 = smul.addr %s188, 4
        %s190 = scalar_lea.vmem %s0, %s189
        %p191 = pneg %p40
        %p192 = pneg %p37
        %p193 = pneg %p61
        %p194 = pneg %p58
        %p195 = pneg %p82
        %p196 = pneg %p79
        %p197 = pneg %p103
        %p198 = pneg %p100
        %p199 = pneg %p129
        %p200 = pneg %p126
        %s201 = sand.u32 %s116, 1
        %s202 = scalar_lea.sflag [#allocation5], %s201
        %s203 = sand.u32 %s116, 1
        %s204 = smul.addr %s203, 2
        %s205 = scalar_lea.vmem [#allocation6], %s204
        %p206 = scmp.lt.s32.totalorder %s19, 7
        %s207 = scalar_select %p206, %s19, 7
        %s208 = smul.addr %s207, 9
        %s209 = smul.addr %s208, 4
        %s210 = scalar_lea.vmem %s0, %s209
        %p212 = scmp.eq.s32.totalorder %s19, 0
        // Predicated region
        $region41: #{tpu_custom_call.1} parent=35 // pred_check
          %p213 = pneg %p212
        $region42: #{tpu_custom_call.1} parent=35 // pred_check_branch
          %215 = sbr.rel (%p213) target = $region44
        $region43: #{tpu_custom_call.1} parent=35 // pred_region
          %v216 = vld [vmem:[%s1] sm:$0x3]
          %vm217 = vcmask 254976
          %218 = vst.msk [vmem:[#allocation2] sm:$0x3] %vm217, %v216
        $region44: #{tpu_custom_call.1} parent=35 // pred_fallthru
          _
        %v219 = vld [vmem:[%s2] sm:$0xf]
        %v220 = vld [vmem:[%s2 + $0x4] sm:$0xf]
        %v221 = vld [vmem:[%s2 + $0x8] sm:$0xf]
        %v222 = vld [vmem:[%s2 + $0xc] sm:$0xf]
        %v223 = vld [vmem:[%s2 + $0x70] sm:$0xf]
        %v224 = vld [vmem:[%s2 + $0x74] sm:$0xf]
        %v225 = vld [vmem:[%s2 + $0x78] sm:$0xf]
        %v226 = vld [vmem:[%s2 + $0x7c] sm:$0xf]
        %v227 = vld [vmem:[%s2 + $0x80] sm:$0xf]
        %v228 = vld [vmem:[%s2 + $0x84] sm:$0xf]
        %v229 = vld [vmem:[%s2 + $0x88] sm:$0xf]
        %v230 = vld [vmem:[%s2 + $0x8c] sm:$0xf]
        %v231 = vld [vmem:[%s2 + $0x90] sm:$0xf]
        %v232 = vld [vmem:[%s2 + $0x94] sm:$0xf]
        %v233 = vld [vmem:[%s2 + $0x98] sm:$0xf]
        %v234 = vld [vmem:[%s2 + $0x9c] sm:$0xf]
        %v235 = vld [vmem:[%s2 + $0xa0] sm:$0xf]
        %v236 = vld [vmem:[%s2 + $0xa4] sm:$0xf]
        %v237 = vld [vmem:[%s2 + $0xa8] sm:$0xf]
        %v238 = vld [vmem:[%s2 + $0xac] sm:$0xf]
        %v239 = vld [vmem:[%s2 + $0xb0] sm:$0xf]
        %v240 = vld [vmem:[%s2 + $0xb4] sm:$0xf]
        %v241 = vld [vmem:[%s2 + $0xb8] sm:$0xf]
        %v242 = vld [vmem:[%s2 + $0xbc] sm:$0xf]
        %v243 = vld [vmem:[%s2 + $0xc0] sm:$0xf]
        %v244 = vld [vmem:[%s2 + $0xc4] sm:$0xf]
        %v245 = vld [vmem:[%s2 + $0xc8] sm:$0xf]
        %v246 = vld [vmem:[%s2 + $0xcc] sm:$0xf]
        %v247 = vld [vmem:[%s2 + $0xd0] sm:$0xf]
        %v248 = vld [vmem:[%s2 + $0xd4] sm:$0xf]
        %v249 = vld [vmem:[%s2 + $0xd8] sm:$0xf]
        %v250 = vld [vmem:[%s2 + $0xdc] sm:$0xf]
        %v251 = vld [vmem:[%s2 + $0xe0] sm:$0xf]
        %v252 = vld [vmem:[%s2 + $0xe4] sm:$0xf]
        %v253 = vld [vmem:[%s2 + $0xe8] sm:$0xf]
        %v254 = vld [vmem:[%s2 + $0xec] sm:$0xf]
        %v255 = vld [vmem:[%s2 + $0xf0] sm:$0xf]
        %v256 = vld [vmem:[%s2 + $0xf4] sm:$0xf]
        %v257 = vld [vmem:[%s2 + $0xf8] sm:$0xf]
        %v258 = vld [vmem:[%s2 + $0xfc] sm:$0xf]
        %v259 = vld [vmem:[%s2 + $0x100] sm:$0xf]
        %v260 = vld [vmem:[%s2 + $0x104] sm:$0xf]
        %v261 = vld [vmem:[%s2 + $0x108] sm:$0xf]
        %v262 = vld [vmem:[%s2 + $0x10c] sm:$0xf]
        %v263 = vld [vmem:[%s2 + $0x110] sm:$0xf]
        %v264 = vld [vmem:[%s2 + $0x114] sm:$0xf]
        %v265 = vld [vmem:[%s2 + $0x118] sm:$0xf]
        %v266 = vld [vmem:[%s2 + $0x11c] sm:$0xf]
        %v267 = vld [vmem:[%s2 + $0x120] sm:$0xf]
        %v268 = vld [vmem:[%s2 + $0x124] sm:$0xf]
        %v269 = vld [vmem:[%s2 + $0x128] sm:$0xf]
        %v270 = vld [vmem:[%s2 + $0x12c] sm:$0xf]
        %v271 = vld [vmem:[%s2 + $0x130] sm:$0xf]
        %v272 = vld [vmem:[%s2 + $0x134] sm:$0xf]
        %v273 = vld [vmem:[%s2 + $0x138] sm:$0xf]
        %v274 = vld [vmem:[%s2 + $0x13c] sm:$0xf]
        %v275 = vld [vmem:[%s2 + $0x140] sm:$0xf]
        %v276 = vld [vmem:[%s2 + $0x144] sm:$0xf]
        %v277 = vld [vmem:[%s2 + $0x148] sm:$0xf]
        %v278 = vld [vmem:[%s2 + $0x14c] sm:$0xf]
        %v279 = vld [vmem:[%s2 + $0x150] sm:$0xf]
        %v280 = vld [vmem:[%s2 + $0x154] sm:$0xf]
        %v281 = vld [vmem:[%s2 + $0x158] sm:$0xf]
        %v282 = vld [vmem:[%s2 + $0x15c] sm:$0xf]
        %v283 = vld [vmem:[%s2 + $0x160] sm:$0xf]
        %v284 = vld [vmem:[%s2 + $0x164] sm:$0xf]
        %v285 = vld [vmem:[%s2 + $0x168] sm:$0xf]
        %v286 = vld [vmem:[%s2 + $0x16c] sm:$0xf]
        %v287 = vld [vmem:[%s2 + $0x170] sm:$0xf]
        %v288 = vld [vmem:[%s2 + $0x174] sm:$0xf]
        %v289 = vld [vmem:[%s2 + $0x178] sm:$0xf]
        %v290 = vld [vmem:[%s2 + $0x17c] sm:$0xf]
        %v291 = vld [vmem:[%s2 + $0x180] sm:$0xf]
        %v292 = vld [vmem:[%s2 + $0x184] sm:$0xf]
        %v293 = vld [vmem:[%s2 + $0x188] sm:$0xf]
        %v294 = vld [vmem:[%s2 + $0x18c] sm:$0xf]
        %v295 = vld [vmem:[%s2 + $0x190] sm:$0xf]
        %v296 = vld [vmem:[%s2 + $0x194] sm:$0xf]
        %v297 = vld [vmem:[%s2 + $0x198] sm:$0xf]
        %v298 = vld [vmem:[%s2 + $0x19c] sm:$0xf]
        %v299 = vld [vmem:[#allocation3] ss:$0 sm:$0xff]
        %v300 = vld [vmem:[#allocation3 + $0x8] ss:$0 sm:$0xff]
        %v301 = vld [vmem:[#allocation3 + $0x10] ss:$0 sm:$0xff]
        %v302 = vld [vmem:[#allocation3 + $0x18] ss:$0 sm:$0xff]
        %v303 = vld [vmem:[#allocation3 + $0x20] ss:$0 sm:$0xff]
        %v304 = vld [vmem:[#allocation3 + $0x28] sm:$0xff]
        %v305 = vld [vmem:[#allocation3 + $0x50] sm:$0xff]
        %v306 = vld [vmem:[#allocation3 + $0x78] sm:$0xff]
        %v307 = vld [vmem:[#allocation3 + $0xa0] sm:$0xff]
        %v308 = vld [vmem:[%s210] sm:$0xf]
        %v309 = vld [vmem:[%s210 + $0x4] sm:$0xf]
        %v310 = vld [vmem:[%s210 + $0x8] sm:$0xf]
        %v311 = vld [vmem:[%s210 + $0xc] sm:$0xf]
        %v312 = vld [vmem:[%s210 + $0x10] sm:$0xf]
        %v313 = vld [vmem:[%s210 + $0x14] sm:$0xf]
        %v314 = vld [vmem:[%s210 + $0x18] sm:$0x1]
        %v322 = vunpack.c.l.b16 %v308
        %v323 = vunpack.c.l.b16 %v309
        %v324 = vunpack.c.l.b16 %v310
        %v325 = vunpack.c.l.b16 %v311
        %v326 = vunpack.c.l.b16 %v312
        %v327 = vunpack.c.l.b16 %v313
        %v328 = vunpack.c.l.b16 %v314
        %v329 = vpack.c.b16 %v323, %v322
        %v330 = vpack.c.b16 %v325, %v324
        %v331 = vpack.c.b16 %v327, %v326
        %v332 = vpack.c.b16 %v328, %v328
        %v337 = vunpack.c.l.b16 %v219
        %v338 = vunpack.c.l.b16 %v220
        %v339 = vunpack.c.l.b16 %v221
        %v340 = vunpack.c.l.b16 %v222
        %v341 = vpack.c.b16 %v338, %v337
        %v342 = vpack.c.b16 %v340, %v339
        %vm345 = vcmask 261120
        %v347 = vsel %vm345, %v329, 0
        %v350 = vsel %vm345, %v330, 0
        %v353 = vsel %vm345, %v331, 0
        %v356 = vsel %vm345, %v332, 0
        %358 = vmatprep.subr.bf16.mxu0 0
        %359 = vmatpush1.bf16.msra.mxu0 %v341
        %360 = vmatprep.subr.bf16.mxu0 0
        %361 = vmatpush1.bf16.msra.mxu0 %v342
        %362 = vmatprep.subr.bf16.mxu0 0
        %363 = vmatpush1.bf16.msra.mxu0 0
        %364 = vmatprep.subr.bf16.mxu0 0
        %365 = vmatpush1.bf16.msra.mxu0 0
        %366 = vmatprep.subr.bf16.mxu0 0
        %367 = vmatpush1.bf16.msra.mxu0 0
        %368 = vmatprep.subr.bf16.mxu0 0
        %369 = vmatpush1.bf16.msra.mxu0 0
        %370 = vmatprep.subr.bf16.mxu0 0
        %371 = vmatpush1.bf16.msra.mxu0 0
        %372 = vmatprep.subr.bf16.mxu0 0
        %373 = vmatpush1.bf16.msra.mxu0 0
        %374 = vmatprep.subr.bf16.mxu0 0
        %375 = vmatpush1.bf16.msra.mxu0 0
        %376 = vmatprep.subr.bf16.mxu0 0
        %377 = vmatpush1.bf16.msra.mxu0 0
        %378 = vmatprep.subr.bf16.mxu0 0
        %379 = vmatpush1.bf16.msra.mxu0 0
        %380 = vmatprep.subr.bf16.mxu0 0
        %381 = vmatpush1.bf16.msra.mxu0 0
        %382 = vmatprep.subr.bf16.mxu0 0
        %383 = vmatpush1.bf16.msra.mxu0 0
        %384 = vmatprep.subr.bf16.mxu0 0
        %385 = vmatpush1.bf16.msra.mxu0 0
        %386 = vmatprep.subr.bf16.mxu0 0
        %387 = vmatpush1.bf16.msra.mxu0 0
        %388 = vmatprep.subr.bf16.mxu0 0
        %389 = vmatpush1.bf16.msra.mxu0 0
        %390 = vmatprep.mubr.bf16.mxu0 0
        %391 = vmatmul.mubr.bf16.gmra.mrb[0].mxu0 %v347
        %v392 = vpop.f32.mrb[0].mxu0
        %v393 = vadd.f32 %v299, %v392
        %v394 = vpop.f32.mrb[0].mxu0
        %v395 = vpop.f32.mrb[0].mxu0
        %v396 = vadd.f32 %v299, %v395
        %v397 = vpop.f32.mrb[0].mxu0
        %398 = vmatprep.mubr.bf16.mxu0 0
        %399 = vmatmul.mubr.bf16.gmra.mrb[0].mxu0 %v350
        %v400 = vpop.f32.mrb[0].mxu0
        %v401 = vadd.f32 %v299, %v400
        %v402 = vpop.f32.mrb[0].mxu0
        %v403 = vpop.f32.mrb[0].mxu0
        %v404 = vadd.f32 %v299, %v403
        %v405 = vpop.f32.mrb[0].mxu0
        %406 = vmatprep.mubr.bf16.mxu0 0
        %407 = vmatmul.mubr.bf16.gmra.mrb[0].mxu0 %v353
        %v408 = vpop.f32.mrb[0].mxu0
        %v409 = vadd.f32 %v299, %v408
        %v410 = vpop.f32.mrb[0].mxu0
        %v411 = vpop.f32.mrb[0].mxu0
        %v412 = vadd.f32 %v299, %v411
        %v413 = vpop.f32.mrb[0].mxu0
        %414 = vmatprep.mubr.bf16.mxu0 0
        %415 = vmatmul.mubr.bf16.gmra.mrb[0].mxu0 %v356
        %v416 = vpop.f32.mrb[0].mxu0
        %v417 = vadd.f32 %v299, %v416
        %v418 = vpop.f32.mrb[0].mxu0
        %v419 = vpop.f32.mrb[0].mxu0
        %v420 = vpop.f32.mrb[0].mxu0
        %421 = vdwg.mxu0
        %vm422 = vcmp.gt.f32.partialorder %v393, 0.0
        %vm423 = vcmp.gt.f32.partialorder %v396, 0.0
        %vm424 = vcmp.gt.f32.partialorder %v401, 0.0
        %vm425 = vcmp.gt.f32.partialorder %v404, 0.0
        %vm426 = vcmp.gt.f32.partialorder %v409, 0.0
        %vm427 = vcmp.gt.f32.partialorder %v412, 0.0
        %vm428 = vcmp.gt.f32.partialorder %v417, 0.0
        %v429 = vmul.f32 %v393, 0.01
        %v430 = vmul.f32 %v396, 0.01
        %v431 = vmul.f32 %v401, 0.01
        %v432 = vmul.f32 %v404, 0.01
        %v433 = vmul.f32 %v409, 0.01
        %v434 = vmul.f32 %v412, 0.01
        %v435 = vmul.f32 %v417, 0.01
        %v436 = vsel %vm422, %v393, %v429
        %v437 = vsel %vm423, %v396, %v430
        %v438 = vsel %vm424, %v401, %v431
        %v439 = vsel %vm425, %v404, %v432
        %v440 = vsel %vm426, %v409, %v433
        %v441 = vsel %vm427, %v412, %v434
        %v442 = vsel %vm428, %v417, %v435
        %v450 = vcombine.high %v436, %v436
        %v452 = vunpack.c.l.s4 1966171168
        %v453 = vunpack.c.0.s8 %v452
        %v454 = vlaneseq
        %v455 = vshrl.u32 %v454, 7
        %v456 = vsub.s32 %v453, %v455
        %v457 = vrot.slane %v436, %v456
        %v459 = vunpack.c.l.s4 1966171168
        %v460 = vunpack.c.0.s8 %v459
        %v461 = vlaneseq
        %v462 = vshrl.u32 %v461, 7
        %v463 = vsub.s32 %v460, %v462
        %v464 = vrot.slane %v450, %v463
        %v465 = vcombine.high %v457, %v457
        %v466 = vcombine.high %v464, %v464
        %v468 = vunpack.c.l.s4 1966171168
        %v469 = vunpack.c.0.s8 %v468
        %v470 = vlaneseq
        %v471 = vshrl.u32 %v470, 7
        %v472 = vsub.s32 %v469, %v471
        %v473 = vrot.slane %v457, %v472
        %v475 = vunpack.c.l.s4 1966171168
        %v476 = vunpack.c.0.s8 %v475
        %v477 = vlaneseq
        %v478 = vshrl.u32 %v477, 7
        %v479 = vsub.s32 %v476, %v478
        %v480 = vrot.slane %v464, %v479
        %v482 = vunpack.c.l.s4 1966171168
        %v483 = vunpack.c.0.s8 %v482
        %v484 = vlaneseq
        %v485 = vshrl.u32 %v484, 7
        %v486 = vsub.s32 %v483, %v485
        %v487 = vrot.slane %v465, %v486
        %v489 = vunpack.c.l.s4 1966171168
        %v490 = vunpack.c.0.s8 %v489
        %v491 = vlaneseq
        %v492 = vshrl.u32 %v491, 7
        %v493 = vsub.s32 %v490, %v492
        %v494 = vrot.slane %v466, %v493
        %v495 = vcombine.high %v473, %v473
        %v496 = vcombine.high %v480, %v480
        %v497 = vcombine.high %v487, %v487
        %v498 = vcombine.high %v494, %v494
        %v499 = vcombine.high %v437, %v437
        %v501 = vunpack.c.l.s4 1966171168
        %v502 = vunpack.c.0.s8 %v501
        %v503 = vlaneseq
        %v504 = vshrl.u32 %v503, 7
        %v505 = vsub.s32 %v502, %v504
        %v506 = vrot.slane %v437, %v505
        %v508 = vunpack.c.l.s4 1966171168
        %v509 = vunpack.c.0.s8 %v508
        %v510 = vlaneseq
        %v511 = vshrl.u32 %v510, 7
        %v512 = vsub.s32 %v509, %v511
        %v513 = vrot.slane %v499, %v512
        %v514 = vcombine.high %v506, %v506
        %v515 = vcombine.high %v513, %v513
        %v517 = vunpack.c.l.s4 1966171168
        %v518 = vunpack.c.0.s8 %v517
        %v519 = vlaneseq
        %v520 = vshrl.u32 %v519, 7
        %v521 = vsub.s32 %v518, %v520
        %v522 = vrot.slane %v506, %v521
        %v524 = vunpack.c.l.s4 1966171168
        %v525 = vunpack.c.0.s8 %v524
        %v526 = vlaneseq
        %v527 = vshrl.u32 %v526, 7
        %v528 = vsub.s32 %v525, %v527
        %v529 = vrot.slane %v513, %v528
        %v531 = vunpack.c.l.s4 1966171168
        %v532 = vunpack.c.0.s8 %v531
        %v533 = vlaneseq
        %v534 = vshrl.u32 %v533, 7
        %v535 = vsub.s32 %v532, %v534
        %v536 = vrot.slane %v514, %v535
        %v538 = vunpack.c.l.s4 1966171168
        %v539 = vunpack.c.0.s8 %v538
        %v540 = vlaneseq
        %v541 = vshrl.u32 %v540, 7
        %v542 = vsub.s32 %v539, %v541
        %v543 = vrot.slane %v515, %v542
        %v544 = vcombine.high %v522, %v522
        %v545 = vcombine.high %v529, %v529
        %v546 = vcombine.high %v536, %v536
        %v547 = vcombine.high %v543, %v543
        %v548 = vcombine.high %v438, %v438
        %v550 = vunpack.c.l.s4 1966171168
        %v551 = vunpack.c.0.s8 %v550
        %v552 = vlaneseq
        %v553 = vshrl.u32 %v552, 7
        %v554 = vsub.s32 %v551, %v553
        %v555 = vrot.slane %v438, %v554
        %v557 = vunpack.c.l.s4 1966171168
        %v558 = vunpack.c.0.s8 %v557
        %v559 = vlaneseq
        %v560 = vshrl.u32 %v559, 7
        %v561 = vsub.s32 %v558, %v560
        %v562 = vrot.slane %v548, %v561
        %v563 = vcombine.high %v555, %v555
        %v564 = vcombine.high %v562, %v562
        %v566 = vunpack.c.l.s4 1966171168
        %v567 = vunpack.c.0.s8 %v566
        %v568 = vlaneseq
        %v569 = vshrl.u32 %v568, 7
        %v570 = vsub.s32 %v567, %v569
        %v571 = vrot.slane %v555, %v570
        %v573 = vunpack.c.l.s4 1966171168
        %v574 = vunpack.c.0.s8 %v573
        %v575 = vlaneseq
        %v576 = vshrl.u32 %v575, 7
        %v577 = vsub.s32 %v574, %v576
        %v578 = vrot.slane %v562, %v577
        %v580 = vunpack.c.l.s4 1966171168
        %v581 = vunpack.c.0.s8 %v580
        %v582 = vlaneseq
        %v583 = vshrl.u32 %v582, 7
        %v584 = vsub.s32 %v581, %v583
        %v585 = vrot.slane %v563, %v584
        %v587 = vunpack.c.l.s4 1966171168
        %v588 = vunpack.c.0.s8 %v587
        %v589 = vlaneseq
        %v590 = vshrl.u32 %v589, 7
        %v591 = vsub.s32 %v588, %v590
        %v592 = vrot.slane %v564, %v591
        %v593 = vcombine.high %v571, %v571
        %v594 = vcombine.high %v578, %v578
        %v595 = vcombine.high %v585, %v585
        %v596 = vcombine.high %v592, %v592
        %v597 = vcombine.high %v439, %v439
        %v599 = vunpack.c.l.s4 1966171168
        %v600 = vunpack.c.0.s8 %v599
        %v601 = vlaneseq
        %v602 = vshrl.u32 %v601, 7
        %v603 = vsub.s32 %v600, %v602
        %v604 = vrot.slane %v439, %v603
        %v606 = vunpack.c.l.s4 1966171168
        %v607 = vunpack.c.0.s8 %v606
        %v608 = vlaneseq
        %v609 = vshrl.u32 %v608, 7
        %v610 = vsub.s32 %v607, %v609
        %v611 = vrot.slane %v597, %v610
        %v612 = vcombine.high %v604, %v604
        %v613 = vcombine.high %v611, %v611
        %v615 = vunpack.c.l.s4 1966171168
        %v616 = vunpack.c.0.s8 %v615
        %v617 = vlaneseq
        %v618 = vshrl.u32 %v617, 7
        %v619 = vsub.s32 %v616, %v618
        %v620 = vrot.slane %v604, %v619
        %v622 = vunpack.c.l.s4 1966171168
        %v623 = vunpack.c.0.s8 %v622
        %v624 = vlaneseq
        %v625 = vshrl.u32 %v624, 7
        %v626 = vsub.s32 %v623, %v625
        %v627 = vrot.slane %v611, %v626
        %v629 = vunpack.c.l.s4 1966171168
        %v630 = vunpack.c.0.s8 %v629
        %v631 = vlaneseq
        %v632 = vshrl.u32 %v631, 7
        %v633 = vsub.s32 %v630, %v632
        %v634 = vrot.slane %v612, %v633
        %v636 = vunpack.c.l.s4 1966171168
        %v637 = vunpack.c.0.s8 %v636
        %v638 = vlaneseq
        %v639 = vshrl.u32 %v638, 7
        %v640 = vsub.s32 %v637, %v639
        %v641 = vrot.slane %v613, %v640
        %v642 = vcombine.high %v620, %v620
        %v643 = vcombine.high %v627, %v627
        %v644 = vcombine.high %v634, %v634
        %v645 = vcombine.high %v641, %v641
        %v646 = vcombine.high %v440, %v440
        %v648 = vunpack.c.l.s4 1966171168
        %v649 = vunpack.c.0.s8 %v648
        %v650 = vlaneseq
        %v651 = vshrl.u32 %v650, 7
        %v652 = vsub.s32 %v649, %v651
        %v653 = vrot.slane %v440, %v652
        %v655 = vunpack.c.l.s4 1966171168
        %v656 = vunpack.c.0.s8 %v655
        %v657 = vlaneseq
        %v658 = vshrl.u32 %v657, 7
        %v659 = vsub.s32 %v656, %v658
        %v660 = vrot.slane %v646, %v659
        %v661 = vcombine.high %v653, %v653
        %v662 = vcombine.high %v660, %v660
        %v664 = vunpack.c.l.s4 1966171168
        %v665 = vunpack.c.0.s8 %v664
        %v666 = vlaneseq
        %v667 = vshrl.u32 %v666, 7
        %v668 = vsub.s32 %v665, %v667
        %v669 = vrot.slane %v653, %v668
        %v671 = vunpack.c.l.s4 1966171168
        %v672 = vunpack.c.0.s8 %v671
        %v673 = vlaneseq
        %v674 = vshrl.u32 %v673, 7
        %v675 = vsub.s32 %v672, %v674
        %v676 = vrot.slane %v660, %v675
        %v678 = vunpack.c.l.s4 1966171168
        %v679 = vunpack.c.0.s8 %v678
        %v680 = vlaneseq
        %v681 = vshrl.u32 %v680, 7
        %v682 = vsub.s32 %v679, %v681
        %v683 = vrot.slane %v661, %v682
        %v685 = vunpack.c.l.s4 1966171168
        %v686 = vunpack.c.0.s8 %v685
        %v687 = vlaneseq
        %v688 = vshrl.u32 %v687, 7
        %v689 = vsub.s32 %v686, %v688
        %v690 = vrot.slane %v662, %v689
        %v691 = vcombine.high %v669, %v669
        %v692 = vcombine.high %v676, %v676
        %v693 = vcombine.high %v683, %v683
        %v694 = vcombine.high %v690, %v690
        %v695 = vcombine.high %v441, %v441
        %v697 = vunpack.c.l.s4 1966171168
        %v698 = vunpack.c.0.s8 %v697
        %v699 = vlaneseq
        %v700 = vshrl.u32 %v699, 7
        %v701 = vsub.s32 %v698, %v700
        %v702 = vrot.slane %v441, %v701
        %v704 = vunpack.c.l.s4 1966171168
        %v705 = vunpack.c.0.s8 %v704
        %v706 = vlaneseq
        %v707 = vshrl.u32 %v706, 7
        %v708 = vsub.s32 %v705, %v707
        %v709 = vrot.slane %v695, %v708
        %v710 = vcombine.high %v702, %v702
        %v711 = vcombine.high %v709, %v709
        %v713 = vunpack.c.l.s4 1966171168
        %v714 = vunpack.c.0.s8 %v713
        %v715 = vlaneseq
        %v716 = vshrl.u32 %v715, 7
        %v717 = vsub.s32 %v714, %v716
        %v718 = vrot.slane %v702, %v717
        %v720 = vunpack.c.l.s4 1966171168
        %v721 = vunpack.c.0.s8 %v720
        %v722 = vlaneseq
        %v723 = vshrl.u32 %v722, 7
        %v724 = vsub.s32 %v721, %v723
        %v725 = vrot.slane %v709, %v724
        %v727 = vunpack.c.l.s4 1966171168
        %v728 = vunpack.c.0.s8 %v727
        %v729 = vlaneseq
        %v730 = vshrl.u32 %v729, 7
        %v731 = vsub.s32 %v728, %v730
        %v732 = vrot.slane %v710, %v731
        %v734 = vunpack.c.l.s4 1966171168
        %v735 = vunpack.c.0.s8 %v734
        %v736 = vlaneseq
        %v737 = vshrl.u32 %v736, 7
        %v738 = vsub.s32 %v735, %v737
        %v739 = vrot.slane %v711, %v738
        %v740 = vcombine.high %v718, %v718
        %v741 = vcombine.high %v725, %v725
        %v742 = vcombine.high %v732, %v732
        %v743 = vcombine.high %v739, %v739
        %v745 = vunpack.c.l.s4 1966171168
        %v746 = vunpack.c.0.s8 %v745
        %v747 = vlaneseq
        %v748 = vshrl.u32 %v747, 7
        %v749 = vsub.s32 %v746, %v748
        %v750 = vrot.slane %v442, %v749
        %v751 = vcombine.high %v750, %v750
        %v753 = vunpack.c.l.s4 1966171168
        %v754 = vunpack.c.0.s8 %v753
        %v755 = vlaneseq
        %v756 = vshrl.u32 %v755, 7
        %v757 = vsub.s32 %v754, %v756
        %v758 = vrot.slane %v750, %v757
        %v760 = vunpack.c.l.s4 1966171168
        %v761 = vunpack.c.0.s8 %v760
        %v762 = vlaneseq
        %v763 = vshrl.u32 %v762, 7
        %v764 = vsub.s32 %v761, %v763
        %v765 = vrot.slane %v751, %v764
        %v766 = vld [vmem:[%s2 + $0x10] sm:$0xf]
        %v767 = vld [vmem:[%s2 + $0x14] sm:$0xf]
        %v768 = vcombine.low %v473, %v487
        %v769 = vcombine.low %v495, %v497
        %v770 = vcombine.low %v494, %v496
        %v771 = vcombine.low %v498, %v522
        %v773 = vunpack.c.l.s4 1966171168
        %v774 = vunpack.c.0.s8 %v773
        %v775 = vlaneseq
        %v776 = vshrl.u32 %v775, 7
        %v777 = vsub.s32 %v774, %v776
        %v778 = vrot.slane %v768, %v777
        %v780 = vunpack.c.l.s4 1966171168
        %v781 = vunpack.c.0.s8 %v780
        %v782 = vlaneseq
        %v783 = vshrl.u32 %v782, 7
        %v784 = vsub.s32 %v781, %v783
        %v785 = vrot.slane %v769, %v784
        %v787 = vunpack.c.l.s4 1966171168
        %v788 = vunpack.c.0.s8 %v787
        %v789 = vlaneseq
        %v790 = vshrl.u32 %v789, 7
        %v791 = vsub.s32 %v788, %v790
        %v792 = vrot.slane %v770, %v791
        %v794 = vunpack.c.l.s4 1966171168
        %v795 = vunpack.c.0.s8 %v794
        %v796 = vlaneseq
        %v797 = vshrl.u32 %v796, 7
        %v798 = vsub.s32 %v795, %v797
        %v799 = vrot.slane %v771, %v798
        %v800 = vcombine.low %v778, %v785
        %v801 = vcombine.low %v792, %v799
        %v803 = vunpack.c.l.s4 1966171168
        %v804 = vunpack.c.0.s8 %v803
        %v805 = vlaneseq
        %v806 = vshrl.u32 %v805, 7
        %v807 = vsub.s32 %v804, %v806
        %v808 = vrot.slane %v800, %v807
        %v810 = vunpack.c.l.s4 1966171168
        %v811 = vunpack.c.0.s8 %v810
        %v812 = vlaneseq
        %v813 = vshrl.u32 %v812, 7
        %v814 = vsub.s32 %v811, %v813
        %v815 = vrot.slane %v801, %v814
        %v816 = vcombine.low %v808, %v815
        %v817 = vcombine.low %v544, %v546
        %v818 = vcombine.low %v529, %v543
        %v819 = vcombine.low %v547, %v571
        %v820 = vcombine.low %v585, %v593
        %v822 = vunpack.c.l.s4 1966171168
        %v823 = vunpack.c.0.s8 %v822
        %v824 = vlaneseq
        %v825 = vshrl.u32 %v824, 7
        %v826 = vsub.s32 %v823, %v825
        %v827 = vrot.slane %v817, %v826
        %v829 = vunpack.c.l.s4 1966171168
        %v830 = vunpack.c.0.s8 %v829
        %v831 = vlaneseq
        %v832 = vshrl.u32 %v831, 7
        %v833 = vsub.s32 %v830, %v832
        %v834 = vrot.slane %v818, %v833
        %v836 = vunpack.c.l.s4 1966171168
        %v837 = vunpack.c.0.s8 %v836
        %v838 = vlaneseq
        %v839 = vshrl.u32 %v838, 7
        %v840 = vsub.s32 %v837, %v839
        %v841 = vrot.slane %v819, %v840
        %v843 = vunpack.c.l.s4 1966171168
        %v844 = vunpack.c.0.s8 %v843
        %v845 = vlaneseq
        %v846 = vshrl.u32 %v845, 7
        %v847 = vsub.s32 %v844, %v846
        %v848 = vrot.slane %v820, %v847
        %v849 = vcombine.low %v827, %v834
        %v850 = vcombine.low %v841, %v848
        %v852 = vunpack.c.l.s4 1966171168
        %v853 = vunpack.c.0.s8 %v852
        %v854 = vlaneseq
        %v855 = vshrl.u32 %v854, 7
        %v856 = vsub.s32 %v853, %v855
        %v857 = vrot.slane %v849, %v856
        %v859 = vunpack.c.l.s4 1966171168
        %v860 = vunpack.c.0.s8 %v859
        %v861 = vlaneseq
        %v862 = vshrl.u32 %v861, 7
        %v863 = vsub.s32 %v860, %v862
        %v864 = vrot.slane %v850, %v863
        %v865 = vcombine.low %v857, %v864
        %v866 = vcombine.low %v634, %v642
        %v867 = vcombine.low %v644, %v627
        %v868 = vcombine.low %v643, %v645
        %v869 = vcombine.low %v669, %v683
        %v871 = vunpack.c.l.s4 1966171168
        %v872 = vunpack.c.0.s8 %v871
        %v873 = vlaneseq
        %v874 = vshrl.u32 %v873, 7
        %v875 = vsub.s32 %v872, %v874
        %v876 = vrot.slane %v866, %v875
        %v878 = vunpack.c.l.s4 1966171168
        %v879 = vunpack.c.0.s8 %v878
        %v880 = vlaneseq
        %v881 = vshrl.u32 %v880, 7
        %v882 = vsub.s32 %v879, %v881
        %v883 = vrot.slane %v867, %v882
        %v885 = vunpack.c.l.s4 1966171168
        %v886 = vunpack.c.0.s8 %v885
        %v887 = vlaneseq
        %v888 = vshrl.u32 %v887, 7
        %v889 = vsub.s32 %v886, %v888
        %v890 = vrot.slane %v868, %v889
        %v892 = vunpack.c.l.s4 1966171168
        %v893 = vunpack.c.0.s8 %v892
        %v894 = vlaneseq
        %v895 = vshrl.u32 %v894, 7
        %v896 = vsub.s32 %v893, %v895
        %v897 = vrot.slane %v869, %v896
        %v898 = vcombine.low %v876, %v883
        %v899 = vcombine.low %v890, %v897
        %v901 = vunpack.c.l.s4 1966171168
        %v902 = vunpack.c.0.s8 %v901
        %v903 = vlaneseq
        %v904 = vshrl.u32 %v903, 7
        %v905 = vsub.s32 %v902, %v904
        %v906 = vrot.slane %v898, %v905
        %v908 = vunpack.c.l.s4 1966171168
        %v909 = vunpack.c.0.s8 %v908
        %v910 = vlaneseq
        %v911 = vshrl.u32 %v910, 7
        %v912 = vsub.s32 %v909, %v911
        %v913 = vrot.slane %v899, %v912
        %v914 = vcombine.low %v906, %v913
        %v915 = vcombine.low %v693, %v676
        %v916 = vcombine.low %v690, %v692
        %v917 = vcombine.low %v718, %v732
        %v918 = vcombine.low %v740, %v742
        %v920 = vunpack.c.l.s4 1966171168
        %v921 = vunpack.c.0.s8 %v920
        %v922 = vlaneseq
        %v923 = vshrl.u32 %v922, 7
        %v924 = vsub.s32 %v921, %v923
        %v925 = vrot.slane %v915, %v924
        %v927 = vunpack.c.l.s4 1966171168
        %v928 = vunpack.c.0.s8 %v927
        %v929 = vlaneseq
        %v930 = vshrl.u32 %v929, 7
        %v931 = vsub.s32 %v928, %v930
        %v932 = vrot.slane %v916, %v931
        %v934 = vunpack.c.l.s4 1966171168
        %v935 = vunpack.c.0.s8 %v934
        %v936 = vlaneseq
        %v937 = vshrl.u32 %v936, 7
        %v938 = vsub.s32 %v935, %v937
        %v939 = vrot.slane %v917, %v938
        %v941 = vunpack.c.l.s4 1966171168
        %v942 = vunpack.c.0.s8 %v941
        %v943 = vlaneseq
        %v944 = vshrl.u32 %v943, 7
        %v945 = vsub.s32 %v942, %v944
        %v946 = vrot.slane %v918, %v945
        %v947 = vcombine.low %v925, %v932
        %v948 = vcombine.low %v939, %v946
        %v950 = vunpack.c.l.s4 1966171168
        %v951 = vunpack.c.0.s8 %v950
        %v952 = vlaneseq
        %v953 = vshrl.u32 %v952, 7
        %v954 = vsub.s32 %v951, %v953
        %v955 = vrot.slane %v947, %v954
        %v957 = vunpack.c.l.s4 1966171168
        %v958 = vunpack.c.0.s8 %v957
        %v959 = vlaneseq
        %v960 = vshrl.u32 %v959, 7
        %v961 = vsub.s32 %v958, %v960
        %v962 = vrot.slane %v948, %v961
        %v963 = vcombine.low %v955, %v962
        %v968 = vpack.c.bf16 %v865, %v816
        %v969 = vpack.c.bf16 %v963, %v914
        %v972 = vunpack.c.l.b16 %v766
        %v973 = vunpack.c.l.b16 %v767
        %v974 = vpack.c.b16 %v973, %v972
        %vm976 = vcmask 130048
        %v978 = vsel %vm976, %v968, 0
        %v981 = vsel %vm976, %v969, 0
        %983 = vmatprep.subr.bf16.mxu0 0
        %984 = vmatpush1.bf16.msra.mxu0 %v974
        %985 = vmatprep.subr.bf16.mxu0 0
        %986 = vmatpush1.bf16.msra.mxu0 0
        %987 = vmatprep.subr.bf16.mxu0 0
        %988 = vmatpush1.bf16.msra.mxu0 0
        %989 = vmatprep.subr.bf16.mxu0 0
        %990 = vmatpush1.bf16.msra.mxu0 0
        %991 = vmatprep.subr.bf16.mxu0 0
        %992 = vmatpush1.bf16.msra.mxu0 0
        %993 = vmatprep.subr.bf16.mxu0 0
        %994 = vmatpush1.bf16.msra.mxu0 0
        %995 = vmatprep.subr.bf16.mxu0 0
        %996 = vmatpush1.bf16.msra.mxu0 0
        %997 = vmatprep.subr.bf16.mxu0 0
        %998 = vmatpush1.bf16.msra.mxu0 0
        %999 = vmatprep.subr.bf16.mxu0 0
        %1000 = vmatpush1.bf16.msra.mxu0 0
        %1001 = vmatprep.subr.bf16.mxu0 0
        %1002 = vmatpush1.bf16.msra.mxu0 0
        %1003 = vmatprep.subr.bf16.mxu0 0
        %1004 = vmatpush1.bf16.msra.mxu0 0
        %1005 = vmatprep.subr.bf16.mxu0 0
        %1006 = vmatpush1.bf16.msra.mxu0 0
        %1007 = vmatprep.subr.bf16.mxu0 0
        %1008 = vmatpush1.bf16.msra.mxu0 0
        %1009 = vmatprep.subr.bf16.mxu0 0
        %1010 = vmatpush1.bf16.msra.mxu0 0
        %1011 = vmatprep.subr.bf16.mxu0 0
        %1012 = vmatpush1.bf16.msra.mxu0 0
        %1013 = vmatprep.subr.bf16.mxu0 0
        %1014 = vmatpush1.bf16.msra.mxu0 0
        %1015 = vmatprep.mubr.bf16.mxu0 0
        %1016 = vmatmul.mubr.bf16.gmra.mrb[0].mxu0 %v978
        %v1017 = vpop.f32.mrb[0].mxu0
        %v1018 = vadd.f32 0.0, %v1017
        %v1019 = vpop.f32.mrb[0].mxu0
        %v1020 = vpop.f32.mrb[0].mxu0
        %v1021 = vadd.f32 0.0, %v1020
        %v1022 = vpop.f32.mrb[0].mxu0
        %1023 = vmatprep.mubr.bf16.mxu0 0
        %1024 = vmatmul.mubr.bf16.gmra.mrb[0].mxu0 %v981
        %v1025 = vpop.f32.mrb[0].mxu0
        %v1026 = vadd.f32 0.0, %v1025
        %v1027 = vpop.f32.mrb[0].mxu0
        %v1028 = vpop.f32.mrb[0].mxu0
        %v1029 = vadd.f32 0.0, %v1028
        %v1030 = vpop.f32.mrb[0].mxu0
        %1031 = vdwg.mxu0
        %v1032 = vadd.f32 %v300, %v1018
        %v1033 = vadd.f32 %v300, %v1021
        %v1034 = vadd.f32 %v300, %v1026
        %v1035 = vadd.f32 %v300, %v1029
        %v1036 = vld [vmem:[%s2 + $0x18] sm:$0xf]
        %v1037 = vld [vmem:[%s2 + $0x1c] sm:$0xf]
        %v1038 = vcombine.low %v487, %v495
        %v1039 = vcombine.low %v497, %v480
        %v1040 = vcombine.low %v496, %v498
        %v1041 = vcombine.low %v522, %v536
        %v1043 = vunpack.c.l.s4 1966171168
        %v1044 = vunpack.c.0.s8 %v1043
        %v1045 = vlaneseq
        %v1046 = vshrl.u32 %v1045, 7
        %v1047 = vsub.s32 %v1044, %v1046
        %v1048 = vrot.slane %v1038, %v1047
        %v1050 = vunpack.c.l.s4 1966171168
        %v1051 = vunpack.c.0.s8 %v1050
        %v1052 = vlaneseq
        %v1053 = vshrl.u32 %v1052, 7
        %v1054 = vsub.s32 %v1051, %v1053
        %v1055 = vrot.slane %v1039, %v1054
        %v1057 = vunpack.c.l.s4 1966171168
        %v1058 = vunpack.c.0.s8 %v1057
        %v1059 = vlaneseq
        %v1060 = vshrl.u32 %v1059, 7
        %v1061 = vsub.s32 %v1058, %v1060
        %v1062 = vrot.slane %v1040, %v1061
        %v1064 = vunpack.c.l.s4 1966171168
        %v1065 = vunpack.c.0.s8 %v1064
        %v1066 = vlaneseq
        %v1067 = vshrl.u32 %v1066, 7
        %v1068 = vsub.s32 %v1065, %v1067
        %v1069 = vrot.slane %v1041, %v1068
        %v1070 = vcombine.low %v1048, %v1055
        %v1071 = vcombine.low %v1062, %v1069
        %v1073 = vunpack.c.l.s4 1966171168
        %v1074 = vunpack.c.0.s8 %v1073
        %v1075 = vlaneseq
        %v1076 = vshrl.u32 %v1075, 7
        %v1077 = vsub.s32 %v1074, %v1076
        %v1078 = vrot.slane %v1070, %v1077
        %v1080 = vunpack.c.l.s4 1966171168
        %v1081 = vunpack.c.0.s8 %v1080
        %v1082 = vlaneseq
        %v1083 = vshrl.u32 %v1082, 7
        %v1084 = vsub.s32 %v1081, %v1083
        %v1085 = vrot.slane %v1071, %v1084
        %v1086 = vcombine.low %v1078, %v1085
        %v1087 = vcombine.low %v546, %v529
        %v1088 = vcombine.low %v543, %v545
        %v1089 = vcombine.low %v571, %v585
        %v1090 = vcombine.low %v593, %v595
        %v1092 = vunpack.c.l.s4 1966171168
        %v1093 = vunpack.c.0.s8 %v1092
        %v1094 = vlaneseq
        %v1095 = vshrl.u32 %v1094, 7
        %v1096 = vsub.s32 %v1093, %v1095
        %v1097 = vrot.slane %v1087, %v1096
        %v1099 = vunpack.c.l.s4 1966171168
        %v1100 = vunpack.c.0.s8 %v1099
        %v1101 = vlaneseq
        %v1102 = vshrl.u32 %v1101, 7
        %v1103 = vsub.s32 %v1100, %v1102
        %v1104 = vrot.slane %v1088, %v1103
        %v1106 = vunpack.c.l.s4 1966171168
        %v1107 = vunpack.c.0.s8 %v1106
        %v1108 = vlaneseq
        %v1109 = vshrl.u32 %v1108, 7
        %v1110 = vsub.s32 %v1107, %v1109
        %v1111 = vrot.slane %v1089, %v1110
        %v1113 = vunpack.c.l.s4 1966171168
        %v1114 = vunpack.c.0.s8 %v1113
        %v1115 = vlaneseq
        %v1116 = vshrl.u32 %v1115, 7
        %v1117 = vsub.s32 %v1114, %v1116
        %v1118 = vrot.slane %v1090, %v1117
        %v1119 = vcombine.low %v1097, %v1104
        %v1120 = vcombine.low %v1111, %v1118
        %v1122 = vunpack.c.l.s4 1966171168
        %v1123 = vunpack.c.0.s8 %v1122
        %v1124 = vlaneseq
        %v1125 = vshrl.u32 %v1124, 7
        %v1126 = vsub.s32 %v1123, %v1125
        %v1127 = vrot.slane %v1119, %v1126
        %v1129 = vunpack.c.l.s4 1966171168
        %v1130 = vunpack.c.0.s8 %v1129
        %v1131 = vlaneseq
        %v1132 = vshrl.u32 %v1131, 7
        %v1133 = vsub.s32 %v1130, %v1132
        %v1134 = vrot.slane %v1120, %v1133
        %v1135 = vcombine.low %v1127, %v1134
        %v1136 = vcombine.low %v642, %v644
        %v1137 = vcombine.low %v627, %v641
        %v1138 = vcombine.low %v645, %v669
        %v1139 = vcombine.low %v683, %v691
        %v1141 = vunpack.c.l.s4 1966171168
        %v1142 = vunpack.c.0.s8 %v1141
        %v1143 = vlaneseq
        %v1144 = vshrl.u32 %v1143, 7
        %v1145 = vsub.s32 %v1142, %v1144
        %v1146 = vrot.slane %v1136, %v1145
        %v1148 = vunpack.c.l.s4 1966171168
        %v1149 = vunpack.c.0.s8 %v1148
        %v1150 = vlaneseq
        %v1151 = vshrl.u32 %v1150, 7
        %v1152 = vsub.s32 %v1149, %v1151
        %v1153 = vrot.slane %v1137, %v1152
        %v1155 = vunpack.c.l.s4 1966171168
        %v1156 = vunpack.c.0.s8 %v1155
        %v1157 = vlaneseq
        %v1158 = vshrl.u32 %v1157, 7
        %v1159 = vsub.s32 %v1156, %v1158
        %v1160 = vrot.slane %v1138, %v1159
        %v1162 = vunpack.c.l.s4 1966171168
        %v1163 = vunpack.c.0.s8 %v1162
        %v1164 = vlaneseq
        %v1165 = vshrl.u32 %v1164, 7
        %v1166 = vsub.s32 %v1163, %v1165
        %v1167 = vrot.slane %v1139, %v1166
        %v1168 = vcombine.low %v1146, %v1153
        %v1169 = vcombine.low %v1160, %v1167
        %v1171 = vunpack.c.l.s4 1966171168
        %v1172 = vunpack.c.0.s8 %v1171
        %v1173 = vlaneseq
        %v1174 = vshrl.u32 %v1173, 7
        %v1175 = vsub.s32 %v1172, %v1174
        %v1176 = vrot.slane %v1168, %v1175
        %v1178 = vunpack.c.l.s4 1966171168
        %v1179 = vunpack.c.0.s8 %v1178
        %v1180 = vlaneseq
        %v1181 = vshrl.u32 %v1180, 7
        %v1182 = vsub.s32 %v1179, %v1181
        %v1183 = vrot.slane %v1169, %v1182
        %v1184 = vcombine.low %v1176, %v1183
        %v1185 = vcombine.low %v676, %v690
        %v1186 = vcombine.low %v692, %v694
        %v1187 = vcombine.low %v732, %v740
        %v1188 = vcombine.low %v742, %v725
        %v1190 = vunpack.c.l.s4 1966171168
        %v1191 = vunpack.c.0.s8 %v1190
        %v1192 = vlaneseq
        %v1193 = vshrl.u32 %v1192, 7
        %v1194 = vsub.s32 %v1191, %v1193
        %v1195 = vrot.slane %v1185, %v1194
        %v1197 = vunpack.c.l.s4 1966171168
        %v1198 = vunpack.c.0.s8 %v1197
        %v1199 = vlaneseq
        %v1200 = vshrl.u32 %v1199, 7
        %v1201 = vsub.s32 %v1198, %v1200
        %v1202 = vrot.slane %v1186, %v1201
        %v1204 = vunpack.c.l.s4 1966171168
        %v1205 = vunpack.c.0.s8 %v1204
        %v1206 = vlaneseq
        %v1207 = vshrl.u32 %v1206, 7
        %v1208 = vsub.s32 %v1205, %v1207
        %v1209 = vrot.slane %v1187, %v1208
        %v1211 = vunpack.c.l.s4 1966171168
        %v1212 = vunpack.c.0.s8 %v1211
        %v1213 = vlaneseq
        %v1214 = vshrl.u32 %v1213, 7
        %v1215 = vsub.s32 %v1212, %v1214
        %v1216 = vrot.slane %v1188, %v1215
        %v1217 = vcombine.low %v1195, %v1202
        %v1218 = vcombine.low %v1209, %v1216
        %v1220 = vunpack.c.l.s4 1966171168
        %v1221 = vunpack.c.0.s8 %v1220
        %v1222 = vlaneseq
        %v1223 = vshrl.u32 %v1222, 7
        %v1224 = vsub.s32 %v1221, %v1223
        %v1225 = vrot.slane %v1217, %v1224
        %v1227 = vunpack.c.l.s4 1966171168
        %v1228 = vunpack.c.0.s8 %v1227
        %v1229 = vlaneseq
        %v1230 = vshrl.u32 %v1229, 7
        %v1231 = vsub.s32 %v1228, %v1230
        %v1232 = vrot.slane %v1218, %v1231
        %v1233 = vcombine.low %v1225, %v1232
        %v1238 = vpack.c.bf16 %v1135, %v1086
        %v1239 = vpack.c.bf16 %v1233, %v1184
        %v1242 = vunpack.c.l.b16 %v1036
        %v1243 = vunpack.c.l.b16 %v1037
        %v1244 = vpack.c.b16 %v1243, %v1242
        %v1247 = vsel %vm976, %v1238, 0
        %v1250 = vsel %vm976, %v1239, 0
        %1252 = vmatprep.subr.bf16.mxu0 0
        %1253 = vmatpush1.bf16.msra.mxu0 %v1244
        %1254 = vmatprep.subr.bf16.mxu0 0
        %1255 = vmatpush1.bf16.msra.mxu0 0
        %1256 = vmatprep.subr.bf16.mxu0 0
        %1257 = vmatpush1.bf16.msra.mxu0 0
        %1258 = vmatprep.subr.bf16.mxu0 0
        %1259 = vmatpush1.bf16.msra.mxu0 0
        %1260 = vmatprep.subr.bf16.mxu0 0
        %1261 = vmatpush1.bf16.msra.mxu0 0
        %1262 = vmatprep.subr.bf16.mxu0 0
        %1263 = vmatpush1.bf16.msra.mxu0 0
        %1264 = vmatprep.subr.bf16.mxu0 0
        %1265 = vmatpush1.bf16.msra.mxu0 0
        %1266 = vmatprep.subr.bf16.mxu0 0
        %1267 = vmatpush1.bf16.msra.mxu0 0
        %1268 = vmatprep.subr.bf16.mxu0 0
        %1269 = vmatpush1.bf16.msra.mxu0 0
        %1270 = vmatprep.subr.bf16.mxu0 0
        %1271 = vmatpush1.bf16.msra.mxu0 0
        %1272 = vmatprep.subr.bf16.mxu0 0
        %1273 = vmatpush1.bf16.msra.mxu0 0
        %1274 = vmatprep.subr.bf16.mxu0 0
        %1275 = vmatpush1.bf16.msra.mxu0 0
        %1276 = vmatprep.subr.bf16.mxu0 0
        %1277 = vmatpush1.bf16.msra.mxu0 0
        %1278 = vmatprep.subr.bf16.mxu0 0
        %1279 = vmatpush1.bf16.msra.mxu0 0
        %1280 = vmatprep.subr.bf16.mxu0 0
        %1281 = vmatpush1.bf16.msra.mxu0 0
        %1282 = vmatprep.subr.bf16.mxu0 0
        %1283 = vmatpush1.bf16.msra.mxu0 0
        %1284 = vmatprep.mubr.bf16.mxu0 0
        %1285 = vmatmul.mubr.bf16.gmra.mrb[0].mxu0 %v1247
        %v1286 = vpop.f32.mrb[0].mxu0
        %v1287 = vadd.f32 0.0, %v1286
        %v1288 = vpop.f32.mrb[0].mxu0
        %v1289 = vpop.f32.mrb[0].mxu0
        %v1290 = vadd.f32 0.0, %v1289
        %v1291 = vpop.f32.mrb[0].mxu0
        %1292 = vmatprep.mubr.bf16.mxu0 0
        %1293 = vmatmul.mubr.bf16.gmra.mrb[0].mxu0 %v1250
        %v1294 = vpop.f32.mrb[0].mxu0
        %v1295 = vadd.f32 0.0, %v1294
        %v1296 = vpop.f32.mrb[0].mxu0
        %v1297 = vpop.f32.mrb[0].mxu0
        %v1298 = vadd.f32 0.0, %v1297
        %v1299 = vpop.f32.mrb[0].mxu0
        %1300 = vdwg.mxu0
        %v1301 = vadd.f32 %v1032, %v1287
        %v1302 = vadd.f32 %v1033, %v1290
        %v1303 = vadd.f32 %v1034, %v1295
        %v1304 = vadd.f32 %v1035, %v1298
        %v1305 = vld [vmem:[%s2 + $0x20] sm:$0xf]
        %v1306 = vld [vmem:[%s2 + $0x24] sm:$0xf]
        %v1307 = vcombine.low %v815, %v857
        %v1308 = vcombine.low %v578, %v592
        %v1309 = vcombine.low %v594, %v596
        %v1311 = vunpack.c.l.s4 1966171168
        %v1312 = vunpack.c.0.s8 %v1311
        %v1313 = vlaneseq
        %v1314 = vshrl.u32 %v1313, 7
        %v1315 = vsub.s32 %v1312, %v1314
        %v1316 = vrot.slane %v1308, %v1315
        %v1318 = vunpack.c.l.s4 1966171168
        %v1319 = vunpack.c.0.s8 %v1318
        %v1320 = vlaneseq
        %v1321 = vshrl.u32 %v1320, 7
        %v1322 = vsub.s32 %v1319, %v1321
        %v1323 = vrot.slane %v1309, %v1322
        %v1324 = vcombine.low %v1316, %v1323
        %v1326 = vunpack.c.l.s4 1966171168
        %v1327 = vunpack.c.0.s8 %v1326
        %v1328 = vlaneseq
        %v1329 = vshrl.u32 %v1328, 7
        %v1330 = vsub.s32 %v1327, %v1329
        %v1331 = vrot.slane %v1324, %v1330
        %v1332 = vcombine.low %v864, %v1331
        %v1333 = vcombine.low %v913, %v955
        %v1334 = vcombine.low %v739, %v741
        %v1335 = vcombine.low %v743, %v758
        %v1337 = vunpack.c.l.s4 1966171168
        %v1338 = vunpack.c.0.s8 %v1337
        %v1339 = vlaneseq
        %v1340 = vshrl.u32 %v1339, 7
        %v1341 = vsub.s32 %v1338, %v1340
        %v1342 = vrot.slane %v1334, %v1341
        %v1344 = vunpack.c.l.s4 1966171168
        %v1345 = vunpack.c.0.s8 %v1344
        %v1346 = vlaneseq
        %v1347 = vshrl.u32 %v1346, 7
        %v1348 = vsub.s32 %v1345, %v1347
        %v1349 = vrot.slane %v1335, %v1348
        %v1350 = vcombine.low %v1342, %v1349
        %v1352 = vunpack.c.l.s4 1966171168
        %v1353 = vunpack.c.0.s8 %v1352
        %v1354 = vlaneseq
        %v1355 = vshrl.u32 %v1354, 7
        %v1356 = vsub.s32 %v1353, %v1355
        %v1357 = vrot.slane %v1350, %v1356
        %v1358 = vcombine.low %v962, %v1357
        %v1363 = vpack.c.bf16 %v1332, %v1307
        %v1364 = vpack.c.bf16 %v1358, %v1333
        %v1367 = vunpack.c.l.b16 %v1305
        %v1368 = vunpack.c.l.b16 %v1306
        %v1369 = vpack.c.b16 %v1368, %v1367
        %v1372 = vsel %vm976, %v1363, 0
        %v1375 = vsel %vm976, %v1364, 0
        %1377 = vmatprep.subr.bf16.mxu0 0
        %1378 = vmatpush1.bf16.msra.mxu0 %v1369
        %1379 = vmatprep.subr.bf16.mxu0 0
        %1380 = vmatpush1.bf16.msra.mxu0 0
        %1381 = vmatprep.subr.bf16.mxu0 0
        %1382 = vmatpush1.bf16.msra.mxu0 0
        %1383 = vmatprep.subr.bf16.mxu0 0
        %1384 = vmatpush1.bf16.msra.mxu0 0
        %1385 = vmatprep.subr.bf16.mxu0 0
        %1386 = vmatpush1.bf16.msra.mxu0 0
        %1387 = vmatprep.subr.bf16.mxu0 0
        %1388 = vmatpush1.bf16.msra.mxu0 0
        %1389 = vmatprep.subr.bf16.mxu0 0
        %1390 = vmatpush1.bf16.msra.mxu0 0
        %1391 = vmatprep.subr.bf16.mxu0 0
        %1392 = vmatpush1.bf16.msra.mxu0 0
        %1393 = vmatprep.subr.bf16.mxu0 0
        %1394 = vmatpush1.bf16.msra.mxu0 0
        %1395 = vmatprep.subr.bf16.mxu0 0
        %1396 = vmatpush1.bf16.msra.mxu0 0
        %1397 = vmatprep.subr.bf16.mxu0 0
        %1398 = vmatpush1.bf16.msra.mxu0 0
        %1399 = vmatprep.subr.bf16.mxu0 0
        %1400 = vmatpush1.bf16.msra.mxu0 0
        %1401 = vmatprep.subr.bf16.mxu0 0
        %1402 = vmatpush1.bf16.msra.mxu0 0
        %1403 = vmatprep.subr.bf16.mxu0 0
        %1404 = vmatpush1.bf16.msra.mxu0 0
        %1405 = vmatprep.subr.bf16.mxu0 0
        %1406 = vmatpush1.bf16.msra.mxu0 0
        %1407 = vmatprep.subr.bf16.mxu0 0
        %1408 = vmatpush1.bf16.msra.mxu0 0
        %1409 = vmatprep.mubr.bf16.mxu0 0
        %1410 = vmatmul.mubr.bf16.gmra.mrb[0].mxu0 %v1372
        %v1411 = vpop.f32.mrb[0].mxu0
        %v1412 = vadd.f32 0.0, %v1411
        %v1413 = vpop.f32.mrb[0].mxu0
        %v1414 = vpop.f32.mrb[0].mxu0
        %v1415 = vadd.f32 0.0, %v1414
        %v1416 = vpop.f32.mrb[0].mxu0
        %1417 = vmatprep.mubr.bf16.mxu0 0
        %1418 = vmatmul.mubr.bf16.gmra.mrb[0].mxu0 %v1375
        %v1419 = vpop.f32.mrb[0].mxu0
        %v1420 = vadd.f32 0.0, %v1419
        %v1421 = vpop.f32.mrb[0].mxu0
        %v1422 = vpop.f32.mrb[0].mxu0
        %v1423 = vadd.f32 0.0, %v1422
        %v1424 = vpop.f32.mrb[0].mxu0
        %1425 = vdwg.mxu0
        %v1426 = vadd.f32 %v1301, %v1412
        %v1427 = vadd.f32 %v1302, %v1415
        %v1428 = vadd.f32 %v1303, %v1420
        %v1429 = vadd.f32 %v1304, %v1423
        %v1430 = vld [vmem:[%s2 + $0x28] sm:$0xf]
        %v1431 = vld [vmem:[%s2 + $0x2c] sm:$0xf]
        %v1432 = vcombine.low %v1085, %v1127
        %v1433 = vcombine.low %v592, %v594
        %v1434 = vcombine.low %v596, %v620
        %v1436 = vunpack.c.l.s4 1966171168
        %v1437 = vunpack.c.0.s8 %v1436
        %v1438 = vlaneseq
        %v1439 = vshrl.u32 %v1438, 7
        %v1440 = vsub.s32 %v1437, %v1439
        %v1441 = vrot.slane %v1433, %v1440
        %v1443 = vunpack.c.l.s4 1966171168
        %v1444 = vunpack.c.0.s8 %v1443
        %v1445 = vlaneseq
        %v1446 = vshrl.u32 %v1445, 7
        %v1447 = vsub.s32 %v1444, %v1446
        %v1448 = vrot.slane %v1434, %v1447
        %v1449 = vcombine.low %v1441, %v1448
        %v1451 = vunpack.c.l.s4 1966171168
        %v1452 = vunpack.c.0.s8 %v1451
        %v1453 = vlaneseq
        %v1454 = vshrl.u32 %v1453, 7
        %v1455 = vsub.s32 %v1452, %v1454
        %v1456 = vrot.slane %v1449, %v1455
        %v1457 = vcombine.low %v1134, %v1456
        %v1458 = vcombine.low %v1183, %v1225
        %v1459 = vcombine.low %v741, %v743
        %v1460 = vcombine.low %v758, %v765
        %v1462 = vunpack.c.l.s4 1966171168
        %v1463 = vunpack.c.0.s8 %v1462
        %v1464 = vlaneseq
        %v1465 = vshrl.u32 %v1464, 7
        %v1466 = vsub.s32 %v1463, %v1465
        %v1467 = vrot.slane %v1459, %v1466
        %v1469 = vunpack.c.l.s4 1966171168
        %v1470 = vunpack.c.0.s8 %v1469
        %v1471 = vlaneseq
        %v1472 = vshrl.u32 %v1471, 7
        %v1473 = vsub.s32 %v1470, %v1472
        %v1474 = vrot.slane %v1460, %v1473
        %v1475 = vcombine.low %v1467, %v1474
        %v1477 = vunpack.c.l.s4 1966171168
        %v1478 = vunpack.c.0.s8 %v1477
        %v1479 = vlaneseq
        %v1480 = vshrl.u32 %v1479, 7
        %v1481 = vsub.s32 %v1478, %v1480
        %v1482 = vrot.slane %v1475, %v1481
        %v1483 = vcombine.low %v1232, %v1482
        %v1488 = vpack.c.bf16 %v1457, %v1432
        %v1489 = vpack.c.bf16 %v1483, %v1458
        %v1492 = vunpack.c.l.b16 %v1430
        %v1493 = vunpack.c.l.b16 %v1431
        %v1494 = vpack.c.b16 %v1493, %v1492
        %v1497 = vsel %vm976, %v1488, 0
        %v1500 = vsel %vm976, %v1489, 0
        %1502 = vmatprep.subr.bf16.mxu0 0
        %1503 = vmatpush1.bf16.msra.mxu0 %v1494
        %1504 = vmatprep.subr.bf16.mxu0 0
        %1505 = vmatpush1.bf16.msra.mxu0 0
        %1506 = vmatprep.subr.bf16.mxu0 0
        %1507 = vmatpush1.bf16.msra.mxu0 0
        %1508 = vmatprep.subr.bf16.mxu0 0
        %1509 = vmatpush1.bf16.msra.mxu0 0
        %1510 = vmatprep.subr.bf16.mxu0 0
        %1511 = vmatpush1.bf16.msra.mxu0 0
        %1512 = vmatprep.subr.bf16.mxu0 0
        %1513 = vmatpush1.bf16.msra.mxu0 0
        %1514 = vmatprep.subr.bf16.mxu0 0
        %1515 = vmatpush1.bf16.msra.mxu0 0
        %1516 = vmatprep.subr.bf16.mxu0 0
        %1517 = vmatpush1.bf16.msra.mxu0 0
        %1518 = vmatprep.subr.bf16.mxu0 0
        %1519 = vmatpush1.bf16.msra.mxu0 0
        %1520 = vmatprep.subr.bf16.mxu0 0
        %1521 = vmatpush1.bf16.msra.mxu0 0
        %1522 = vmatprep.subr.bf16.mxu0 0
        %1523 = vmatpush1.bf16.msra.mxu0 0
        %1524 = vmatprep.subr.bf16.mxu0 0
        %1525 = vmatpush1.bf16.msra.mxu0 0
        %1526 = vmatprep.subr.bf16.mxu0 0
        %1527 = vmatpush1.bf16.msra.mxu0 0
        %1528 = vmatprep.subr.bf16.mxu0 0
        %1529 = vmatpush1.bf16.msra.mxu0 0
        %1530 = vmatprep.subr.bf16.mxu0 0
        %1531 = vmatpush1.bf16.msra.mxu0 0
        %1532 = vmatprep.subr.bf16.mxu0 0
        %1533 = vmatpush1.bf16.msra.mxu0 0
        %1534 = vmatprep.mubr.bf16.mxu0 0
        %1535 = vmatmul.mubr.bf16.gmra.mrb[0].mxu0 %v1497
        %v1536 = vpop.f32.mrb[0].mxu0
        %v1537 = vadd.f32 0.0, %v1536
        %v1538 = vpop.f32.mrb[0].mxu0
        %v1539 = vpop.f32.mrb[0].mxu0
        %v1540 = vadd.f32 0.0, %v1539
        %v1541 = vpop.f32.mrb[0].mxu0
        %1542 = vmatprep.mubr.bf16.mxu0 0
        %1543 = vmatmul.mubr.bf16.gmra.mrb[0].mxu0 %v1500
        %v1544 = vpop.f32.mrb[0].mxu0
        %v1545 = vadd.f32 0.0, %v1544
        %v1546 = vpop.f32.mrb[0].mxu0
        %v1547 = vpop.f32.mrb[0].mxu0
        %v1548 = vadd.f32 0.0, %v1547
        %v1549 = vpop.f32.mrb[0].mxu0
        %1550 = vdwg.mxu0
        %v1551 = vadd.f32 %v1426, %v1537
        %v1552 = vadd.f32 %v1427, %v1540
        %v1553 = vadd.f32 %v1428, %v1545
        %v1554 = vadd.f32 %v1429, %v1548
        %vm1555 = vcmp.gt.f32.partialorder %v1551, 0.0
        %vm1556 = vcmp.gt.f32.partialorder %v1552, 0.0
        %vm1557 = vcmp.gt.f32.partialorder %v1553, 0.0
        %vm1558 = vcmp.gt.f32.partialorder %v1554, 0.0
        %v1559 = vmul.f32 %v1551, 0.01
        %v1560 = vmul.f32 %v1552, 0.01
        %v1561 = vmul.f32 %v1553, 0.01
        %v1562 = vmul.f32 %v1554, 0.01
        %v1563 = vsel %vm1555, %v1551, %v1559
        %v1564 = vsel %vm1556, %v1552, %v1560
        %v1565 = vsel %vm1557, %v1553, %v1561
        %v1566 = vsel %vm1558, %v1554, %v1562
        %v1571 = vcombine.high %v1563, %v1563
        %v1572 = vcombine.high %v1564, %v1564
        %v1573 = vcombine.high %v1565, %v1565
        %v1574 = vcombine.high %v1566, %v1566
        %v1576 = vunpack.c.l.s4 1966171168
        %v1577 = vunpack.c.0.s8 %v1576
        %v1578 = vlaneseq
        %v1579 = vshrl.u32 %v1578, 7
        %v1580 = vsub.s32 %v1577, %v1579
        %v1581 = vrot.slane %v1563, %v1580
        %v1582 = vcombine.high %v1581, %v1581
        %v1584 = vunpack.c.l.s4 1966171168
        %v1585 = vunpack.c.0.s8 %v1584
        %v1586 = vlaneseq
        %v1587 = vshrl.u32 %v1586, 7
        %v1588 = vsub.s32 %v1585, %v1587
        %v1589 = vrot.slane %v1581, %v1588
        %v1591 = vunpack.c.l.s4 1966171168
        %v1592 = vunpack.c.0.s8 %v1591
        %v1593 = vlaneseq
        %v1594 = vshrl.u32 %v1593, 7
        %v1595 = vsub.s32 %v1592, %v1594
        %v1596 = vrot.slane %v1582, %v1595
        %v1597 = vcombine.high %v1589, %v1589
        %v1599 = vunpack.c.l.s4 1966171168
        %v1600 = vunpack.c.0.s8 %v1599
        %v1601 = vlaneseq
        %v1602 = vshrl.u32 %v1601, 7
        %v1603 = vsub.s32 %v1600, %v1602
        %v1604 = vrot.slane %v1571, %v1603
        %v1605 = vcombine.high %v1604, %v1604
        %v1607 = vunpack.c.l.s4 1966171168
        %v1608 = vunpack.c.0.s8 %v1607
        %v1609 = vlaneseq
        %v1610 = vshrl.u32 %v1609, 7
        %v1611 = vsub.s32 %v1608, %v1610
        %v1612 = vrot.slane %v1604, %v1611
        %v1614 = vunpack.c.l.s4 1966171168
        %v1615 = vunpack.c.0.s8 %v1614
        %v1616 = vlaneseq
        %v1617 = vshrl.u32 %v1616, 7
        %v1618 = vsub.s32 %v1615, %v1617
        %v1619 = vrot.slane %v1605, %v1618
        %v1620 = vcombine.high %v1612, %v1612
        %v1622 = vunpack.c.l.s4 1966171168
        %v1623 = vunpack.c.0.s8 %v1622
        %v1624 = vlaneseq
        %v1625 = vshrl.u32 %v1624, 7
        %v1626 = vsub.s32 %v1623, %v1625
        %v1627 = vrot.slane %v1564, %v1626
        %v1628 = vcombine.high %v1627, %v1627
        %v1630 = vunpack.c.l.s4 1966171168
        %v1631 = vunpack.c.0.s8 %v1630
        %v1632 = vlaneseq
        %v1633 = vshrl.u32 %v1632, 7
        %v1634 = vsub.s32 %v1631, %v1633
        %v1635 = vrot.slane %v1627, %v1634
        %v1637 = vunpack.c.l.s4 1966171168
        %v1638 = vunpack.c.0.s8 %v1637
        %v1639 = vlaneseq
        %v1640 = vshrl.u32 %v1639, 7
        %v1641 = vsub.s32 %v1638, %v1640
        %v1642 = vrot.slane %v1628, %v1641
        %v1643 = vcombine.high %v1635, %v1635
        %v1645 = vunpack.c.l.s4 1966171168
        %v1646 = vunpack.c.0.s8 %v1645
        %v1647 = vlaneseq
        %v1648 = vshrl.u32 %v1647, 7
        %v1649 = vsub.s32 %v1646, %v1648
        %v1650 = vrot.slane %v1565, %v1649
        %v1651 = vcombine.high %v1650, %v1650
        %v1653 = vunpack.c.l.s4 1966171168
        %v1654 = vunpack.c.0.s8 %v1653
        %v1655 = vlaneseq
        %v1656 = vshrl.u32 %v1655, 7
        %v1657 = vsub.s32 %v1654, %v1656
        %v1658 = vrot.slane %v1650, %v1657
        %v1660 = vunpack.c.l.s4 1966171168
        %v1661 = vunpack.c.0.s8 %v1660
        %v1662 = vlaneseq
        %v1663 = vshrl.u32 %v1662, 7
        %v1664 = vsub.s32 %v1661, %v1663
        %v1665 = vrot.slane %v1651, %v1664
        %v1666 = vcombine.high %v1658, %v1658
        %v1668 = vunpack.c.l.s4 1966171168
        %v1669 = vunpack.c.0.s8 %v1668
        %v1670 = vlaneseq
        %v1671 = vshrl.u32 %v1670, 7
        %v1672 = vsub.s32 %v1669, %v1671
        %v1673 = vrot.slane %v1573, %v1672
        %v1674 = vcombine.high %v1673, %v1673
        %v1676 = vunpack.c.l.s4 1966171168
        %v1677 = vunpack.c.0.s8 %v1676
        %v1678 = vlaneseq
        %v1679 = vshrl.u32 %v1678, 7
        %v1680 = vsub.s32 %v1677, %v1679
        %v1681 = vrot.slane %v1673, %v1680
        %v1683 = vunpack.c.l.s4 1966171168
        %v1684 = vunpack.c.0.s8 %v1683
        %v1685 = vlaneseq
        %v1686 = vshrl.u32 %v1685, 7
        %v1687 = vsub.s32 %v1684, %v1686
        %v1688 = vrot.slane %v1674, %v1687
        %v1689 = vcombine.high %v1681, %v1681
        %v1691 = vunpack.c.l.s4 1966171168
        %v1692 = vunpack.c.0.s8 %v1691
        %v1693 = vlaneseq
        %v1694 = vshrl.u32 %v1693, 7
        %v1695 = vsub.s32 %v1692, %v1694
        %v1696 = vrot.slane %v1566, %v1695
        %v1697 = vcombine.high %v1696, %v1696
        %v1699 = vunpack.c.l.s4 1966171168
        %v1700 = vunpack.c.0.s8 %v1699
        %v1701 = vlaneseq
        %v1702 = vshrl.u32 %v1701, 7
        %v1703 = vsub.s32 %v1700, %v1702
        %v1704 = vrot.slane %v1696, %v1703
        %v1706 = vunpack.c.l.s4 1966171168
        %v1707 = vunpack.c.0.s8 %v1706
        %v1708 = vlaneseq
        %v1709 = vshrl.u32 %v1708, 7
        %v1710 = vsub.s32 %v1707, %v1709
        %v1711 = vrot.slane %v1697, %v1710
        %v1712 = vcombine.high %v1704, %v1704
        %v1713 = vld [vmem:[%s2 + $0x30] sm:$0xf]
        %v1714 = vld [vmem:[%s2 + $0x34] sm:$0xf]
        %v1715 = vld [vmem:[%s2 + $0x38] sm:$0xf]
        %v1716 = vld [vmem:[%s2 + $0x3c] sm:$0xf]
        %v1717 = vcombine.low %v1589, %v1596
        %v1718 = vcombine.low %v1597, %v1612
        %v1719 = vcombine.low %v1619, %v1620
        %v1720 = vcombine.low %v1635, %v1642
        %v1722 = vunpack.c.l.s4 1966171168
        %v1723 = vunpack.c.0.s8 %v1722
        %v1724 = vlaneseq
        %v1725 = vshrl.u32 %v1724, 7
        %v1726 = vsub.s32 %v1723, %v1725
        %v1727 = vrot.slane %v1717, %v1726
        %v1729 = vunpack.c.l.s4 1966171168
        %v1730 = vunpack.c.0.s8 %v1729
        %v1731 = vlaneseq
        %v1732 = vshrl.u32 %v1731, 7
        %v1733 = vsub.s32 %v1730, %v1732
        %v1734 = vrot.slane %v1718, %v1733
        %v1736 = vunpack.c.l.s4 1966171168
        %v1737 = vunpack.c.0.s8 %v1736
        %v1738 = vlaneseq
        %v1739 = vshrl.u32 %v1738, 7
        %v1740 = vsub.s32 %v1737, %v1739
        %v1741 = vrot.slane %v1719, %v1740
        %v1743 = vunpack.c.l.s4 1966171168
        %v1744 = vunpack.c.0.s8 %v1743
        %v1745 = vlaneseq
        %v1746 = vshrl.u32 %v1745, 7
        %v1747 = vsub.s32 %v1744, %v1746
        %v1748 = vrot.slane %v1720, %v1747
        %v1749 = vcombine.low %v1727, %v1734
        %v1750 = vcombine.low %v1741, %v1748
        %v1752 = vunpack.c.l.s4 1966171168
        %v1753 = vunpack.c.0.s8 %v1752
        %v1754 = vlaneseq
        %v1755 = vshrl.u32 %v1754, 7
        %v1756 = vsub.s32 %v1753, %v1755
        %v1757 = vrot.slane %v1749, %v1756
        %v1759 = vunpack.c.l.s4 1966171168
        %v1760 = vunpack.c.0.s8 %v1759
        %v1761 = vlaneseq
        %v1762 = vshrl.u32 %v1761, 7
        %v1763 = vsub.s32 %v1760, %v1762
        %v1764 = vrot.slane %v1750, %v1763
        %v1765 = vcombine.low %v1757, %v1764
        %v1766 = vcombine.low %v1643, %v1658
        %v1767 = vcombine.low %v1665, %v1666
        %v1768 = vcombine.low %v1681, %v1688
        %v1769 = vcombine.low %v1689, %v1704
        %v1771 = vunpack.c.l.s4 1966171168
        %v1772 = vunpack.c.0.s8 %v1771
        %v1773 = vlaneseq
        %v1774 = vshrl.u32 %v1773, 7
        %v1775 = vsub.s32 %v1772, %v1774
        %v1776 = vrot.slane %v1766, %v1775
        %v1778 = vunpack.c.l.s4 1966171168
        %v1779 = vunpack.c.0.s8 %v1778
        %v1780 = vlaneseq
        %v1781 = vshrl.u32 %v1780, 7
        %v1782 = vsub.s32 %v1779, %v1781
        %v1783 = vrot.slane %v1767, %v1782
        %v1785 = vunpack.c.l.s4 1966171168
        %v1786 = vunpack.c.0.s8 %v1785
        %v1787 = vlaneseq
        %v1788 = vshrl.u32 %v1787, 7
        %v1789 = vsub.s32 %v1786, %v1788
        %v1790 = vrot.slane %v1768, %v1789
        %v1792 = vunpack.c.l.s4 1966171168
        %v1793 = vunpack.c.0.s8 %v1792
        %v1794 = vlaneseq
        %v1795 = vshrl.u32 %v1794, 7
        %v1796 = vsub.s32 %v1793, %v1795
        %v1797 = vrot.slane %v1769, %v1796
        %v1798 = vcombine.low %v1776, %v1783
        %v1799 = vcombine.low %v1790, %v1797
        %v1801 = vunpack.c.l.s4 1966171168
        %v1802 = vunpack.c.0.s8 %v1801
        %v1803 = vlaneseq
        %v1804 = vshrl.u32 %v1803, 7
        %v1805 = vsub.s32 %v1802, %v1804
        %v1806 = vrot.slane %v1798, %v1805
        %v1808 = vunpack.c.l.s4 1966171168
        %v1809 = vunpack.c.0.s8 %v1808
        %v1810 = vlaneseq
        %v1811 = vshrl.u32 %v1810, 7
        %v1812 = vsub.s32 %v1809, %v1811
        %v1813 = vrot.slane %v1799, %v1812
        %v1814 = vcombine.low %v1806, %v1813
        %v1815 = vcombine.low %v1711, %v1712
        %v1817 = vunpack.c.l.s4 1966171168
        %v1818 = vunpack.c.0.s8 %v1817
        %v1819 = vlaneseq
        %v1820 = vshrl.u32 %v1819, 7
        %v1821 = vsub.s32 %v1818, %v1820
        %v1822 = vrot.slane %v1815, %v1821
        %v1824 = vunpack.c.l.s4 1966171168
        %v1825 = vunpack.c.0.s8 %v1824
        %v1826 = vlaneseq
        %v1827 = vshrl.u32 %v1826, 7
        %v1828 = vsub.s32 %v1825, %v1827
        %v1829 = vrot.slane %v1822, %v1828
        %v1833 = vpack.c.bf16 %v1814, %v1765
        %v1834 = vpack.c.bf16 %v1829, %v1829
        %v1839 = vunpack.c.l.b16 %v1713
        %v1840 = vunpack.c.l.b16 %v1714
        %v1841 = vunpack.c.l.b16 %v1715
        %v1842 = vunpack.c.l.b16 %v1716
        %v1843 = vpack.c.b16 %v1840, %v1839
        %v1844 = vpack.c.b16 %v1842, %v1841
        %v1848 = vsel %vm345, %v1833, 0
        %v1851 = vsel %vm345, %v1834, 0
        %1853 = vmatprep.subr.bf16.mxu0 0
        %1854 = vmatpush1.bf16.msra.mxu0 %v1843
        %1855 = vmatprep.subr.bf16.mxu0 0
        %1856 = vmatpush1.bf16.msra.mxu0 %v1844
        %1857 = vmatprep.subr.bf16.mxu0 0
        %1858 = vmatpush1.bf16.msra.mxu0 0
        %1859 = vmatprep.subr.bf16.mxu0 0
        %1860 = vmatpush1.bf16.msra.mxu0 0
        %1861 = vmatprep.subr.bf16.mxu0 0
        %1862 = vmatpush1.bf16.msra.mxu0 0
        %1863 = vmatprep.subr.bf16.mxu0 0
        %1864 = vmatpush1.bf16.msra.mxu0 0
        %1865 = vmatprep.subr.bf16.mxu0 0
        %1866 = vmatpush1.bf16.msra.mxu0 0
        %1867 = vmatprep.subr.bf16.mxu0 0
        %1868 = vmatpush1.bf16.msra.mxu0 0
        %1869 = vmatprep.subr.bf16.mxu0 0
        %1870 = vmatpush1.bf16.msra.mxu0 0
        %1871 = vmatprep.subr.bf16.mxu0 0
        %1872 = vmatpush1.bf16.msra.mxu0 0
        %1873 = vmatprep.subr.bf16.mxu0 0
        %1874 = vmatpush1.bf16.msra.mxu0 0
        %1875 = vmatprep.subr.bf16.mxu0 0
        %1876 = vmatpush1.bf16.msra.mxu0 0
        %1877 = vmatprep.subr.bf16.mxu0 0
        %1878 = vmatpush1.bf16.msra.mxu0 0
        %1879 = vmatprep.subr.bf16.mxu0 0
        %1880 = vmatpush1.bf16.msra.mxu0 0
        %1881 = vmatprep.subr.bf16.mxu0 0
        %1882 = vmatpush1.bf16.msra.mxu0 0
        %1883 = vmatprep.subr.bf16.mxu0 0
        %1884 = vmatpush1.bf16.msra.mxu0 0
        %1885 = vmatprep.mubr.bf16.mxu0 0
        %1886 = vmatmul.mubr.bf16.gmra.mrb[0].mxu0 %v1848
        %v1887 = vpop.f32.mrb[0].mxu0
        %v1888 = vadd.f32 0.0, %v1887
        %v1889 = vpop.f32.mrb[0].mxu0
        %v1890 = vpop.f32.mrb[0].mxu0
        %v1891 = vadd.f32 0.0, %v1890
        %v1892 = vpop.f32.mrb[0].mxu0
        %1893 = vmatprep.mubr.bf16.mxu0 0
        %1894 = vmatmul.mubr.bf16.gmra.mrb[0].mxu0 %v1851
        %v1895 = vpop.f32.mrb[0].mxu0
        %v1896 = vadd.f32 0.0, %v1895
        %v1897 = vpop.f32.mrb[0].mxu0
        %v1898 = vpop.f32.mrb[0].mxu0
        %v1899 = vpop.f32.mrb[0].mxu0
        %1900 = vdwg.mxu0
        %v1901 = vadd.f32 %v301, %v1888
        %v1902 = vadd.f32 %v301, %v1891
        %v1903 = vadd.f32 %v301, %v1896
        %v1904 = vcombine.high %v1596, %v1596
        %v1905 = vcombine.high %v1619, %v1619
        %v1906 = vcombine.high %v1642, %v1642
        %v1907 = vcombine.high %v1665, %v1665
        %v1908 = vcombine.high %v1688, %v1688
        %v1909 = vcombine.high %v1711, %v1711
        %v1910 = vld [vmem:[%s2 + $0x40] sm:$0xf]
        %v1911 = vld [vmem:[%s2 + $0x44] sm:$0xf]
        %v1912 = vld [vmem:[%s2 + $0x48] sm:$0xf]
        %v1913 = vld [vmem:[%s2 + $0x4c] sm:$0xf]
        %v1914 = vcombine.low %v1596, %v1597
        %v1915 = vcombine.low %v1904, %v1619
        %v1916 = vcombine.low %v1620, %v1905
        %v1917 = vcombine.low %v1642, %v1643
        %v1919 = vunpack.c.l.s4 1966171168
        %v1920 = vunpack.c.0.s8 %v1919
        %v1921 = vlaneseq
        %v1922 = vshrl.u32 %v1921, 7
        %v1923 = vsub.s32 %v1920, %v1922
        %v1924 = vrot.slane %v1914, %v1923
        %v1926 = vunpack.c.l.s4 1966171168
        %v1927 = vunpack.c.0.s8 %v1926
        %v1928 = vlaneseq
        %v1929 = vshrl.u32 %v1928, 7
        %v1930 = vsub.s32 %v1927, %v1929
        %v1931 = vrot.slane %v1915, %v1930
        %v1933 = vunpack.c.l.s4 1966171168
        %v1934 = vunpack.c.0.s8 %v1933
        %v1935 = vlaneseq
        %v1936 = vshrl.u32 %v1935, 7
        %v1937 = vsub.s32 %v1934, %v1936
        %v1938 = vrot.slane %v1916, %v1937
        %v1940 = vunpack.c.l.s4 1966171168
        %v1941 = vunpack.c.0.s8 %v1940
        %v1942 = vlaneseq
        %v1943 = vshrl.u32 %v1942, 7
        %v1944 = vsub.s32 %v1941, %v1943
        %v1945 = vrot.slane %v1917, %v1944
        %v1946 = vcombine.low %v1924, %v1931
        %v1947 = vcombine.low %v1938, %v1945
        %v1949 = vunpack.c.l.s4 1966171168
        %v1950 = vunpack.c.0.s8 %v1949
        %v1951 = vlaneseq
        %v1952 = vshrl.u32 %v1951, 7
        %v1953 = vsub.s32 %v1950, %v1952
        %v1954 = vrot.slane %v1946, %v1953
        %v1956 = vunpack.c.l.s4 1966171168
        %v1957 = vunpack.c.0.s8 %v1956
        %v1958 = vlaneseq
        %v1959 = vshrl.u32 %v1958, 7
        %v1960 = vsub.s32 %v1957, %v1959
        %v1961 = vrot.slane %v1947, %v1960
        %v1962 = vcombine.low %v1954, %v1961
        %v1963 = vcombine.low %v1906, %v1665
        %v1964 = vcombine.low %v1666, %v1907
        %v1965 = vcombine.low %v1688, %v1689
        %v1966 = vcombine.low %v1908, %v1711
        %v1968 = vunpack.c.l.s4 1966171168
        %v1969 = vunpack.c.0.s8 %v1968
        %v1970 = vlaneseq
        %v1971 = vshrl.u32 %v1970, 7
        %v1972 = vsub.s32 %v1969, %v1971
        %v1973 = vrot.slane %v1963, %v1972
        %v1975 = vunpack.c.l.s4 1966171168
        %v1976 = vunpack.c.0.s8 %v1975
        %v1977 = vlaneseq
        %v1978 = vshrl.u32 %v1977, 7
        %v1979 = vsub.s32 %v1976, %v1978
        %v1980 = vrot.slane %v1964, %v1979
        %v1982 = vunpack.c.l.s4 1966171168
        %v1983 = vunpack.c.0.s8 %v1982
        %v1984 = vlaneseq
        %v1985 = vshrl.u32 %v1984, 7
        %v1986 = vsub.s32 %v1983, %v1985
        %v1987 = vrot.slane %v1965, %v1986
        %v1989 = vunpack.c.l.s4 1966171168
        %v1990 = vunpack.c.0.s8 %v1989
        %v1991 = vlaneseq
        %v1992 = vshrl.u32 %v1991, 7
        %v1993 = vsub.s32 %v1990, %v1992
        %v1994 = vrot.slane %v1966, %v1993
        %v1995 = vcombine.low %v1973, %v1980
        %v1996 = vcombine.low %v1987, %v1994
        %v1998 = vunpack.c.l.s4 1966171168
        %v1999 = vunpack.c.0.s8 %v1998
        %v2000 = vlaneseq
        %v2001 = vshrl.u32 %v2000, 7
        %v2002 = vsub.s32 %v1999, %v2001
        %v2003 = vrot.slane %v1995, %v2002
        %v2005 = vunpack.c.l.s4 1966171168
        %v2006 = vunpack.c.0.s8 %v2005
        %v2007 = vlaneseq
        %v2008 = vshrl.u32 %v2007, 7
        %v2009 = vsub.s32 %v2006, %v2008
        %v2010 = vrot.slane %v1996, %v2009
        %v2011 = vcombine.low %v2003, %v2010
        %v2012 = vcombine.low %v1712, %v1909
        %v2014 = vunpack.c.l.s4 1966171168
        %v2015 = vunpack.c.0.s8 %v2014
        %v2016 = vlaneseq
        %v2017 = vshrl.u32 %v2016, 7
        %v2018 = vsub.s32 %v2015, %v2017
        %v2019 = vrot.slane %v2012, %v2018
        %v2021 = vunpack.c.l.s4 1966171168
        %v2022 = vunpack.c.0.s8 %v2021
        %v2023 = vlaneseq
        %v2024 = vshrl.u32 %v2023, 7
        %v2025 = vsub.s32 %v2022, %v2024
        %v2026 = vrot.slane %v2019, %v2025
        %v2030 = vpack.c.bf16 %v2011, %v1962
        %v2031 = vpack.c.bf16 %v2026, %v2026
        %v2036 = vunpack.c.l.b16 %v1910
        %v2037 = vunpack.c.l.b16 %v1911
        %v2038 = vunpack.c.l.b16 %v1912
        %v2039 = vunpack.c.l.b16 %v1913
        %v2040 = vpack.c.b16 %v2037, %v2036
        %v2041 = vpack.c.b16 %v2039, %v2038
        %v2045 = vsel %vm345, %v2030, 0
        %v2048 = vsel %vm345, %v2031, 0
        %2050 = vmatprep.subr.bf16.mxu0 0
        %2051 = vmatpush1.bf16.msra.mxu0 %v2040
        %2052 = vmatprep.subr.bf16.mxu0 0
        %2053 = vmatpush1.bf16.msra.mxu0 %v2041
        %2054 = vmatprep.subr.bf16.mxu0 0
        %2055 = vmatpush1.bf16.msra.mxu0 0
        %2056 = vmatprep.subr.bf16.mxu0 0
        %2057 = vmatpush1.bf16.msra.mxu0 0
        %2058 = vmatprep.subr.bf16.mxu0 0
        %2059 = vmatpush1.bf16.msra.mxu0 0
        %2060 = vmatprep.subr.bf16.mxu0 0
        %2061 = vmatpush1.bf16.msra.mxu0 0
        %2062 = vmatprep.subr.bf16.mxu0 0
        %2063 = vmatpush1.bf16.msra.mxu0 0
        %2064 = vmatprep.subr.bf16.mxu0 0
        %2065 = vmatpush1.bf16.msra.mxu0 0
        %2066 = vmatprep.subr.bf16.mxu0 0
        %2067 = vmatpush1.bf16.msra.mxu0 0
        %2068 = vmatprep.subr.bf16.mxu0 0
        %2069 = vmatpush1.bf16.msra.mxu0 0
        %2070 = vmatprep.subr.bf16.mxu0 0
        %2071 = vmatpush1.bf16.msra.mxu0 0
        %2072 = vmatprep.subr.bf16.mxu0 0
        %2073 = vmatpush1.bf16.msra.mxu0 0
        %2074 = vmatprep.subr.bf16.mxu0 0
        %2075 = vmatpush1.bf16.msra.mxu0 0
        %2076 = vmatprep.subr.bf16.mxu0 0
        %2077 = vmatpush1.bf16.msra.mxu0 0
        %2078 = vmatprep.subr.bf16.mxu0 0
        %2079 = vmatpush1.bf16.msra.mxu0 0
        %2080 = vmatprep.subr.bf16.mxu0 0
        %2081 = vmatpush1.bf16.msra.mxu0 0
        %2082 = vmatprep.mubr.bf16.mxu0 0
        %2083 = vmatmul.mubr.bf16.gmra.mrb[0].mxu0 %v2045
        %v2084 = vpop.f32.mrb[0].mxu0
        %v2085 = vadd.f32 0.0, %v2084
        %v2086 = vpop.f32.mrb[0].mxu0
        %v2087 = vpop.f32.mrb[0].mxu0
        %v2088 = vadd.f32 0.0, %v2087
        %v2089 = vpop.f32.mrb[0].mxu0
        %2090 = vmatprep.mubr.bf16.mxu0 0
        %2091 = vmatmul.mubr.bf16.gmra.mrb[0].mxu0 %v2048
        %v2092 = vpop.f32.mrb[0].mxu0
        %v2093 = vadd.f32 0.0, %v2092
        %v2094 = vpop.f32.mrb[0].mxu0
        %v2095 = vpop.f32.mrb[0].mxu0
        %v2096 = vpop.f32.mrb[0].mxu0
        %2097 = vdwg.mxu0
        %v2098 = vadd.f32 %v1901, %v2085
        %v2099 = vadd.f32 %v1902, %v2088
        %v2100 = vadd.f32 %v1903, %v2093
        %v2102 = vunpack.c.l.s4 1966171168
        %v2103 = vunpack.c.0.s8 %v2102
        %v2104 = vlaneseq
        %v2105 = vshrl.u32 %v2104, 7
        %v2106 = vsub.s32 %v2103, %v2105
        %v2107 = vrot.slane %v1572, %v2106
        %v2108 = vcombine.high %v2107, %v2107
        %v2110 = vunpack.c.l.s4 1966171168
        %v2111 = vunpack.c.0.s8 %v2110
        %v2112 = vlaneseq
        %v2113 = vshrl.u32 %v2112, 7
        %v2114 = vsub.s32 %v2111, %v2113
        %v2115 = vrot.slane %v2107, %v2114
        %v2117 = vunpack.c.l.s4 1966171168
        %v2118 = vunpack.c.0.s8 %v2117
        %v2119 = vlaneseq
        %v2120 = vshrl.u32 %v2119, 7
        %v2121 = vsub.s32 %v2118, %v2120
        %v2122 = vrot.slane %v2108, %v2121
        %v2123 = vcombine.high %v2115, %v2115
        %v2125 = vunpack.c.l.s4 1966171168
        %v2126 = vunpack.c.0.s8 %v2125
        %v2127 = vlaneseq
        %v2128 = vshrl.u32 %v2127, 7
        %v2129 = vsub.s32 %v2126, %v2128
        %v2130 = vrot.slane %v1574, %v2129
        %v2131 = vcombine.high %v2130, %v2130
        %v2133 = vunpack.c.l.s4 1966171168
        %v2134 = vunpack.c.0.s8 %v2133
        %v2135 = vlaneseq
        %v2136 = vshrl.u32 %v2135, 7
        %v2137 = vsub.s32 %v2134, %v2136
        %v2138 = vrot.slane %v2130, %v2137
        %v2140 = vunpack.c.l.s4 1966171168
        %v2141 = vunpack.c.0.s8 %v2140
        %v2142 = vlaneseq
        %v2143 = vshrl.u32 %v2142, 7
        %v2144 = vsub.s32 %v2141, %v2143
        %v2145 = vrot.slane %v2131, %v2144
        %v2146 = vcombine.high %v2138, %v2138
        %v2147 = vld [vmem:[%s2 + $0x50] sm:$0xf]
        %v2148 = vld [vmem:[%s2 + $0x54] sm:$0xf]
        %v2149 = vld [vmem:[%s2 + $0x58] sm:$0xf]
        %v2150 = vld [vmem:[%s2 + $0x5c] sm:$0xf]
        %v2151 = vcombine.low %v1612, %v1619
        %v2152 = vcombine.low %v1620, %v1635
        %v2153 = vcombine.low %v2115, %v2122
        %v2155 = vunpack.c.l.s4 1966171168
        %v2156 = vunpack.c.0.s8 %v2155
        %v2157 = vlaneseq
        %v2158 = vshrl.u32 %v2157, 7
        %v2159 = vsub.s32 %v2156, %v2158
        %v2160 = vrot.slane %v2151, %v2159
        %v2162 = vunpack.c.l.s4 1966171168
        %v2163 = vunpack.c.0.s8 %v2162
        %v2164 = vlaneseq
        %v2165 = vshrl.u32 %v2164, 7
        %v2166 = vsub.s32 %v2163, %v2165
        %v2167 = vrot.slane %v2152, %v2166
        %v2169 = vunpack.c.l.s4 1966171168
        %v2170 = vunpack.c.0.s8 %v2169
        %v2171 = vlaneseq
        %v2172 = vshrl.u32 %v2171, 7
        %v2173 = vsub.s32 %v2170, %v2172
        %v2174 = vrot.slane %v2153, %v2173
        %v2175 = vcombine.low %v2160, %v2167
        %v2176 = vcombine.low %v1945, %v2174
        %v2178 = vunpack.c.l.s4 1966171168
        %v2179 = vunpack.c.0.s8 %v2178
        %v2180 = vlaneseq
        %v2181 = vshrl.u32 %v2180, 7
        %v2182 = vsub.s32 %v2179, %v2181
        %v2183 = vrot.slane %v2175, %v2182
        %v2185 = vunpack.c.l.s4 1966171168
        %v2186 = vunpack.c.0.s8 %v2185
        %v2187 = vlaneseq
        %v2188 = vshrl.u32 %v2187, 7
        %v2189 = vsub.s32 %v2186, %v2188
        %v2190 = vrot.slane %v2176, %v2189
        %v2191 = vcombine.low %v2183, %v2190
        %v2192 = vcombine.low %v2123, %v1681
        %v2193 = vcombine.low %v1704, %v1711
        %v2194 = vcombine.low %v1712, %v2138
        %v2196 = vunpack.c.l.s4 1966171168
        %v2197 = vunpack.c.0.s8 %v2196
        %v2198 = vlaneseq
        %v2199 = vshrl.u32 %v2198, 7
        %v2200 = vsub.s32 %v2197, %v2199
        %v2201 = vrot.slane %v2192, %v2200
        %v2203 = vunpack.c.l.s4 1966171168
        %v2204 = vunpack.c.0.s8 %v2203
        %v2205 = vlaneseq
        %v2206 = vshrl.u32 %v2205, 7
        %v2207 = vsub.s32 %v2204, %v2206
        %v2208 = vrot.slane %v2193, %v2207
        %v2210 = vunpack.c.l.s4 1966171168
        %v2211 = vunpack.c.0.s8 %v2210
        %v2212 = vlaneseq
        %v2213 = vshrl.u32 %v2212, 7
        %v2214 = vsub.s32 %v2211, %v2213
        %v2215 = vrot.slane %v2194, %v2214
        %v2216 = vcombine.low %v2201, %v1987
        %v2217 = vcombine.low %v2208, %v2215
        %v2219 = vunpack.c.l.s4 1966171168
        %v2220 = vunpack.c.0.s8 %v2219
        %v2221 = vlaneseq
        %v2222 = vshrl.u32 %v2221, 7
        %v2223 = vsub.s32 %v2220, %v2222
        %v2224 = vrot.slane %v2216, %v2223
        %v2226 = vunpack.c.l.s4 1966171168
        %v2227 = vunpack.c.0.s8 %v2226
        %v2228 = vlaneseq
        %v2229 = vshrl.u32 %v2228, 7
        %v2230 = vsub.s32 %v2227, %v2229
        %v2231 = vrot.slane %v2217, %v2230
        %v2232 = vcombine.low %v2224, %v2231
        %v2233 = vcombine.low %v2145, %v2146
        %v2235 = vunpack.c.l.s4 1966171168
        %v2236 = vunpack.c.0.s8 %v2235
        %v2237 = vlaneseq
        %v2238 = vshrl.u32 %v2237, 7
        %v2239 = vsub.s32 %v2236, %v2238
        %v2240 = vrot.slane %v2233, %v2239
        %v2242 = vunpack.c.l.s4 1966171168
        %v2243 = vunpack.c.0.s8 %v2242
        %v2244 = vlaneseq
        %v2245 = vshrl.u32 %v2244, 7
        %v2246 = vsub.s32 %v2243, %v2245
        %v2247 = vrot.slane %v2240, %v2246
        %v2251 = vpack.c.bf16 %v2232, %v2191
        %v2252 = vpack.c.bf16 %v2247, %v2247
        %v2257 = vunpack.c.l.b16 %v2147
        %v2258 = vunpack.c.l.b16 %v2148
        %v2259 = vunpack.c.l.b16 %v2149
        %v2260 = vunpack.c.l.b16 %v2150
        %v2261 = vpack.c.b16 %v2258, %v2257
        %v2262 = vpack.c.b16 %v2260, %v2259
        %v2266 = vsel %vm345, %v2251, 0
        %v2269 = vsel %vm345, %v2252, 0
        %2271 = vmatprep.subr.bf16.mxu0 0
        %2272 = vmatpush1.bf16.msra.mxu0 %v2261
        %2273 = vmatprep.subr.bf16.mxu0 0
        %2274 = vmatpush1.bf16.msra.mxu0 %v2262
        %2275 = vmatprep.subr.bf16.mxu0 0
        %2276 = vmatpush1.bf16.msra.mxu0 0
        %2277 = vmatprep.subr.bf16.mxu0 0
        %2278 = vmatpush1.bf16.msra.mxu0 0
        %2279 = vmatprep.subr.bf16.mxu0 0
        %2280 = vmatpush1.bf16.msra.mxu0 0
        %2281 = vmatprep.subr.bf16.mxu0 0
        %2282 = vmatpush1.bf16.msra.mxu0 0
        %2283 = vmatprep.subr.bf16.mxu0 0
        %2284 = vmatpush1.bf16.msra.mxu0 0
        %2285 = vmatprep.subr.bf16.mxu0 0
        %2286 = vmatpush1.bf16.msra.mxu0 0
        %2287 = vmatprep.subr.bf16.mxu0 0
        %2288 = vmatpush1.bf16.msra.mxu0 0
        %2289 = vmatprep.subr.bf16.mxu0 0
        %2290 = vmatpush1.bf16.msra.mxu0 0
        %2291 = vmatprep.subr.bf16.mxu0 0
        %2292 = vmatpush1.bf16.msra.mxu0 0
        %2293 = vmatprep.subr.bf16.mxu0 0
        %2294 = vmatpush1.bf16.msra.mxu0 0
        %2295 = vmatprep.subr.bf16.mxu0 0
        %2296 = vmatpush1.bf16.msra.mxu0 0
        %2297 = vmatprep.subr.bf16.mxu0 0
        %2298 = vmatpush1.bf16.msra.mxu0 0
        %2299 = vmatprep.subr.bf16.mxu0 0
        %2300 = vmatpush1.bf16.msra.mxu0 0
        %2301 = vmatprep.subr.bf16.mxu0 0
        %2302 = vmatpush1.bf16.msra.mxu0 0
        %2303 = vmatprep.mubr.bf16.mxu0 0
        %2304 = vmatmul.mubr.bf16.gmra.mrb[0].mxu0 %v2266
        %v2305 = vpop.f32.mrb[0].mxu0
        %v2306 = vadd.f32 0.0, %v2305
        %v2307 = vpop.f32.mrb[0].mxu0
        %v2308 = vpop.f32.mrb[0].mxu0
        %v2309 = vadd.f32 0.0, %v2308
        %v2310 = vpop.f32.mrb[0].mxu0
        %2311 = vmatprep.mubr.bf16.mxu0 0
        %2312 = vmatmul.mubr.bf16.gmra.mrb[0].mxu0 %v2269
        %v2313 = vpop.f32.mrb[0].mxu0
        %v2314 = vadd.f32 0.0, %v2313
        %v2315 = vpop.f32.mrb[0].mxu0
        %v2316 = vpop.f32.mrb[0].mxu0
        %v2317 = vpop.f32.mrb[0].mxu0
        %2318 = vdwg.mxu0
        %v2319 = vadd.f32 %v2098, %v2306
        %v2320 = vadd.f32 %v2099, %v2309
        %v2321 = vadd.f32 %v2100, %v2314
        %v2322 = vcombine.high %v2122, %v2122
        %v2323 = vcombine.high %v2145, %v2145
        %v2324 = vld [vmem:[%s2 + $0x60] sm:$0xf]
        %v2325 = vld [vmem:[%s2 + $0x64] sm:$0xf]
        %v2326 = vld [vmem:[%s2 + $0x68] sm:$0xf]
        %v2327 = vld [vmem:[%s2 + $0x6c] sm:$0xf]
        %v2328 = vcombine.low %v1905, %v1642
        %v2329 = vcombine.low %v1643, %v1906
        %v2330 = vcombine.low %v2122, %v2123
        %v2332 = vunpack.c.l.s4 1966171168
        %v2333 = vunpack.c.0.s8 %v2332
        %v2334 = vlaneseq
        %v2335 = vshrl.u32 %v2334, 7
        %v2336 = vsub.s32 %v2333, %v2335
        %v2337 = vrot.slane %v2328, %v2336
        %v2339 = vunpack.c.l.s4 1966171168
        %v2340 = vunpack.c.0.s8 %v2339
        %v2341 = vlaneseq
        %v2342 = vshrl.u32 %v2341, 7
        %v2343 = vsub.s32 %v2340, %v2342
        %v2344 = vrot.slane %v2329, %v2343
        %v2346 = vunpack.c.l.s4 1966171168
        %v2347 = vunpack.c.0.s8 %v2346
        %v2348 = vlaneseq
        %v2349 = vshrl.u32 %v2348, 7
        %v2350 = vsub.s32 %v2347, %v2349
        %v2351 = vrot.slane %v2330, %v2350
        %v2352 = vcombine.low %v1741, %v2337
        %v2353 = vcombine.low %v2344, %v2351
        %v2355 = vunpack.c.l.s4 1966171168
        %v2356 = vunpack.c.0.s8 %v2355
        %v2357 = vlaneseq
        %v2358 = vshrl.u32 %v2357, 7
        %v2359 = vsub.s32 %v2356, %v2358
        %v2360 = vrot.slane %v2352, %v2359
        %v2362 = vunpack.c.l.s4 1966171168
        %v2363 = vunpack.c.0.s8 %v2362
        %v2364 = vlaneseq
        %v2365 = vshrl.u32 %v2364, 7
        %v2366 = vsub.s32 %v2363, %v2365
        %v2367 = vrot.slane %v2353, %v2366
        %v2368 = vcombine.low %v2360, %v2367
        %v2369 = vcombine.low %v2322, %v1688
        %v2370 = vcombine.low %v1689, %v1908
        %v2371 = vcombine.low %v1909, %v2145
        %v2373 = vunpack.c.l.s4 1966171168
        %v2374 = vunpack.c.0.s8 %v2373
        %v2375 = vlaneseq
        %v2376 = vshrl.u32 %v2375, 7
        %v2377 = vsub.s32 %v2374, %v2376
        %v2378 = vrot.slane %v2369, %v2377
        %v2380 = vunpack.c.l.s4 1966171168
        %v2381 = vunpack.c.0.s8 %v2380
        %v2382 = vlaneseq
        %v2383 = vshrl.u32 %v2382, 7
        %v2384 = vsub.s32 %v2381, %v2383
        %v2385 = vrot.slane %v2370, %v2384
        %v2387 = vunpack.c.l.s4 1966171168
        %v2388 = vunpack.c.0.s8 %v2387
        %v2389 = vlaneseq
        %v2390 = vshrl.u32 %v2389, 7
        %v2391 = vsub.s32 %v2388, %v2390
        %v2392 = vrot.slane %v2371, %v2391
        %v2393 = vcombine.low %v2378, %v2385
        %v2394 = vcombine.low %v1822, %v2392
        %v2396 = vunpack.c.l.s4 1966171168
        %v2397 = vunpack.c.0.s8 %v2396
        %v2398 = vlaneseq
        %v2399 = vshrl.u32 %v2398, 7
        %v2400 = vsub.s32 %v2397, %v2399
        %v2401 = vrot.slane %v2393, %v2400
        %v2403 = vunpack.c.l.s4 1966171168
        %v2404 = vunpack.c.0.s8 %v2403
        %v2405 = vlaneseq
        %v2406 = vshrl.u32 %v2405, 7
        %v2407 = vsub.s32 %v2404, %v2406
        %v2408 = vrot.slane %v2394, %v2407
        %v2409 = vcombine.low %v2401, %v2408
        %v2410 = vcombine.low %v2146, %v2323
        %v2412 = vunpack.c.l.s4 1966171168
        %v2413 = vunpack.c.0.s8 %v2412
        %v2414 = vlaneseq
        %v2415 = vshrl.u32 %v2414, 7
        %v2416 = vsub.s32 %v2413, %v2415
        %v2417 = vrot.slane %v2410, %v2416
        %v2419 = vunpack.c.l.s4 1966171168
        %v2420 = vunpack.c.0.s8 %v2419
        %v2421 = vlaneseq
        %v2422 = vshrl.u32 %v2421, 7
        %v2423 = vsub.s32 %v2420, %v2422
        %v2424 = vrot.slane %v2417, %v2423
        %v2428 = vpack.c.bf16 %v2409, %v2368
        %v2429 = vpack.c.bf16 %v2424, %v2424
        %v2434 = vunpack.c.l.b16 %v2324
        %v2435 = vunpack.c.l.b16 %v2325
        %v2436 = vunpack.c.l.b16 %v2326
        %v2437 = vunpack.c.l.b16 %v2327
        %v2438 = vpack.c.b16 %v2435, %v2434
        %v2439 = vpack.c.b16 %v2437, %v2436
        %v2443 = vsel %vm345, %v2428, 0
        %v2446 = vsel %vm345, %v2429, 0
        %2448 = vmatprep.subr.bf16.mxu0 0
        %2449 = vmatpush1.bf16.msra.mxu0 %v2438
        %2450 = vmatprep.subr.bf16.mxu0 0
        %2451 = vmatpush1.bf16.msra.mxu0 %v2439
        %2452 = vmatprep.subr.bf16.mxu0 0
        %2453 = vmatpush1.bf16.msra.mxu0 0
        %2454 = vmatprep.subr.bf16.mxu0 0
        %2455 = vmatpush1.bf16.msra.mxu0 0
        %2456 = vmatprep.subr.bf16.mxu0 0
        %2457 = vmatpush1.bf16.msra.mxu0 0
        %2458 = vmatprep.subr.bf16.mxu0 0
        %2459 = vmatpush1.bf16.msra.mxu0 0
        %2460 = vmatprep.subr.bf16.mxu0 0
        %2461 = vmatpush1.bf16.msra.mxu0 0
        %2462 = vmatprep.subr.bf16.mxu0 0
        %2463 = vmatpush1.bf16.msra.mxu0 0
        %2464 = vmatprep.subr.bf16.mxu0 0
        %2465 = vmatpush1.bf16.msra.mxu0 0
        %2466 = vmatprep.subr.bf16.mxu0 0
        %2467 = vmatpush1.bf16.msra.mxu0 0
        %2468 = vmatprep.subr.bf16.mxu0 0
        %2469 = vmatpush1.bf16.msra.mxu0 0
        %2470 = vmatprep.subr.bf16.mxu0 0
        %2471 = vmatpush1.bf16.msra.mxu0 0
        %2472 = vmatprep.subr.bf16.mxu0 0
        %2473 = vmatpush1.bf16.msra.mxu0 0
        %2474 = vmatprep.subr.bf16.mxu0 0
        %2475 = vmatpush1.bf16.msra.mxu0 0
        %2476 = vmatprep.subr.bf16.mxu0 0
        %2477 = vmatpush1.bf16.msra.mxu0 0
        %2478 = vmatprep.subr.bf16.mxu0 0
        %2479 = vmatpush1.bf16.msra.mxu0 0
        %2480 = vmatprep.mubr.bf16.mxu0 0
        %2481 = vmatmul.mubr.bf16.gmra.mrb[0].mxu0 %v2443
        %v2482 = vpop.f32.mrb[0].mxu0
        %v2483 = vadd.f32 0.0, %v2482
        %v2484 = vpop.f32.mrb[0].mxu0
        %v2485 = vpop.f32.mrb[0].mxu0
        %v2486 = vadd.f32 0.0, %v2485
        %v2487 = vpop.f32.mrb[0].mxu0
        %2488 = vmatprep.mubr.bf16.mxu0 0
        %2489 = vmatmul.mubr.bf16.gmra.mrb[0].mxu0 %v2446
        %v2490 = vpop.f32.mrb[0].mxu0
        %v2491 = vadd.f32 0.0, %v2490
        %v2492 = vpop.f32.mrb[0].mxu0
        %v2493 = vpop.f32.mrb[0].mxu0
        %v2494 = vpop.f32.mrb[0].mxu0
        %2495 = vdwg.mxu0
        %v2496 = vadd.f32 %v2319, %v2483
        %v2497 = vadd.f32 %v2320, %v2486
        %v2498 = vadd.f32 %v2321, %v2491
        %vm2499 = vcmp.gt.f32.partialorder %v2496, 0.0
        %vm2500 = vcmp.gt.f32.partialorder %v2497, 0.0
        %vm2501 = vcmp.gt.f32.partialorder %v2498, 0.0
        %v2502 = vmul.f32 %v2496, 0.01
        %v2503 = vmul.f32 %v2497, 0.01
        %v2504 = vmul.f32 %v2498, 0.01
        %v2505 = vsel %vm2499, %v2496, %v2502
        %v2506 = vsel %vm2500, %v2497, %v2503
        %v2507 = vsel %vm2501, %v2498, %v2504
        %v2511 = vcombine.high %v2505, %v2505
        %v2513 = vunpack.c.l.s4 1966171168
        %v2514 = vunpack.c.0.s8 %v2513
        %v2515 = vlaneseq
        %v2516 = vshrl.u32 %v2515, 7
        %v2517 = vsub.s32 %v2514, %v2516
        %v2518 = vrot.slane %v2505, %v2517
        %v2520 = vunpack.c.l.s4 1966171168
        %v2521 = vunpack.c.0.s8 %v2520
        %v2522 = vlaneseq
        %v2523 = vshrl.u32 %v2522, 7
        %v2524 = vsub.s32 %v2521, %v2523
        %v2525 = vrot.slane %v2511, %v2524
        %v2526 = vcombine.high %v2518, %v2518
        %v2527 = vcombine.high %v2525, %v2525
        %v2529 = vunpack.c.l.s4 1966171168
        %v2530 = vunpack.c.0.s8 %v2529
        %v2531 = vlaneseq
        %v2532 = vshrl.u32 %v2531, 7
        %v2533 = vsub.s32 %v2530, %v2532
        %v2534 = vrot.slane %v2518, %v2533
        %v2536 = vunpack.c.l.s4 1966171168
        %v2537 = vunpack.c.0.s8 %v2536
        %v2538 = vlaneseq
        %v2539 = vshrl.u32 %v2538, 7
        %v2540 = vsub.s32 %v2537, %v2539
        %v2541 = vrot.slane %v2525, %v2540
        %v2543 = vunpack.c.l.s4 1966171168
        %v2544 = vunpack.c.0.s8 %v2543
        %v2545 = vlaneseq
        %v2546 = vshrl.u32 %v2545, 7
        %v2547 = vsub.s32 %v2544, %v2546
        %v2548 = vrot.slane %v2526, %v2547
        %v2550 = vunpack.c.l.s4 1966171168
        %v2551 = vunpack.c.0.s8 %v2550
        %v2552 = vlaneseq
        %v2553 = vshrl.u32 %v2552, 7
        %v2554 = vsub.s32 %v2551, %v2553
        %v2555 = vrot.slane %v2527, %v2554
        %v2556 = vcombine.high %v2534, %v2534
        %v2557 = vcombine.high %v2541, %v2541
        %v2558 = vcombine.high %v2548, %v2548
        %v2559 = vcombine.high %v2555, %v2555
        %v2560 = vcombine.high %v2506, %v2506
        %v2562 = vunpack.c.l.s4 1966171168
        %v2563 = vunpack.c.0.s8 %v2562
        %v2564 = vlaneseq
        %v2565 = vshrl.u32 %v2564, 7
        %v2566 = vsub.s32 %v2563, %v2565
        %v2567 = vrot.slane %v2506, %v2566
        %v2569 = vunpack.c.l.s4 1966171168
        %v2570 = vunpack.c.0.s8 %v2569
        %v2571 = vlaneseq
        %v2572 = vshrl.u32 %v2571, 7
        %v2573 = vsub.s32 %v2570, %v2572
        %v2574 = vrot.slane %v2560, %v2573
        %v2575 = vcombine.high %v2567, %v2567
        %v2576 = vcombine.high %v2574, %v2574
        %v2578 = vunpack.c.l.s4 1966171168
        %v2579 = vunpack.c.0.s8 %v2578
        %v2580 = vlaneseq
        %v2581 = vshrl.u32 %v2580, 7
        %v2582 = vsub.s32 %v2579, %v2581
        %v2583 = vrot.slane %v2567, %v2582
        %v2585 = vunpack.c.l.s4 1966171168
        %v2586 = vunpack.c.0.s8 %v2585
        %v2587 = vlaneseq
        %v2588 = vshrl.u32 %v2587, 7
        %v2589 = vsub.s32 %v2586, %v2588
        %v2590 = vrot.slane %v2574, %v2589
        %v2592 = vunpack.c.l.s4 1966171168
        %v2593 = vunpack.c.0.s8 %v2592
        %v2594 = vlaneseq
        %v2595 = vshrl.u32 %v2594, 7
        %v2596 = vsub.s32 %v2593, %v2595
        %v2597 = vrot.slane %v2575, %v2596
        %v2599 = vunpack.c.l.s4 1966171168
        %v2600 = vunpack.c.0.s8 %v2599
        %v2601 = vlaneseq
        %v2602 = vshrl.u32 %v2601, 7
        %v2603 = vsub.s32 %v2600, %v2602
        %v2604 = vrot.slane %v2576, %v2603
        %v2605 = vcombine.high %v2583, %v2583
        %v2606 = vcombine.high %v2590, %v2590
        %v2607 = vcombine.high %v2597, %v2597
        %v2608 = vcombine.high %v2604, %v2604
        %v2610 = vunpack.c.l.s4 1966171168
        %v2611 = vunpack.c.0.s8 %v2610
        %v2612 = vlaneseq
        %v2613 = vshrl.u32 %v2612, 7
        %v2614 = vsub.s32 %v2611, %v2613
        %v2615 = vrot.slane %v2507, %v2614
        %v2616 = vcombine.high %v2615, %v2615
        %v2618 = vunpack.c.l.s4 1966171168
        %v2619 = vunpack.c.0.s8 %v2618
        %v2620 = vlaneseq
        %v2621 = vshrl.u32 %v2620, 7
        %v2622 = vsub.s32 %v2619, %v2621
        %v2623 = vrot.slane %v2615, %v2622
        %v2625 = vunpack.c.l.s4 1966171168
        %v2626 = vunpack.c.0.s8 %v2625
        %v2627 = vlaneseq
        %v2628 = vshrl.u32 %v2627, 7
        %v2629 = vsub.s32 %v2626, %v2628
        %v2630 = vrot.slane %v2616, %v2629
        %v2631 = vld [vmem:[%s210 + $0x20] sm:$0x1]
        %v2632 = vunpack.c.l.bf16 %v2631
        %v2633 = vcombine.low %v2534, %v2597
        %v2635 = vunpack.c.l.s4 1966171168
        %v2636 = vunpack.c.0.s8 %v2635
        %v2637 = vlaneseq
        %v2638 = vshrl.u32 %v2637, 7
        %v2639 = vsub.s32 %v2636, %v2638
        %v2640 = vrot.slane %v2633, %v2639
        %v2642 = vunpack.c.l.s4 1966171168
        %v2643 = vunpack.c.0.s8 %v2642
        %v2644 = vlaneseq
        %v2645 = vshrl.u32 %v2644, 7
        %v2646 = vsub.s32 %v2643, %v2645
        %v2647 = vrot.slane %v2640, %v2646
        %v2649 = vcombine.low %v2548, %v2605
        %v2651 = vunpack.c.l.s4 1966171168
        %v2652 = vunpack.c.0.s8 %v2651
        %v2653 = vlaneseq
        %v2654 = vshrl.u32 %v2653, 7
        %v2655 = vsub.s32 %v2652, %v2654
        %v2656 = vrot.slane %v2649, %v2655
        %v2658 = vunpack.c.l.s4 1966171168
        %v2659 = vunpack.c.0.s8 %v2658
        %v2660 = vlaneseq
        %v2661 = vshrl.u32 %v2660, 7
        %v2662 = vsub.s32 %v2659, %v2661
        %v2663 = vrot.slane %v2656, %v2662
        %2664 = vrot.lane.b32.xlu0 %v2663, 64
        %v2665 = vpop.permute.xlu0 %2664
        %v2667 = vcombine.low %v2556, %v2607
        %v2669 = vunpack.c.l.s4 1966171168
        %v2670 = vunpack.c.0.s8 %v2669
        %v2671 = vlaneseq
        %v2672 = vshrl.u32 %v2671, 7
        %v2673 = vsub.s32 %v2670, %v2672
        %v2674 = vrot.slane %v2667, %v2673
        %v2676 = vunpack.c.l.s4 1966171168
        %v2677 = vunpack.c.0.s8 %v2676
        %v2678 = vlaneseq
        %v2679 = vshrl.u32 %v2678, 7
        %v2680 = vsub.s32 %v2677, %v2679
        %v2681 = vrot.slane %v2674, %v2680
        %v2683 = vcombine.low %v2558, %v2590
        %v2685 = vunpack.c.l.s4 1966171168
        %v2686 = vunpack.c.0.s8 %v2685
        %v2687 = vlaneseq
        %v2688 = vshrl.u32 %v2687, 7
        %v2689 = vsub.s32 %v2686, %v2688
        %v2690 = vrot.slane %v2683, %v2689
        %v2692 = vunpack.c.l.s4 1966171168
        %v2693 = vunpack.c.0.s8 %v2692
        %v2694 = vlaneseq
        %v2695 = vshrl.u32 %v2694, 7
        %v2696 = vsub.s32 %v2693, %v2695
        %v2697 = vrot.slane %v2690, %v2696
        %2698 = vrot.lane.b32.xlu0 %v2697, 64
        %v2699 = vpop.permute.xlu0 %2698
        %v2701 = vcombine.low %v2541, %v2604
        %v2703 = vunpack.c.l.s4 1966171168
        %v2704 = vunpack.c.0.s8 %v2703
        %v2705 = vlaneseq
        %v2706 = vshrl.u32 %v2705, 7
        %v2707 = vsub.s32 %v2704, %v2706
        %v2708 = vrot.slane %v2701, %v2707
        %v2710 = vunpack.c.l.s4 1966171168
        %v2711 = vunpack.c.0.s8 %v2710
        %v2712 = vlaneseq
        %v2713 = vshrl.u32 %v2712, 7
        %v2714 = vsub.s32 %v2711, %v2713
        %v2715 = vrot.slane %v2708, %v2714
        %v2717 = vcombine.low %v2555, %v2606
        %v2719 = vunpack.c.l.s4 1966171168
        %v2720 = vunpack.c.0.s8 %v2719
        %v2721 = vlaneseq
        %v2722 = vshrl.u32 %v2721, 7
        %v2723 = vsub.s32 %v2720, %v2722
        %v2724 = vrot.slane %v2717, %v2723
        %v2726 = vunpack.c.l.s4 1966171168
        %v2727 = vunpack.c.0.s8 %v2726
        %v2728 = vlaneseq
        %v2729 = vshrl.u32 %v2728, 7
        %v2730 = vsub.s32 %v2727, %v2729
        %v2731 = vrot.slane %v2724, %v2730
        %2732 = vrot.lane.b32.xlu0 %v2731, 64
        %v2733 = vpop.permute.xlu0 %2732
        %v2735 = vcombine.low %v2557, %v2608
        %v2737 = vunpack.c.l.s4 1966171168
        %v2738 = vunpack.c.0.s8 %v2737
        %v2739 = vlaneseq
        %v2740 = vshrl.u32 %v2739, 7
        %v2741 = vsub.s32 %v2738, %v2740
        %v2742 = vrot.slane %v2735, %v2741
        %v2744 = vunpack.c.l.s4 1966171168
        %v2745 = vunpack.c.0.s8 %v2744
        %v2746 = vlaneseq
        %v2747 = vshrl.u32 %v2746, 7
        %v2748 = vsub.s32 %v2745, %v2747
        %v2749 = vrot.slane %v2742, %v2748
        %v2751 = vcombine.low %v2559, %v2623
        %v2753 = vunpack.c.l.s4 1966171168
        %v2754 = vunpack.c.0.s8 %v2753
        %v2755 = vlaneseq
        %v2756 = vshrl.u32 %v2755, 7
        %v2757 = vsub.s32 %v2754, %v2756
        %v2758 = vrot.slane %v2751, %v2757
        %v2760 = vunpack.c.l.s4 1966171168
        %v2761 = vunpack.c.0.s8 %v2760
        %v2762 = vlaneseq
        %v2763 = vshrl.u32 %v2762, 7
        %v2764 = vsub.s32 %v2761, %v2763
        %v2765 = vrot.slane %v2758, %v2764
        %2766 = vrot.lane.b32.xlu0 %v2765, 64
        %v2767 = vpop.permute.xlu0 %2766
        %v2769 = vcombine.low %v2583, %v2630
        %v2771 = vunpack.c.l.s4 1966171168
        %v2772 = vunpack.c.0.s8 %v2771
        %v2773 = vlaneseq
        %v2774 = vshrl.u32 %v2773, 7
        %v2775 = vsub.s32 %v2772, %v2774
        %v2776 = vrot.slane %v2769, %v2775
        %v2778 = vunpack.c.l.s4 1966171168
        %v2779 = vunpack.c.0.s8 %v2778
        %v2780 = vlaneseq
        %v2781 = vshrl.u32 %v2780, 7
        %v2782 = vsub.s32 %v2779, %v2781
        %v2783 = vrot.slane %v2776, %v2782
        %2786 = vrot.lane.b32.xlu0 %v2632, 64
        %v2787 = vpop.permute.xlu0 %2786
        %vm2789 = vcmask 523264
        %v2790 = vsel %vm2789, %v2647, %v2665
        %v2791 = vsel %vm2789, %v2681, %v2699
        %v2792 = vsel %vm2789, %v2715, %v2733
        %v2793 = vsel %vm2789, %v2749, %v2767
        %v2794 = vsel %vm2789, %v2783, %v2787
        %v2795 = vpack.c.bf16 %v2790, %v2790
        %v2796 = vpack.c.bf16 %v2791, %v2791
        %v2797 = vpack.c.bf16 %v2792, %v2792
        %v2798 = vpack.c.bf16 %v2793, %v2793
        %v2799 = vpack.c.bf16 %v2794, %v2794
        %v2876 = vunpack.c.l.b16 %v223
        %v2877 = vunpack.c.l.b16 %v224
        %v2878 = vunpack.c.l.b16 %v225
        %v2879 = vunpack.c.l.b16 %v226
        %v2880 = vunpack.c.l.b16 %v227
        %v2881 = vunpack.c.l.b16 %v228
        %v2882 = vunpack.c.l.b16 %v229
        %v2883 = vunpack.c.l.b16 %v230
        %v2884 = vunpack.c.l.b16 %v231
        %v2885 = vunpack.c.l.b16 %v232
        %v2886 = vunpack.c.l.b16 %v233
        %v2887 = vunpack.c.l.b16 %v234
        %v2888 = vunpack.c.l.b16 %v235
        %v2889 = vunpack.c.l.b16 %v236
        %v2890 = vunpack.c.l.b16 %v237
        %v2891 = vunpack.c.l.b16 %v238
        %v2892 = vunpack.c.l.b16 %v239
        %v2893 = vunpack.c.l.b16 %v240
        %v2894 = vunpack.c.l.b16 %v241
        %v2895 = vunpack.c.l.b16 %v242
        %v2896 = vunpack.c.l.b16 %v243
        %v2897 = vunpack.c.l.b16 %v244
        %v2898 = vunpack.c.l.b16 %v245
        %v2899 = vunpack.c.l.b16 %v246
        %v2900 = vunpack.c.l.b16 %v247
        %v2901 = vunpack.c.l.b16 %v248
        %v2902 = vunpack.c.l.b16 %v249
        %v2903 = vunpack.c.l.b16 %v250
        %v2904 = vunpack.c.l.b16 %v251
        %v2905 = vunpack.c.l.b16 %v252
        %v2906 = vunpack.c.l.b16 %v253
        %v2907 = vunpack.c.l.b16 %v254
        %v2908 = vunpack.c.l.b16 %v255
        %v2909 = vunpack.c.l.b16 %v256
        %v2910 = vunpack.c.l.b16 %v257
        %v2911 = vunpack.c.l.b16 %v258
        %v2912 = vunpack.c.l.b16 %v259
        %v2913 = vunpack.c.l.b16 %v260
        %v2914 = vunpack.c.l.b16 %v261
        %v2915 = vunpack.c.l.b16 %v262
        %v2916 = vunpack.c.l.b16 %v263
        %v2917 = vunpack.c.l.b16 %v264
        %v2918 = vunpack.c.l.b16 %v265
        %v2919 = vunpack.c.l.b16 %v266
        %v2920 = vunpack.c.l.b16 %v267
        %v2921 = vunpack.c.l.b16 %v268
        %v2922 = vunpack.c.l.b16 %v269
        %v2923 = vunpack.c.l.b16 %v270
        %v2924 = vunpack.c.l.b16 %v271
        %v2925 = vunpack.c.l.b16 %v272
        %v2926 = vunpack.c.l.b16 %v273
        %v2927 = vunpack.c.l.b16 %v274
        %v2928 = vunpack.c.l.b16 %v275
        %v2929 = vunpack.c.l.b16 %v276
        %v2930 = vunpack.c.l.b16 %v277
        %v2931 = vunpack.c.l.b16 %v278
        %v2932 = vunpack.c.l.b16 %v279
        %v2933 = vunpack.c.l.b16 %v280
        %v2934 = vunpack.c.l.b16 %v281
        %v2935 = vunpack.c.l.b16 %v282
        %v2936 = vunpack.c.l.b16 %v283
        %v2937 = vunpack.c.l.b16 %v284
        %v2938 = vunpack.c.l.b16 %v285
        %v2939 = vunpack.c.l.b16 %v286
        %v2940 = vunpack.c.l.b16 %v287
        %v2941 = vunpack.c.l.b16 %v288
        %v2942 = vunpack.c.l.b16 %v289
        %v2943 = vunpack.c.l.b16 %v290
        %v2944 = vunpack.c.l.b16 %v291
        %v2945 = vunpack.c.l.b16 %v292
        %v2946 = vunpack.c.l.b16 %v293
        %v2947 = vunpack.c.l.b16 %v294
        %v2948 = vunpack.c.l.b16 %v295
        %v2949 = vunpack.c.l.b16 %v296
        %v2950 = vunpack.c.l.b16 %v297
        %v2951 = vunpack.c.l.b16 %v298
        %v2952 = vpack.c.b16 %v2877, %v2876
        %v2953 = vpack.c.b16 %v2879, %v2878
        %v2954 = vpack.c.b16 %v2881, %v2880
        %v2955 = vpack.c.b16 %v2883, %v2882
        %v2956 = vpack.c.b16 %v2885, %v2884
        %v2957 = vpack.c.b16 %v2887, %v2886
        %v2958 = vpack.c.b16 %v2889, %v2888
        %v2959 = vpack.c.b16 %v2891, %v2890
        %v2960 = vpack.c.b16 %v2893, %v2892
        %v2961 = vpack.c.b16 %v2895, %v2894
        %v2962 = vpack.c.b16 %v2897, %v2896
        %v2963 = vpack.c.b16 %v2899, %v2898
        %v2964 = vpack.c.b16 %v2901, %v2900
        %v2965 = vpack.c.b16 %v2903, %v2902
        %v2966 = vpack.c.b16 %v2905, %v2904
        %v2967 = vpack.c.b16 %v2907, %v2906
        %v2968 = vpack.c.b16 %v2909, %v2908
        %v2969 = vpack.c.b16 %v2911, %v2910
        %v2970 = vpack.c.b16 %v2913, %v2912
        %v2971 = vpack.c.b16 %v2915, %v2914
        %v2972 = vpack.c.b16 %v2917, %v2916
        %v2973 = vpack.c.b16 %v2919, %v2918
        %v2974 = vpack.c.b16 %v2921, %v2920
        %v2975 = vpack.c.b16 %v2923, %v2922
        %v2976 = vpack.c.b16 %v2925, %v2924
        %v2977 = vpack.c.b16 %v2927, %v2926
        %v2978 = vpack.c.b16 %v2929, %v2928
        %v2979 = vpack.c.b16 %v2931, %v2930
        %v2980 = vpack.c.b16 %v2933, %v2932
        %v2981 = vpack.c.b16 %v2935, %v2934
        %v2982 = vpack.c.b16 %v2937, %v2936
        %v2983 = vpack.c.b16 %v2939, %v2938
        %v2984 = vpack.c.b16 %v2941, %v2940
        %v2985 = vpack.c.b16 %v2943, %v2942
        %v2986 = vpack.c.b16 %v2945, %v2944
        %v2987 = vpack.c.b16 %v2947, %v2946
        %v2988 = vpack.c.b16 %v2949, %v2948
        %v2989 = vpack.c.b16 %v2951, %v2950
        %vm3028 = vcmask 785408
        %v3030 = vsel %vm3028, %v2799, 0
        %3032 = vmatprep.subr.bf16.mxu0 0
        %3033 = vmatpush1.bf16.msra.mxu0 %v2952
        %3034 = vmatprep.subr.bf16.mxu0 0
        %3035 = vmatpush1.bf16.msra.mxu0 %v2953
        %3036 = vmatprep.subr.bf16.mxu0 0
        %3037 = vmatpush1.bf16.msra.mxu0 %v2954
        %3038 = vmatprep.subr.bf16.mxu0 0
        %3039 = vmatpush1.bf16.msra.mxu0 %v2955
        %3040 = vmatprep.subr.bf16.mxu0 0
        %3041 = vmatpush1.bf16.msra.mxu0 %v2956
        %3042 = vmatprep.subr.bf16.mxu0 0
        %3043 = vmatpush1.bf16.msra.mxu0 %v2957
        %3044 = vmatprep.subr.bf16.mxu0 0
        %3045 = vmatpush1.bf16.msra.mxu0 %v2958
        %3046 = vmatprep.subr.bf16.mxu0 0
        %3047 = vmatpush1.bf16.msra.mxu0 %v2959
        %3048 = vmatprep.subr.bf16.mxu0 0
        %3049 = vmatpush1.bf16.msra.mxu0 %v2960
        %3050 = vmatprep.subr.bf16.mxu0 0
        %3051 = vmatpush1.bf16.msra.mxu0 %v2961
        %3052 = vmatprep.subr.bf16.mxu0 0
        %3053 = vmatpush1.bf16.msra.mxu0 %v2962
        %3054 = vmatprep.subr.bf16.mxu0 0
        %3055 = vmatpush1.bf16.msra.mxu0 %v2963
        %3056 = vmatprep.subr.bf16.mxu0 0
        %3057 = vmatpush1.bf16.msra.mxu0 %v2964
        %3058 = vmatprep.subr.bf16.mxu0 0
        %3059 = vmatpush1.bf16.msra.mxu0 %v2965
        %3060 = vmatprep.subr.bf16.mxu0 0
        %3061 = vmatpush1.bf16.msra.mxu0 %v2966
        %3062 = vmatprep.subr.bf16.mxu0 0
        %3063 = vmatpush1.bf16.msra.mxu0 %v2967
        %3064 = vmatprep.mubr.bf16.mxu0 %v2796
        %3065 = vmatmul.mubr.bf16.gmra.mrb[0].mxu0 %v2795
        %v3066 = vpop.f32.mrb[0].mxu0
        %v3067 = vadd.f32 %v302, %v3066
        %v3068 = vpop.f32.mrb[0].mxu0
        %v3069 = vpop.f32.mrb[0].mxu0
        %v3070 = vpop.f32.mrb[0].mxu0
        %3071 = vdwg.mxu0
        %3072 = vmatprep.subr.bf16.mxu0 0
        %3073 = vmatpush1.bf16.msra.mxu0 %v2968
        %3074 = vmatprep.subr.bf16.mxu0 0
        %3075 = vmatpush1.bf16.msra.mxu0 %v2969
        %3076 = vmatprep.subr.bf16.mxu0 0
        %3077 = vmatpush1.bf16.msra.mxu0 %v2970
        %3078 = vmatprep.subr.bf16.mxu0 0
        %3079 = vmatpush1.bf16.msra.mxu0 %v2971
        %3080 = vmatprep.subr.bf16.mxu0 0
        %3081 = vmatpush1.bf16.msra.mxu0 %v2972
        %3082 = vmatprep.subr.bf16.mxu0 0
        %3083 = vmatpush1.bf16.msra.mxu0 %v2973
        %3084 = vmatprep.subr.bf16.mxu0 0
        %3085 = vmatpush1.bf16.msra.mxu0 %v2974
        %3086 = vmatprep.subr.bf16.mxu0 0
        %3087 = vmatpush1.bf16.msra.mxu0 %v2975
        %3088 = vmatprep.subr.bf16.mxu0 0
        %3089 = vmatpush1.bf16.msra.mxu0 %v2976
        %3090 = vmatprep.subr.bf16.mxu0 0
        %3091 = vmatpush1.bf16.msra.mxu0 %v2977
        %3092 = vmatprep.subr.bf16.mxu0 0
        %3093 = vmatpush1.bf16.msra.mxu0 %v2978
        %3094 = vmatprep.subr.bf16.mxu0 0
        %3095 = vmatpush1.bf16.msra.mxu0 %v2979
        %3096 = vmatprep.subr.bf16.mxu0 0
        %3097 = vmatpush1.bf16.msra.mxu0 %v2980
        %3098 = vmatprep.subr.bf16.mxu0 0
        %3099 = vmatpush1.bf16.msra.mxu0 %v2981
        %3100 = vmatprep.subr.bf16.mxu0 0
        %3101 = vmatpush1.bf16.msra.mxu0 %v2982
        %3102 = vmatprep.subr.bf16.mxu0 0
        %3103 = vmatpush1.bf16.msra.mxu0 %v2983
        %3104 = vmatprep.mubr.bf16.mxu0 %v2798
        %3105 = vmatmul.mubr.bf16.gmra.mrb[0].mxu0 %v2797
        %v3106 = vpop.f32.mrb[0].mxu0
        %v3107 = vadd.f32 %v3067, %v3106
        %v3108 = vpop.f32.mrb[0].mxu0
        %v3109 = vpop.f32.mrb[0].mxu0
        %v3110 = vpop.f32.mrb[0].mxu0
        %3111 = vdwg.mxu0
        %3112 = vmatprep.subr.bf16.mxu0 0
        %3113 = vmatpush1.bf16.msra.mxu0 %v2984
        %3114 = vmatprep.subr.bf16.mxu0 0
        %3115 = vmatpush1.bf16.msra.mxu0 %v2985
        %3116 = vmatprep.subr.bf16.mxu0 0
        %3117 = vmatpush1.bf16.msra.mxu0 %v2986
        %3118 = vmatprep.subr.bf16.mxu0 0
        %3119 = vmatpush1.bf16.msra.mxu0 %v2987
        %3120 = vmatprep.subr.bf16.mxu0 0
        %3121 = vmatpush1.bf16.msra.mxu0 %v2988
        %3122 = vmatprep.subr.bf16.mxu0 0
        %3123 = vmatpush1.bf16.msra.mxu0 %v2989
        %3124 = vmatprep.subr.bf16.mxu0 0
        %3125 = vmatpush1.bf16.msra.mxu0 0
        %3126 = vmatprep.subr.bf16.mxu0 0
        %3127 = vmatpush1.bf16.msra.mxu0 0
        %3128 = vmatprep.subr.bf16.mxu0 0
        %3129 = vmatpush1.bf16.msra.mxu0 0
        %3130 = vmatprep.subr.bf16.mxu0 0
        %3131 = vmatpush1.bf16.msra.mxu0 0
        %3132 = vmatprep.subr.bf16.mxu0 0
        %3133 = vmatpush1.bf16.msra.mxu0 0
        %3134 = vmatprep.subr.bf16.mxu0 0
        %3135 = vmatpush1.bf16.msra.mxu0 0
        %3136 = vmatprep.subr.bf16.mxu0 0
        %3137 = vmatpush1.bf16.msra.mxu0 0
        %3138 = vmatprep.subr.bf16.mxu0 0
        %3139 = vmatpush1.bf16.msra.mxu0 0
        %3140 = vmatprep.subr.bf16.mxu0 0
        %3141 = vmatpush1.bf16.msra.mxu0 0
        %3142 = vmatprep.subr.bf16.mxu0 0
        %3143 = vmatpush1.bf16.msra.mxu0 0
        %3144 = vmatprep.mubr.bf16.mxu0 0
        %3145 = vmatmul.mubr.bf16.gmra.mrb[0].mxu0 %v3030
        %v3146 = vpop.f32.mrb[0].mxu0
        %v3147 = vadd.f32 %v3107, %v3146
        %v3148 = vpop.f32.mrb[0].mxu0
        %v3149 = vpop.f32.mrb[0].mxu0
        %v3150 = vpop.f32.mrb[0].mxu0
        %3151 = vdwg.mxu0
        %v3152 = vmax.f32 %v3147, 0.0
        %v3153 = vld [vmem:[#allocation2] sm:$0x3]
        %v3155 = vsel %vm345, %v3153, 0
        %3157 = vmatprep.subr.mxu0 0.0
        %3158 = vmatpush1.msra.mxu0 %v304
        %3159 = vmatprep.subr.mxu0 0.0
        %3160 = vmatpush1.msra.mxu0 %v305
        %3161 = vmatprep.subr.mxu0 0.0
        %3162 = vmatpush1.msra.mxu0 %v306
        %3163 = vmatprep.subr.mxu0 0.0
        %3164 = vmatpush1.msra.mxu0 %v307
        %3165 = vmatprep.subr.mxu0 0.0
        %3166 = vmatpush1.msra.mxu0 0.0
        %3167 = vmatprep.subr.mxu0 0.0
        %3168 = vmatpush1.msra.mxu0 0.0
        %3169 = vmatprep.subr.mxu0 0.0
        %3170 = vmatpush1.msra.mxu0 0.0
        %3171 = vmatprep.subr.mxu0 0.0
        %3172 = vmatpush1.msra.mxu0 0.0
        %3173 = vmatprep.subr.mxu0 0.0
        %3174 = vmatpush1.msra.mxu0 0.0
        %3175 = vmatprep.subr.mxu0 0.0
        %3176 = vmatpush1.msra.mxu0 0.0
        %3177 = vmatprep.subr.mxu0 0.0
        %3178 = vmatpush1.msra.mxu0 0.0
        %3179 = vmatprep.subr.mxu0 0.0
        %3180 = vmatpush1.msra.mxu0 0.0
        %3181 = vmatprep.subr.mxu0 0.0
        %3182 = vmatpush1.msra.mxu0 0.0
        %3183 = vmatprep.subr.mxu0 0.0
        %3184 = vmatpush1.msra.mxu0 0.0
        %3185 = vmatprep.subr.mxu0 0.0
        %3186 = vmatpush1.msra.mxu0 0.0
        %3187 = vmatprep.subr.mxu0 0.0
        %3188 = vmatpush1.msra.mxu0 0.0
        %3189 = vmatprep.subr.mxu0 0.0
        %3190 = vmatpush1.msra.mxu0 0.0
        %3191 = vmatprep.subr.mxu0 0.0
        %3192 = vmatpush1.msra.mxu0 0.0
        %3193 = vmatprep.subr.mxu0 0.0
        %3194 = vmatpush1.msra.mxu0 0.0
        %3195 = vmatprep.subr.mxu0 0.0
        %3196 = vmatpush1.msra.mxu0 0.0
        %3197 = vmatprep.subr.mxu0 0.0
        %3198 = vmatpush1.msra.mxu0 0.0
        %3199 = vmatprep.subr.mxu0 0.0
        %3200 = vmatpush1.msra.mxu0 0.0
        %3201 = vmatprep.subr.mxu0 0.0
        %3202 = vmatpush1.msra.mxu0 0.0
        %3203 = vmatprep.subr.mxu0 0.0
        %3204 = vmatpush1.msra.mxu0 0.0
        %3205 = vmatprep.subr.mxu0 0.0
        %3206 = vmatpush1.msra.mxu0 0.0
        %3207 = vmatprep.subr.mxu0 0.0
        %3208 = vmatpush1.msra.mxu0 0.0
        %3209 = vmatprep.subr.mxu0 0.0
        %3210 = vmatpush1.msra.mxu0 0.0
        %3211 = vmatprep.subr.mxu0 0.0
        %3212 = vmatpush1.msra.mxu0 0.0
        %3213 = vmatprep.subr.mxu0 0.0
        %3214 = vmatpush1.msra.mxu0 0.0
        %3215 = vmatprep.subr.mxu0 0.0
        %3216 = vmatpush1.msra.mxu0 0.0
        %3217 = vmatprep.subr.mxu0 0.0
        %3218 = vmatpush1.msra.mxu0 0.0
        %3219 = vmatprep.subr.mxu0 0.0
        %3220 = vmatpush1.msra.mxu0 0.0
        %3221 = vmatprep.mubr.f32.mxu0 0.0
        %3222 = vmatmul.mubr.f32.gmra.mrb[0].mxu0 %v3155
        %v3223 = vpop.f32.mrb[0].mxu0
        %v3224 = vadd.f32 %v303, %v3223
        %v3225 = vpop.f32.mrb[0].mxu0
        %3226 = vdwg.mxu0
        %3228 = vrot.lane.b32.xlu0 %v3224, 32
        %v3229 = vpop.permute.xlu0 %3228
        %v3231 = vadd.f32 %v3147, %v3229
        %v3232 = vxor.u32 %v3231, 2147483648
        %v3233 = vmul.f32 %v3232, 1.442695
        %v3234 = vpow.pop %v3233
        %v3235 = vadd.f32 %v3234, 1.0
        %v3236 = vrcp.pop %v3235
        %v3237 = vmul.f32 1.0, %v3236
        %3238 = vrot.lane.b32.xlu0 %v3224, 96
        %v3239 = vpop.permute.xlu0 %3238
        %v3241 = vmul.f32 %v3237, %v3239
        %3243 = vrot.lane.b32.xlu0 %v3241, 64
        %v3244 = vpop.permute.xlu0 %3243
        %v3246 = vadd.f32 %v3147, %v3244
        %v3247 = vtanh.pop %v3246
        %v3248 = vsub.f32 1.0, %v3237
        %3250 = vrot.lane.b32.xlu0 %v3247, 96
        %v3251 = vpop.permute.xlu0 %3250
        %v3253 = vmul.f32 %v3248, %v3251
        %3254 = vrot.lane.b32.xlu0 %v3153, 64
        %v3255 = vpop.permute.xlu0 %3254
        %v3257 = vmul.f32 %v3237, %v3255
        %v3258 = vadd.f32 %v3253, %v3257
        %3260 = vrot.lane.b32.xlu0 %v3258, 64
        %v3261 = vpop.permute.xlu0 %3260
        %vm3263 = vcmask 254976
        %3264 = vst.msk [vmem:[#allocation2] sm:$0x3] %vm3263, %v3261
        %3266 = vrot.lane.b32.xlu0 %v3152, 32
        %v3267 = vpop.permute.xlu0 %3266
        %v3269 = vsel %vm345, %v3261, %v3267
        %v3270 = vsel %vm2789, %v3269, 0.0
        %3271 = vst [vmem:[%s205] sm:$0x3] %v3270
        %s3272 = sand.u32 %s116, 1
        %s3273 = scalar_lea.sflag [#allocation5], %s3272
        %s3274 = sand.u32 %s116, 1
        %s3275 = smul.addr %s3274, 2
        %s3276 = scalar_lea.vmem [#allocation6], %s3275
        // Predicated region
        $region45: #{tpu_custom_call.1} parent=35 // pred_check
          %p3277 = pneg %p126
        $region46: #{tpu_custom_call.1} parent=35 // pred_check_branch
          %3279 = sbr.rel (%p3277) target = $region48
        $region47: #{tpu_custom_call.1} parent=35 // pred_region
          %s3281 = ssub.s32 32, 32
          %3282 = vsyncadd %s3273, %s3281
          %s3283 = smul.addr %s19, 32
          %s3284 = scalar_lea.hbm %s4, %s3283
          %s3286 = sshll.u32 %s3276, 4
          %s3287 = int_to_ptr.vmem [resolvable:$true] %s3286
          %3289 = dma.vmem_to_hbm [thread:$0]  %s3287, 32, %s3284, %s3273
        $region48: #{tpu_custom_call.1} parent=35 // pred_fallthru
          _
      $region36: #{tpu_custom_call.1} parent=5 // pred_fallthru
        _
      %p3290 = scmp.le.s32.totalorder 2, %s14
      // Predicated region
      $region49: #{tpu_custom_call.1} parent=5 // pred_check
        %p3291 = pneg %p3290
      $region50: #{tpu_custom_call.1} parent=5 // pred_check_branch
        %3293 = sbr.rel (%p3291) target = $region52
      $region51: #{tpu_custom_call.1} parent=5 // pred_region
        %s3294 = ssub.s32 %s14, 2
        // Predicated region
        $region53: #{tpu_custom_call.1} parent=51 // pred_check
          %p3295 = pneg %p132
        $region54: #{tpu_custom_call.1} parent=51 // pred_check_branch
          %3297 = sbr.rel (%p3295) target = $region56
        $region55: #{tpu_custom_call.1} parent=51 // pred_region
          %s3298 = sand.u32 %s117, 1
          %s3299 = scalar_lea.sflag [#allocation5], %s3298
          %s3300 = sand.u32 %s117, 1
          %s3301 = smul.addr %s3300, 2
          %s3302 = scalar_lea.vmem [#allocation6], %s3301
          %3303 = dma.done %s3299, 32
        $region56: #{tpu_custom_call.1} parent=51 // pred_fallthru
          _
      $region52: #{tpu_custom_call.1} parent=5 // pred_fallthru
        _
    $region6: #{tpu_custom_call.1} parent=1 // loop_footer
      %s18 = sadd.s32 1, %s14
    $region7: #{tpu_custom_call.1} parent=1 // loop_footer_branch
      %13 = sbr.rel target = $region3
    $region8: #{tpu_custom_call.1} parent=1 // loop_exit
      _
    %3304 = vsyncpa [#allocation4], 1
    %s3305 = scalar_lea.sflag [#allocation4], 1
    %3306 = vsyncpa %s3305, 1
    %3307 = vsyncpa [#allocation5], 1
    %s3308 = scalar_lea.sflag [#allocation5], 1
    %3309 = vsyncpa %s3308, 1

</llo_original>
